<compile_context>
chip_gen: v7x
topology: tpu7x:2x2x1
jax: 0.10.0
libtpu: 0.0.40
codegen_flags: <defaults>
</compile_context>

<pallas_src>
import functools

import jax
import jax.numpy as jnp
from jax import lax
from jax.experimental import pallas as pl
from jax.experimental.pallas import tpu as pltpu


# ----------------------------------------------------------------------------
# Kernel 1: 3x3 conv (s=1, p=1) as three per-kh im2col matmuls into one f32
# accumulator, with the BatchNorm per-channel sum / sum-of-squares fused into
# the epilogue.
# ----------------------------------------------------------------------------
def _conv3x3_bn_stats_kernel(x_ref, w_ref, b_ref, y_ref, st_ref, xpad_ref,
                             *, Nb, H, W, Cin, Cout):
    # Zero ONLY the 1-wide halo border (interior is fully overwritten below).
    zrow = jnp.zeros((Nb, 1, W + 2, Cin), xpad_ref.dtype)
    xpad_ref[:, 0:1, :, :] = zrow
    xpad_ref[:, H + 1:H + 2, :, :] = zrow
    zcol = jnp.zeros((Nb, H + 2, 1, Cin), xpad_ref.dtype)
    xpad_ref[:, :, 0:1, :] = zcol
    xpad_ref[:, :, W + 1:W + 2, :] = zcol
    xpad_ref[:, 1:H + 1, 1:W + 1, :] = x_ref[...]          # compute-dtype staging

    xp = xpad_ref[...]                                      # (Nb, H+2, W+2, Cin)
    M = Nb * H * W
    acc = jnp.zeros((M, Cout), jnp.float32)
    # Per-kh im2col: K = 3*Cin per dot (3x less materialized than a single 9-way concat).
    for kh in range(3):
        pk = jnp.concatenate([xp[:, kh:kh + H, kw:kw + W, :] for kw in range(3)],
                             axis=-1).reshape(M, 3 * Cin)
        acc = acc + jnp.dot(pk, w_ref[kh], preferred_element_type=jnp.float32)
    acc = acc + b_ref[...]                                  # bias on the flat f32 accumulator

    # Fused BatchNorm statistics: per-grid-step partial sums (reduced in the wrapper,
    # keeps the batch grid axis "parallel").
    s = jnp.sum(acc, axis=0, keepdims=True)
    sq = jnp.sum(acc * acc, axis=0, keepdims=True)
    st_ref[0] = jnp.concatenate([s, sq], axis=0)            # (2, Cout)

    y_ref[...] = acc.reshape(Nb, H, W, Cout).astype(y_ref.dtype)


# ----------------------------------------------------------------------------
# Kernel 2: fused BatchNorm (precomputed scale/shift) + ReLU + 3x3 stride-2 conv.
# Only the Ho x Wo outputs are computed.  The input block is y1 in "column-pair"
# layout (Nb, H, Wo, 2C): [..., j, 0:C] = y1[:, 2j, :], [..., j, C:2C] = y1[:, 2j+1, :],
# so every slice feeding the matmuls is unit-stride.
# ----------------------------------------------------------------------------
def _bn_relu_downconv_kernel(y_ref, sc_ref, sh_ref, w_ref, b_ref, o_ref, zpad_ref,
                             *, Nb, H, Wo, C2, Cout):
    Ho = H // 2

    # Zero ONLY the halo border (top row, bottom row, left padding-pair column).
    zrow = jnp.zeros((Nb, 1, Wo + 1, C2), zpad_ref.dtype)
    zpad_ref[:, 0:1, :, :] = zrow
    zpad_ref[:, H + 1:H + 2, :, :] = zrow
    zcol = jnp.zeros((Nb, H + 2, 1, C2), zpad_ref.dtype)
    zpad_ref[:, :, 0:1, :] = zcol

    # BatchNorm + ReLU (f32 epilogue; scale/shift pre-tiled to the pair layout),
    # staged in compute dtype.
    z = jnp.maximum(y_ref[...].astype(jnp.float32) * sc_ref[...] + sh_ref[...], 0.0)
    zpad_ref[:, 1:H + 1, 1:Wo + 1, :] = z.astype(zpad_ref.dtype)
    S = zpad_ref[...]                                       # (Nb, H+2, Wo+1, C2)

    # Row taps kh=0,1,2 need padded rows {2ho, 2ho+1, 2ho+2}: selected with
    # leading-dim reshapes only (layout-free).
    Sa = S[:, 0:H].reshape(Nb, Ho, 2, Wo + 1, C2)
    Sb = S[:, 2:H + 2].reshape(Nb, Ho, 2, Wo + 1, C2)
    rows = (Sa[:, :, 0], Sa[:, :, 1], Sb[:, :, 0])          # each (Nb, Ho, Wo+1, C2)

    # Per-row-tap im2col (K = 2*C2 = 4*Cout each, incl. one zero-weight slot):
    #   cols[0:Wo]   -> slot1 = input col 2wo-1 (kw=0); slot0 unused (zero weight rows)
    #   cols[1:Wo+1] -> slot0 = input col 2wo   (kw=1); slot1 = input col 2wo+1 (kw=2)
    M = Nb * Ho * Wo
    acc = jnp.zeros((M, Cout), jnp.float32)
    for t, R in enumerate(rows):
        pk = jnp.concatenate([R[:, :, 0:Wo, :], R[:, :, 1:Wo + 1, :]],
                             axis=-1).reshape(M, 2 * C2)
        acc = acc + jnp.dot(pk, w_ref[t], preferred_element_type=jnp.float32)
    acc = acc + b_ref[...]
    o_ref[...] = acc.reshape(Nb, Ho, Wo, Cout).astype(o_ref.dtype)


# ----------------------------------------------------------------------------
# Weight packing helpers.
# ----------------------------------------------------------------------------
def _conv1_weight(w_hwio, cdt):
    # (3, 3, Cin, Cout) -> (3, 3*Cin, Cout): per kh, channel order [kw=0, kw=1, kw=2].
    Cin, Cout = w_hwio.shape[2], w_hwio.shape[3]
    return jnp.stack([w_hwio[kh].reshape(3 * Cin, Cout) for kh in range(3)],
                     axis=0).astype(cdt)


def _downsample_weight(w_hwio, cdt):
    # (3, 3, C, Cout) -> (3, 4*C, Cout) matching the column-pair im2col channel order
    # per row tap kh: [zeros (unused pair slot), w[kh,0], w[kh,1], w[kh,2]].
    C, Cout = w_hwio.shape[2], w_hwio.shape[3]
    zero = jnp.zeros((C, Cout), w_hwio.dtype)
    taps = [jnp.concatenate([zero, w_hwio[kh, 0], w_hwio[kh, 1], w_hwio[kh, 2]], axis=0)
            for kh in range(3)]
    return jnp.stack(taps, axis=0).astype(cdt)


def _vmem_limit_bytes():
    # ~75% of physical VMEM: 96 MiB on v5e/v6e (128 MiB), 48 MiB on v7x (64 MiB).
    try:
        cap = pltpu.get_tpu_info().vmem_capacity_bytes
    except Exception:
        cap = 64 * 1024 * 1024
    return int(min(cap * 3 // 4, 96 * 1024 * 1024))


def _pick_batch_block(N, H, W, Cin, Cout, itemsize, budget_bytes):
    """Largest divisor of N whose per-step VMEM footprint fits the budget."""
    Ho, Wo = H // 2, W // 2
    k1 = (itemsize * (2 * H * W * Cin                      # input block (double-buffered)
                      + 2 * H * W * Cout                   # y1 block (double-buffered)
                      + 2 * (H + 2) * (W + 2) * Cin        # padded scratch + loaded copy
                      + 3 * Cin * H * W)                   # live per-kh patches
          + 4 * H * W * Cout)                              # f32 accumulator
    k2 = (itemsize * (2 * H * W * Cout                     # y1 pair-layout block (double-buffered)
                      + 2 * (H + 2) * (Wo + 1) * 2 * Cout  # padded scratch + loaded copy
                      + 4 * Cout * Ho * Wo)                # live per-row-tap patches
          + 4 * (H * W * Cout                              # f32 BN+ReLU intermediate
                 + 3 * Ho * Wo * Cout))                    # f32 accumulator + output blocks
    per_img = max(k1, k2)
    nb = 1
    for d in range(1, N + 1):
        if N % d == 0 and d * per_img <= budget_bytes:
            nb = d
    return nb


# ----------------------------------------------------------------------------
# Full forward (matches ConvEncoderBlock(in_c, out_c).forward on NCHW input).
# ----------------------------------------------------------------------------
def conv_encoder_block_forward(x_nchw, params, eps=1e-5, compute_dtype=jnp.bfloat16,
                               batch_block=None):
    cdt = compute_dtype
    # NCHW -> NHWC, already in compute dtype (halves kernel-1 input DMA on the bf16 path).
    # (If the surrounding model stayed NHWC this transpose would be dropped entirely.)
    x = jnp.transpose(x_nchw, (0, 2, 3, 1)).astype(cdt)
    N, H, W, Cin = x.shape
    Cout = params["w1"].shape[-1]
    assert H % 2 == 0 and W % 2 == 0, "even spatial dims required for the s=2 downsample"

    vmem_limit = _vmem_limit_bytes()
    itemsize = jnp.dtype(cdt).itemsize
    Nb = batch_block or _pick_batch_block(N, H, W, Cin, Cout, itemsize, vmem_limit // 2)
    assert N % Nb == 0
    G = N // Nb
    cparams = pltpu.CompilerParams(dimension_semantics=("parallel",),
                                   vmem_limit_bytes=vmem_limit)

    # --- conv1 (k=3, s=1, p=1) + fused BN-statistics epilogue -----------------
    w1 = _conv1_weight(params["w1"], cdt)                      # (3, 3*Cin, Cout)
    b1 = params["b1"].reshape(1, Cout).astype(jnp.float32)
    kern1 = functools.partial(_conv3x3_bn_stats_kernel,
                              Nb=Nb, H=H, W=W, Cin=Cin, Cout=Cout)
    y1, stats = pl.pallas_call(
        kern1,
        out_shape=(jax.ShapeDtypeStruct((N, H, W, Cout), cdt),
                   jax.ShapeDtypeStruct((G, 2, Cout), jnp.float32)),
        grid=(G,),
        in_specs=[
            pl.BlockSpec((Nb, H, W, Cin), lambda n: (n, 0, 0, 0)),
            pl.BlockSpec((3, 3 * Cin, Cout), lambda n: (0, 0, 0)),
            pl.BlockSpec((1, Cout), lambda n: (0, 0)),
        ],
        out_specs=(pl.BlockSpec((Nb, H, W, Cout), lambda n: (n, 0, 0, 0)),
                   pl.BlockSpec((1, 2, Cout), lambda n: (n, 0, 0))),
        scratch_shapes=[pltpu.VMEM((Nb, H + 2, W + 2, Cin), cdt)],
        compiler_params=cparams,
    )(x, w1, b1)

    # --- BatchNorm batch statistics (training-mode semantics) -----------------
    # E[x^2]-E[x]^2 in f32 (clamped at 0); fine at these magnitudes — for very large
    # N*H*W with large-mean activations a shifted sum-of-squares would be safer.
    cnt = jnp.float32(N * H * W)
    sums = jnp.sum(stats, axis=0)                          # (2, Cout), tiny reduction
    mean = sums[0] / cnt
    var = jnp.maximum(sums[1] / cnt - mean * mean, 0.0)    # biased variance, clamped >= 0
    scale = params["gamma"] / jnp.sqrt(var + eps)
    shift = params["beta"] - mean * scale
    scale2 = jnp.tile(scale, 2).reshape(1, 2 * Cout).astype(jnp.float32)
    shift2 = jnp.tile(shift, 2).reshape(1, 2 * Cout).astype(jnp.float32)

    # --- BN + ReLU + downsampling conv (k=3, s=2, p=1) ------------------------
    Ho, Wo, C2 = H // 2, W // 2, 2 * Cout
    y_pairs = y1.reshape(N, H, Wo, C2)                     # metadata-only reshape (row-major)
    w2 = _downsample_weight(params["w2"], cdt)             # (3, 4*Cout, Cout)
    b2 = params["b2"].reshape(1, Cout).astype(jnp.float32)
    kern2 = functools.partial(_bn_relu_downconv_kernel,
                              Nb=Nb, H=H, Wo=Wo, C2=C2, Cout=Cout)
    out = pl.pallas_call(
        kern2,
        out_shape=jax.ShapeDtypeStruct((N, Ho, Wo, Cout), jnp.float32),
        grid=(G,),
        in_specs=[
            pl.BlockSpec((Nb, H, Wo, C2), lambda n: (n, 0, 0, 0)),
            pl.BlockSpec((1, C2), lambda n: (0, 0)),
            pl.BlockSpec((1, C2), lambda n: (0, 0)),
            pl.BlockSpec((3, 2 * C2, Cout), lambda n: (0, 0, 0)),
            pl.BlockSpec((1, Cout), lambda n: (0, 0)),
        ],
        out_specs=pl.BlockSpec((Nb, Ho, Wo, Cout), lambda n: (n, 0, 0, 0)),
        scratch_shapes=[pltpu.VMEM((Nb, H + 2, Wo + 1, C2), cdt)],
        compiler_params=cparams,
    )(y_pairs, scale2, shift2, w2, b2)
    return jnp.transpose(out, (0, 3, 1, 2))                # NHWC -> NCHW


# ----------------------------------------------------------------------------
# Pure-JAX reference (XLA convs) for the correctness check.
# ----------------------------------------------------------------------------
def reference_forward(x_nchw, params, eps=1e-5):
    dn = ("NCHW", "HWIO", "NCHW")
    y = lax.conv_general_dilated(x_nchw, params["w1"], (1, 1), ((1, 1), (1, 1)),
                                 dimension_numbers=dn,
                                 precision=lax.Precision.HIGHEST)
    y = y + params["b1"][None, :, None, None]
    mean = jnp.mean(y, axis=(0, 2, 3))
    var = jnp.var(y, axis=(0, 2, 3))
    yn = (y - mean[None, :, None, None]) / jnp.sqrt(var[None, :, None, None] + eps)
    yn = yn * params["gamma"][None, :, None, None] + params["beta"][None, :, None, None]
    z = jnp.maximum(yn, 0.0)
    out = lax.conv_general_dilated(z, params["w2"], (2, 2), ((1, 1), (1, 1)),
                                   dimension_numbers=dn,
                                   precision=lax.Precision.HIGHEST)
    return out + params["b2"][None, :, None, None]


def init_params(key, in_c, out_c):
    k1, k2, k3, k4 = jax.random.split(key, 4)
    bound1 = 1.0 / (in_c * 9) ** 0.5
    bound2 = 1.0 / (out_c * 9) ** 0.5
    return {
        "w1": jax.random.uniform(k1, (3, 3, in_c, out_c), jnp.float32, -bound1, bound1),
        "b1": jax.random.uniform(k2, (out_c,), jnp.float32, -bound1, bound1),
        "gamma": jnp.ones((out_c,), jnp.float32),
        "beta": jnp.zeros((out_c,), jnp.float32),
        "w2": jax.random.uniform(k3, (3, 3, out_c, out_c), jnp.float32, -bound2, bound2),
        "b2": jax.random.uniform(k4, (out_c,), jnp.float32, -bound2, bound2),
    }


if __name__ == "__main__":
    N, in_c, out_c, H, W = 2, 4, 8, 16, 16
    key = jax.random.PRNGKey(0)
    kx, kp = jax.random.split(key)
    x = jax.random.normal(kx, (N, in_c, H, W), jnp.float32)
    params = init_params(kp, in_c, out_c)

    ref = jax.block_until_ready(reference_forward(x, params))

    # f32 MXU path: tight check against the XLA reference.
    out_f32 = jax.block_until_ready(
        conv_encoder_block_forward(x, params, compute_dtype=jnp.float32))
    assert out_f32.shape == (N, out_c, H // 2, W // 2), out_f32.shape
    assert jnp.allclose(out_f32, ref, atol=1e-3, rtol=1e-3), \
        float(jnp.max(jnp.abs(out_f32 - ref)))

    # bf16 MXU path (default; recommended for v6e/v7x): looser tolerance.
    out_bf16 = jax.block_until_ready(conv_encoder_block_forward(x, params))
    assert out_bf16.shape == (N, out_c, H // 2, W // 2), out_bf16.shape
    assert jnp.allclose(out_bf16, ref, atol=1e-1, rtol=1e-1), \
        float(jnp.max(jnp.abs(out_bf16 - ref)))

    print("KERNEL_OK")
</pallas_src>

<mosaic_0001>
module attributes {stable_mosaic.version = 11 : i64} {
  func.func @_conv3x3_bn_stats_kernel(%arg0: i32, %arg1: memref<2x16x16x4xf32, #tpu.memory_space<vmem>>, %arg2: memref<3x12x8xf32, #tpu.memory_space<vmem>>, %arg3: memref<1x8xf32, #tpu.memory_space<vmem>>, %arg4: memref<2x16x16x8xf32, #tpu.memory_space<vmem>>, %arg5: memref<1x2x8xf32, #tpu.memory_space<vmem>>, %arg6: memref<2x18x18x4xf32, #tpu.memory_space<vmem>>) attributes {dimension_semantics = [#tpu.dimension_semantics<parallel>], iteration_bounds = array<i64: 1>, scalar_prefetch = 0 : i64, scratch_operands = 1 : i64, tpu.core_type = #tpu.core_type<tc>, window_params = [{transform_indices = @transform_0, window_bounds = array<i64: 2, 16, 16, 4>}, {pipeline_mode = #tpu.pipeline_mode<synchronous>, transform_indices = @transform_1, window_bounds = array<i64: 3, 12, 8>}, {pipeline_mode = #tpu.pipeline_mode<synchronous>, transform_indices = @transform_2, window_bounds = array<i64: 1, 8>}, {transform_indices = @transform_3, window_bounds = array<i64: 2, 16, 16, 8>}, {transform_indices = @transform_4, window_bounds = array<i64: 1, 2, 8>}]} {
    %cst = arith.constant 0.000000e+00 : f32
    %0 = vector.broadcast %cst : f32 to vector<2x1x18x4xf32>
    %c0 = arith.constant 0 : index
    %c0_0 = arith.constant 0 : index
    %c0_1 = arith.constant 0 : index
    %c0_2 = arith.constant 0 : index
    %1 = vector.load %arg6[%c0, %c0_0, %c0_1, %c0_2] : memref<2x18x18x4xf32, #tpu.memory_space<vmem>>, vector<2x1x18x4xf32>
    tpu.vector_store %arg6[%c0, %c0_0, %c0_1, %c0_2], %0 {strides = array<i32>} : memref<2x18x18x4xf32, #tpu.memory_space<vmem>>, vector<2x1x18x4xf32>,
    %c0_3 = arith.constant 0 : index
    %c17 = arith.constant 17 : index
    %c0_4 = arith.constant 0 : index
    %c0_5 = arith.constant 0 : index
    %2 = vector.load %arg6[%c0_3, %c17, %c0_4, %c0_5] : memref<2x18x18x4xf32, #tpu.memory_space<vmem>>, vector<2x1x18x4xf32>
    tpu.vector_store %arg6[%c0_3, %c17, %c0_4, %c0_5], %0 {strides = array<i32>} : memref<2x18x18x4xf32, #tpu.memory_space<vmem>>, vector<2x1x18x4xf32>,
    %cst_6 = arith.constant 0.000000e+00 : f32
    %3 = vector.broadcast %cst_6 : f32 to vector<2x18x1x4xf32>
    %c0_7 = arith.constant 0 : index
    %c0_8 = arith.constant 0 : index
    %c0_9 = arith.constant 0 : index
    %c0_10 = arith.constant 0 : index
    %4 = vector.load %arg6[%c0_7, %c0_8, %c0_9, %c0_10] : memref<2x18x18x4xf32, #tpu.memory_space<vmem>>, vector<2x18x1x4xf32>
    tpu.vector_store %arg6[%c0_7, %c0_8, %c0_9, %c0_10], %3 {strides = array<i32>} : memref<2x18x18x4xf32, #tpu.memory_space<vmem>>, vector<2x18x1x4xf32>,
    %c0_11 = arith.constant 0 : index
    %c0_12 = arith.constant 0 : index
    %c17_13 = arith.constant 17 : index
    %c0_14 = arith.constant 0 : index
    %5 = vector.load %arg6[%c0_11, %c0_12, %c17_13, %c0_14] : memref<2x18x18x4xf32, #tpu.memory_space<vmem>>, vector<2x18x1x4xf32>
    tpu.vector_store %arg6[%c0_11, %c0_12, %c17_13, %c0_14], %3 {strides = array<i32>} : memref<2x18x18x4xf32, #tpu.memory_space<vmem>>, vector<2x18x1x4xf32>,
    %c0_15 = arith.constant 0 : index
    %c0_16 = arith.constant 0 : index
    %c0_17 = arith.constant 0 : index
    %c0_18 = arith.constant 0 : index
    %6 = vector.load %arg1[%c0_15, %c0_16, %c0_17, %c0_18] : memref<2x16x16x4xf32, #tpu.memory_space<vmem>>, vector<2x16x16x4xf32>
    %c0_19 = arith.constant 0 : index
    %c1 = arith.constant 1 : index
    %c1_20 = arith.constant 1 : index
    %c0_21 = arith.constant 0 : index
    %7 = vector.load %arg6[%c0_19, %c1, %c1_20, %c0_21] : memref<2x18x18x4xf32, #tpu.memory_space<vmem>>, vector<2x16x16x4xf32>
    tpu.vector_store %arg6[%c0_19, %c1, %c1_20, %c0_21], %6 {strides = array<i32>} : memref<2x18x18x4xf32, #tpu.memory_space<vmem>>, vector<2x16x16x4xf32>,
    %c0_22 = arith.constant 0 : index
    %c0_23 = arith.constant 0 : index
    %c0_24 = arith.constant 0 : index
    %c0_25 = arith.constant 0 : index
    %8 = vector.load %arg6[%c0_22, %c0_23, %c0_24, %c0_25] : memref<2x18x18x4xf32, #tpu.memory_space<vmem>>, vector<2x18x18x4xf32>
    %cst_26 = arith.constant 0.000000e+00 : f32
    %9 = vector.broadcast %cst_26 : f32 to vector<512x8xf32>
    %10 = vector.extract_strided_slice %8 {offsets = [0, 0, 0, 0], sizes = [2, 16, 16, 4], strides = [1, 1, 1, 1]} : vector<2x18x18x4xf32> to vector<2x16x16x4xf32>
    %11 = vector.extract_strided_slice %8 {offsets = [0, 0, 1, 0], sizes = [2, 16, 16, 4], strides = [1, 1, 1, 1]} : vector<2x18x18x4xf32> to vector<2x16x16x4xf32>
    %12 = vector.extract_strided_slice %8 {offsets = [0, 0, 2, 0], sizes = [2, 16, 16, 4], strides = [1, 1, 1, 1]} : vector<2x18x18x4xf32> to vector<2x16x16x4xf32>
    %13 = tpu.concatenate %10, %11, %12 in 3 : vector<2x16x16x4xf32>, vector<2x16x16x4xf32>, vector<2x16x16x4xf32> -> vector<2x16x16x12xf32>
    %14 = vector.shape_cast %13 : vector<2x16x16x12xf32> to vector<512x12xf32>
    %c0_27 = arith.constant 0 : index
    %c0_28 = arith.constant 0 : index
    %c0_29 = arith.constant 0 : index
    %15 = vector.load %arg2[%c0_27, %c0_28, %c0_29] : memref<3x12x8xf32, #tpu.memory_space<vmem>>, vector<1x12x8xf32>
    %16 = vector.shape_cast %15 : vector<1x12x8xf32> to vector<12x8xf32>
    %cst_30 = arith.constant dense<0.000000e+00> : vector<512x8xf32>
    %17 = tpu.matmul %14, %16, %cst_30 {dimension_numbers = #tpu.dot_dimension_numbers<[1], [0], [0], [1], [0, 0, 1, 1], [], []>} : vector<512x12xf32>, vector<12x8xf32>, vector<512x8xf32> -> vector<512x8xf32>
    %18 = arith.addf %9, %17 : vector<512x8xf32>
    %19 = vector.extract_strided_slice %8 {offsets = [0, 1, 0, 0], sizes = [2, 16, 16, 4], strides = [1, 1, 1, 1]} : vector<2x18x18x4xf32> to vector<2x16x16x4xf32>
    %20 = vector.extract_strided_slice %8 {offsets = [0, 1, 1, 0], sizes = [2, 16, 16, 4], strides = [1, 1, 1, 1]} : vector<2x18x18x4xf32> to vector<2x16x16x4xf32>
    %21 = vector.extract_strided_slice %8 {offsets = [0, 1, 2, 0], sizes = [2, 16, 16, 4], strides = [1, 1, 1, 1]} : vector<2x18x18x4xf32> to vector<2x16x16x4xf32>
    %22 = tpu.concatenate %19, %20, %21 in 3 : vector<2x16x16x4xf32>, vector<2x16x16x4xf32>, vector<2x16x16x4xf32> -> vector<2x16x16x12xf32>
    %23 = vector.shape_cast %22 : vector<2x16x16x12xf32> to vector<512x12xf32>
    %c1_31 = arith.constant 1 : index
    %c0_32 = arith.constant 0 : index
    %c0_33 = arith.constant 0 : index
    %24 = vector.load %arg2[%c1_31, %c0_32, %c0_33] : memref<3x12x8xf32, #tpu.memory_space<vmem>>, vector<1x12x8xf32>
    %25 = vector.shape_cast %24 : vector<1x12x8xf32> to vector<12x8xf32>
    %cst_34 = arith.constant dense<0.000000e+00> : vector<512x8xf32>
    %26 = tpu.matmul %23, %25, %cst_34 {dimension_numbers = #tpu.dot_dimension_numbers<[1], [0], [0], [1], [0, 0, 1, 1], [], []>} : vector<512x12xf32>, vector<12x8xf32>, vector<512x8xf32> -> vector<512x8xf32>
    %27 = arith.addf %18, %26 : vector<512x8xf32>
    %28 = vector.extract_strided_slice %8 {offsets = [0, 2, 0, 0], sizes = [2, 16, 16, 4], strides = [1, 1, 1, 1]} : vector<2x18x18x4xf32> to vector<2x16x16x4xf32>
    %29 = vector.extract_strided_slice %8 {offsets = [0, 2, 1, 0], sizes = [2, 16, 16, 4], strides = [1, 1, 1, 1]} : vector<2x18x18x4xf32> to vector<2x16x16x4xf32>
    %30 = vector.extract_strided_slice %8 {offsets = [0, 2, 2, 0], sizes = [2, 16, 16, 4], strides = [1, 1, 1, 1]} : vector<2x18x18x4xf32> to vector<2x16x16x4xf32>
    %31 = tpu.concatenate %28, %29, %30 in 3 : vector<2x16x16x4xf32>, vector<2x16x16x4xf32>, vector<2x16x16x4xf32> -> vector<2x16x16x12xf32>
    %32 = vector.shape_cast %31 : vector<2x16x16x12xf32> to vector<512x12xf32>
    %c2 = arith.constant 2 : index
    %c0_35 = arith.constant 0 : index
    %c0_36 = arith.constant 0 : index
    %33 = vector.load %arg2[%c2, %c0_35, %c0_36] : memref<3x12x8xf32, #tpu.memory_space<vmem>>, vector<1x12x8xf32>
    %34 = vector.shape_cast %33 : vector<1x12x8xf32> to vector<12x8xf32>
    %cst_37 = arith.constant dense<0.000000e+00> : vector<512x8xf32>
    %35 = tpu.matmul %32, %34, %cst_37 {dimension_numbers = #tpu.dot_dimension_numbers<[1], [0], [0], [1], [0, 0, 1, 1], [], []>} : vector<512x12xf32>, vector<12x8xf32>, vector<512x8xf32> -> vector<512x8xf32>
    %36 = arith.addf %27, %35 : vector<512x8xf32>
    %c0_38 = arith.constant 0 : index
    %c0_39 = arith.constant 0 : index
    %37 = vector.load %arg3[%c0_38, %c0_39] : memref<1x8xf32, #tpu.memory_space<vmem>>, vector<1x8xf32>
    %38 = vector.broadcast %37 : vector<1x8xf32> to vector<512x8xf32>
    %39 = arith.addf %36, %38 : vector<512x8xf32>
    %cst_40 = arith.constant dense<0.000000e+00> : vector<8xf32>
    %40 = vector.multi_reduction <add>, %39, %cst_40 [0] : vector<512x8xf32> to vector<8xf32>
    %41 = vector.shape_cast %40 : vector<8xf32> to vector<1x8xf32>
    %42 = arith.mulf %39, %39 : vector<512x8xf32>
    %cst_41 = arith.constant dense<0.000000e+00> : vector<8xf32>
    %43 = vector.multi_reduction <add>, %42, %cst_41 [0] : vector<512x8xf32> to vector<8xf32>
    %44 = vector.shape_cast %43 : vector<8xf32> to vector<1x8xf32>
    %45 = tpu.concatenate %41, %44 in 0 : vector<1x8xf32>, vector<1x8xf32> -> vector<2x8xf32>
    %c0_42 = arith.constant 0 : index
    %c0_43 = arith.constant 0 : index
    %c0_44 = arith.constant 0 : index
    %46 = vector.load %arg5[%c0_42, %c0_43, %c0_44] : memref<1x2x8xf32, #tpu.memory_space<vmem>>, vector<1x2x8xf32>
    %47 = vector.shape_cast %46 : vector<1x2x8xf32> to vector<2x8xf32>
    %48 = vector.shape_cast %45 : vector<2x8xf32> to vector<1x2x8xf32>
    tpu.vector_store %arg5[%c0_42, %c0_43, %c0_44], %48 {strides = array<i32>} : memref<1x2x8xf32, #tpu.memory_space<vmem>>, vector<1x2x8xf32>,
    %49 = vector.shape_cast %39 : vector<512x8xf32> to vector<2x16x16x8xf32>
    %c0_45 = arith.constant 0 : index
    %c0_46 = arith.constant 0 : index
    %c0_47 = arith.constant 0 : index
    %c0_48 = arith.constant 0 : index
    %50 = vector.load %arg4[%c0_45, %c0_46, %c0_47, %c0_48] : memref<2x16x16x8xf32, #tpu.memory_space<vmem>>, vector<2x16x16x8xf32>
    tpu.vector_store %arg4[%c0_45, %c0_46, %c0_47, %c0_48], %49 {strides = array<i32>} : memref<2x16x16x8xf32, #tpu.memory_space<vmem>>, vector<2x16x16x8xf32>,
    return
  }
  func.func @transform_0(%arg0: i32) -> (i32, i32, i32, i32) {
    %c0_i32 = arith.constant 0 : i32
    %c0_i32_0 = arith.constant 0 : i32
    %c0_i32_1 = arith.constant 0 : i32
    %c0_i32_2 = arith.constant 0 : i32
    return %arg0, %c0_i32, %c0_i32_0, %c0_i32_1 : i32, i32, i32, i32
  }
  func.func @transform_1(%arg0: i32) -> (i32, i32, i32) {
    %c0_i32 = arith.constant 0 : i32
    %c0_i32_0 = arith.constant 0 : i32
    %c0_i32_1 = arith.constant 0 : i32
    %c0_i32_2 = arith.constant 0 : i32
    return %c0_i32, %c0_i32_0, %c0_i32_1 : i32, i32, i32
  }
  func.func @transform_2(%arg0: i32) -> (i32, i32) {
    %c0_i32 = arith.constant 0 : i32
    %c0_i32_0 = arith.constant 0 : i32
    %c0_i32_1 = arith.constant 0 : i32
    return %c0_i32, %c0_i32_0 : i32, i32
  }
  func.func @transform_3(%arg0: i32) -> (i32, i32, i32, i32) {
    %c0_i32 = arith.constant 0 : i32
    %c0_i32_0 = arith.constant 0 : i32
    %c0_i32_1 = arith.constant 0 : i32
    %c0_i32_2 = arith.constant 0 : i32
    return %arg0, %c0_i32, %c0_i32_0, %c0_i32_1 : i32, i32, i32, i32
  }
  func.func @transform_4(%arg0: i32) -> (i32, i32, i32) {
    %c0_i32 = arith.constant 0 : i32
    %c0_i32_0 = arith.constant 0 : i32
    %c0_i32_1 = arith.constant 0 : i32
    return %arg0, %c0_i32, %c0_i32_0 : i32, i32, i32
  }
}

</mosaic_0001>

<llo_original>
// kernel: tpu_custom_call.1
$region0: #{tpu_custom_call.1}
  #allocation0 [shape = 'u32[]', space=smem, size = 0x4, offset = 0x4, fixed_abs, tag = 'smem constant byte address 0x4 - core index']
  #allocation1 [shape = 'u32[144,128]{1,0:T(1,128)}', space=vmem, size = 0x12000, scoped, tag = 'internal scratch']
  #allocation2 [shape = 'f32[2,18,18,4]{3,2,1,0:T(8,128)}', space=vmem, size = 0x6c000, scoped, tag = 'scratch operand']
  %s0 = inlined_call_operand.vmem [shape: f32[2,16,16,4], index: 0, kind: input, shape index: {}]
  %s1 = inlined_call_operand.vmem [shape: f32[3,12,8], index: 1, kind: input, shape index: {}]
  %s2 = inlined_call_operand.vmem [shape: f32[1,8], index: 2, kind: input, shape index: {}]
  %s3 = inlined_call_operand.vmem [shape: f32[2,16,16,8], index: 3, kind: output, shape index: {0}]
  %s4 = inlined_call_operand.hbm [shape: f32[1,2,8], index: 4, kind: output, shape index: {1}]
  %5 = xla_tuple %s3, %s4
  %s6 = sld [smem:[#allocation0]]
  $region30: #{tpu_custom_call.1} parent=0
    _
  %s8 = ssub.s32 1, %s6
  %s9 = scalar_select 0, %s8, %s6
  $region1: #{tpu_custom_call.1} parent=0
    #allocation3 [shape = 'u8[1024]{0}', space=vmem, size = 0x400, scoped, tag = 'output window, operand 1, single buffered']
    #allocation4 [shape = 's32[1]{0}', space=sflag, size = 0x4, scoped, tag = 'scoped memory for tpu_custom_call.1']
    %10 = vsyncpa [#allocation4], 0
    // Predicated region
    $region2: #{tpu_custom_call.1} parent=1 // pred_check
      _
    $region3: #{tpu_custom_call.1} parent=1 // pred_check_branch
      %12 = sbr.rel (0) target = $region5
    $region4: #{tpu_custom_call.1} parent=1 // pred_region
      _
    $region5: #{tpu_custom_call.1} parent=1 // pred_fallthru
      _
    // Predicated region
    $region6: #{tpu_custom_call.1} parent=1 // pred_check
      _
    $region7: #{tpu_custom_call.1} parent=1 // pred_check_branch
      %14 = sbr.rel (0) target = $region9
    $region8: #{tpu_custom_call.1} parent=1 // pred_region
      _
    $region9: #{tpu_custom_call.1} parent=1 // pred_fallthru
      _
    // Predicated region
    $region10: #{tpu_custom_call.1} parent=1 // pred_check
      _
    $region11: #{tpu_custom_call.1} parent=1 // pred_check_branch
      %16 = sbr.rel (0) target = $region13
    $region12: #{tpu_custom_call.1} parent=1 // pred_region
      _
    $region13: #{tpu_custom_call.1} parent=1 // pred_fallthru
      _
    %vm17 = vcmask 31744
    %18 = vst.msk [vmem:[#allocation2] sm:$0xff] %vm17, 0.0
    %19 = vst.msk [vmem:[#allocation2 + $0x8] sm:$0xff] %vm17, 0.0
    %vm20 = vcmask 25600
    %21 = vst.msk [vmem:[#allocation2 + $0x10] sm:$0x3] %vm20, 0.0
    %22 = vst.msk [vmem:[#allocation2 + $0x1b0] sm:$0xff] %vm17, 0.0
    %23 = vst.msk [vmem:[#allocation2 + $0x1b8] sm:$0xff] %vm17, 0.0
    %24 = vst.msk [vmem:[#allocation2 + $0x1c0] sm:$0x3] %vm20, 0.0
    %s25 = scalar_lea.vmem [#allocation2], 408
    %26 = vst.msk [vmem:[%s25] sm:$0xff] %vm17, 0.0
    %27 = vst.msk [vmem:[%s25 + $0x8] sm:$0xff] %vm17, 0.0
    %28 = vst.msk [vmem:[%s25 + $0x10] sm:$0x3] %vm20, 0.0
    %29 = vst.msk [vmem:[%s25 + $0x1b0] sm:$0xff] %vm17, 0.0
    %30 = vst.msk [vmem:[%s25 + $0x1b8] sm:$0xff] %vm17, 0.0
    %31 = vst.msk [vmem:[%s25 + $0x1c0] sm:$0x3] %vm20, 0.0
    %vm32 = vcmask 24576
    %33 = vst.msk [vmem:[#allocation2] sm:$0x1] %vm32, 0.0
    %34 = vst.msk [vmem:[#allocation2 + $0x18] sm:$0x1] %vm32, 0.0
    %35 = vst.msk [vmem:[#allocation2 + $0x30] sm:$0x1] %vm32, 0.0
    %36 = vst.msk [vmem:[#allocation2 + $0x48] sm:$0x1] %vm32, 0.0
    %37 = vst.msk [vmem:[#allocation2 + $0x60] sm:$0x1] %vm32, 0.0
    %38 = vst.msk [vmem:[#allocation2 + $0x78] sm:$0x1] %vm32, 0.0
    %39 = vst.msk [vmem:[#allocation2 + $0x90] sm:$0x1] %vm32, 0.0
    %40 = vst.msk [vmem:[#allocation2 + $0xa8] sm:$0x1] %vm32, 0.0
    %41 = vst.msk [vmem:[#allocation2 + $0xc0] sm:$0x1] %vm32, 0.0
    %42 = vst.msk [vmem:[#allocation2 + $0xd8] sm:$0x1] %vm32, 0.0
    %43 = vst.msk [vmem:[#allocation2 + $0xf0] sm:$0x1] %vm32, 0.0
    %44 = vst.msk [vmem:[#allocation2 + $0x108] sm:$0x1] %vm32, 0.0
    %45 = vst.msk [vmem:[#allocation2 + $0x120] sm:$0x1] %vm32, 0.0
    %46 = vst.msk [vmem:[#allocation2 + $0x138] sm:$0x1] %vm32, 0.0
    %47 = vst.msk [vmem:[#allocation2 + $0x150] sm:$0x1] %vm32, 0.0
    %48 = vst.msk [vmem:[#allocation2 + $0x168] sm:$0x1] %vm32, 0.0
    %49 = vst.msk [vmem:[#allocation2 + $0x180] sm:$0x1] %vm32, 0.0
    %50 = vst.msk [vmem:[#allocation2 + $0x198] sm:$0x1] %vm32, 0.0
    %51 = vst.msk [vmem:[#allocation2 + $0x1b0] sm:$0x1] %vm32, 0.0
    %52 = vst.msk [vmem:[#allocation2 + $0x1c8] sm:$0x1] %vm32, 0.0
    %53 = vst.msk [vmem:[#allocation2 + $0x1e0] sm:$0x1] %vm32, 0.0
    %54 = vst.msk [vmem:[#allocation2 + $0x1f8] sm:$0x1] %vm32, 0.0
    %55 = vst.msk [vmem:[#allocation2 + $0x210] sm:$0x1] %vm32, 0.0
    %56 = vst.msk [vmem:[#allocation2 + $0x228] sm:$0x1] %vm32, 0.0
    %57 = vst.msk [vmem:[#allocation2 + $0x240] sm:$0x1] %vm32, 0.0
    %58 = vst.msk [vmem:[#allocation2 + $0x258] sm:$0x1] %vm32, 0.0
    %59 = vst.msk [vmem:[#allocation2 + $0x270] sm:$0x1] %vm32, 0.0
    %60 = vst.msk [vmem:[#allocation2 + $0x288] sm:$0x1] %vm32, 0.0
    %61 = vst.msk [vmem:[#allocation2 + $0x2a0] sm:$0x1] %vm32, 0.0
    %62 = vst.msk [vmem:[#allocation2 + $0x2b8] sm:$0x1] %vm32, 0.0
    %63 = vst.msk [vmem:[#allocation2 + $0x2d0] sm:$0x1] %vm32, 0.0
    %64 = vst.msk [vmem:[#allocation2 + $0x2e8] sm:$0x1] %vm32, 0.0
    %65 = vst.msk [vmem:[#allocation2 + $0x300] sm:$0x1] %vm32, 0.0
    %66 = vst.msk [vmem:[#allocation2 + $0x318] sm:$0x1] %vm32, 0.0
    %67 = vst.msk [vmem:[#allocation2 + $0x330] sm:$0x1] %vm32, 0.0
    %68 = vst.msk [vmem:[#allocation2 + $0x348] sm:$0x1] %vm32, 0.0
    %69 = vst.msk [vmem:[#allocation2 + $0x11] sm:$0x1] %vm32, 0.0
    %70 = vst.msk [vmem:[#allocation2 + $0x29] sm:$0x1] %vm32, 0.0
    %71 = vst.msk [vmem:[#allocation2 + $0x41] sm:$0x1] %vm32, 0.0
    %72 = vst.msk [vmem:[#allocation2 + $0x59] sm:$0x1] %vm32, 0.0
    %73 = vst.msk [vmem:[#allocation2 + $0x71] sm:$0x1] %vm32, 0.0
    %74 = vst.msk [vmem:[#allocation2 + $0x89] sm:$0x1] %vm32, 0.0
    %75 = vst.msk [vmem:[#allocation2 + $0xa1] sm:$0x1] %vm32, 0.0
    %76 = vst.msk [vmem:[#allocation2 + $0xb9] sm:$0x1] %vm32, 0.0
    %77 = vst.msk [vmem:[#allocation2 + $0xd1] sm:$0x1] %vm32, 0.0
    %78 = vst.msk [vmem:[#allocation2 + $0xe9] sm:$0x1] %vm32, 0.0
    %79 = vst.msk [vmem:[#allocation2 + $0x101] sm:$0x1] %vm32, 0.0
    %80 = vst.msk [vmem:[#allocation2 + $0x119] sm:$0x1] %vm32, 0.0
    %81 = vst.msk [vmem:[#allocation2 + $0x131] sm:$0x1] %vm32, 0.0
    %82 = vst.msk [vmem:[#allocation2 + $0x149] sm:$0x1] %vm32, 0.0
    %83 = vst.msk [vmem:[#allocation2 + $0x161] sm:$0x1] %vm32, 0.0
    %84 = vst.msk [vmem:[#allocation2 + $0x179] sm:$0x1] %vm32, 0.0
    %85 = vst.msk [vmem:[#allocation2 + $0x191] sm:$0x1] %vm32, 0.0
    %86 = vst.msk [vmem:[#allocation2 + $0x1a9] sm:$0x1] %vm32, 0.0
    %87 = vst.msk [vmem:[#allocation2 + $0x1c1] sm:$0x1] %vm32, 0.0
    %88 = vst.msk [vmem:[#allocation2 + $0x1d9] sm:$0x1] %vm32, 0.0
    %89 = vst.msk [vmem:[#allocation2 + $0x1f1] sm:$0x1] %vm32, 0.0
    %90 = vst.msk [vmem:[#allocation2 + $0x209] sm:$0x1] %vm32, 0.0
    %91 = vst.msk [vmem:[#allocation2 + $0x221] sm:$0x1] %vm32, 0.0
    %92 = vst.msk [vmem:[#allocation2 + $0x239] sm:$0x1] %vm32, 0.0
    %93 = vst.msk [vmem:[#allocation2 + $0x251] sm:$0x1] %vm32, 0.0
    %94 = vst.msk [vmem:[#allocation2 + $0x269] sm:$0x1] %vm32, 0.0
    %95 = vst.msk [vmem:[#allocation2 + $0x281] sm:$0x1] %vm32, 0.0
    %96 = vst.msk [vmem:[#allocation2 + $0x299] sm:$0x1] %vm32, 0.0
    %97 = vst.msk [vmem:[#allocation2 + $0x2b1] sm:$0x1] %vm32, 0.0
    %98 = vst.msk [vmem:[#allocation2 + $0x2c9] sm:$0x1] %vm32, 0.0
    %99 = vst.msk [vmem:[#allocation2 + $0x2e1] sm:$0x1] %vm32, 0.0
    %100 = vst.msk [vmem:[#allocation2 + $0x2f9] sm:$0x1] %vm32, 0.0
    %101 = vst.msk [vmem:[#allocation2 + $0x311] sm:$0x1] %vm32, 0.0
    %102 = vst.msk [vmem:[#allocation2 + $0x329] sm:$0x1] %vm32, 0.0
    %103 = vst.msk [vmem:[#allocation2 + $0x341] sm:$0x1] %vm32, 0.0
    %104 = vst.msk [vmem:[#allocation2 + $0x359] sm:$0x1] %vm32, 0.0
    %v105 = vld [vmem:[%s0] sm:$0xff]
    %v106 = vld [vmem:[%s0 + $0x8] sm:$0xff]
    %v107 = vld [vmem:[%s0 + $0x10] sm:$0xff]
    %v108 = vld [vmem:[%s0 + $0x18] sm:$0xff]
    %v109 = vld [vmem:[%s0 + $0x20] sm:$0xff]
    %v110 = vld [vmem:[%s0 + $0x28] sm:$0xff]
    %v111 = vld [vmem:[%s0 + $0x30] sm:$0xff]
    %v112 = vld [vmem:[%s0 + $0x38] sm:$0xff]
    %v113 = vld [vmem:[%s0 + $0x40] sm:$0xff]
    %v114 = vld [vmem:[%s0 + $0x48] sm:$0xff]
    %v115 = vld [vmem:[%s0 + $0x50] sm:$0xff]
    %v116 = vld [vmem:[%s0 + $0x58] sm:$0xff]
    %v117 = vld [vmem:[%s0 + $0x60] sm:$0xff]
    %v118 = vld [vmem:[%s0 + $0x68] sm:$0xff]
    %v119 = vld [vmem:[%s0 + $0x70] sm:$0xff]
    %v120 = vld [vmem:[%s0 + $0x78] sm:$0xff]
    %v121 = vld [vmem:[%s0 + $0x80] sm:$0xff]
    %v122 = vld [vmem:[%s0 + $0x88] sm:$0xff]
    %v123 = vld [vmem:[%s0 + $0x90] sm:$0xff]
    %v124 = vld [vmem:[%s0 + $0x98] sm:$0xff]
    %v125 = vld [vmem:[%s0 + $0xa0] sm:$0xff]
    %v126 = vld [vmem:[%s0 + $0xa8] sm:$0xff]
    %v127 = vld [vmem:[%s0 + $0xb0] sm:$0xff]
    %v128 = vld [vmem:[%s0 + $0xb8] sm:$0xff]
    %v129 = vld [vmem:[%s0 + $0xc0] sm:$0xff]
    %v130 = vld [vmem:[%s0 + $0xc8] sm:$0xff]
    %v131 = vld [vmem:[%s0 + $0xd0] sm:$0xff]
    %v132 = vld [vmem:[%s0 + $0xd8] sm:$0xff]
    %v133 = vld [vmem:[%s0 + $0xe0] sm:$0xff]
    %v134 = vld [vmem:[%s0 + $0xe8] sm:$0xff]
    %v135 = vld [vmem:[%s0 + $0xf0] sm:$0xff]
    %v136 = vld [vmem:[%s0 + $0xf8] sm:$0xff]
    %v137 = vld [vmem:[%s0 + $0x100] sm:$0xff]
    %v138 = vld [vmem:[%s0 + $0x108] sm:$0xff]
    %v139 = vld [vmem:[%s0 + $0x110] sm:$0xff]
    %v140 = vld [vmem:[%s0 + $0x118] sm:$0xff]
    %v141 = vld [vmem:[%s0 + $0x120] sm:$0xff]
    %v142 = vld [vmem:[%s0 + $0x128] sm:$0xff]
    %v143 = vld [vmem:[%s0 + $0x130] sm:$0xff]
    %v144 = vld [vmem:[%s0 + $0x138] sm:$0xff]
    %v145 = vld [vmem:[%s0 + $0x140] sm:$0xff]
    %v146 = vld [vmem:[%s0 + $0x148] sm:$0xff]
    %v147 = vld [vmem:[%s0 + $0x150] sm:$0xff]
    %v148 = vld [vmem:[%s0 + $0x158] sm:$0xff]
    %v149 = vld [vmem:[%s0 + $0x160] sm:$0xff]
    %v150 = vld [vmem:[%s0 + $0x168] sm:$0xff]
    %v151 = vld [vmem:[%s0 + $0x170] sm:$0xff]
    %v152 = vld [vmem:[%s0 + $0x178] sm:$0xff]
    %v153 = vld [vmem:[%s0 + $0x180] sm:$0xff]
    %v154 = vld [vmem:[%s0 + $0x188] sm:$0xff]
    %v155 = vld [vmem:[%s0 + $0x190] sm:$0xff]
    %v156 = vld [vmem:[%s0 + $0x198] sm:$0xff]
    %v157 = vld [vmem:[%s0 + $0x1a0] sm:$0xff]
    %v158 = vld [vmem:[%s0 + $0x1a8] sm:$0xff]
    %v159 = vld [vmem:[%s0 + $0x1b0] sm:$0xff]
    %v160 = vld [vmem:[%s0 + $0x1b8] sm:$0xff]
    %v161 = vld [vmem:[%s0 + $0x1c0] sm:$0xff]
    %v162 = vld [vmem:[%s0 + $0x1c8] sm:$0xff]
    %v163 = vld [vmem:[%s0 + $0x1d0] sm:$0xff]
    %v164 = vld [vmem:[%s0 + $0x1d8] sm:$0xff]
    %v165 = vld [vmem:[%s0 + $0x1e0] sm:$0xff]
    %v166 = vld [vmem:[%s0 + $0x1e8] sm:$0xff]
    %v167 = vld [vmem:[%s0 + $0x1f0] sm:$0xff]
    %v168 = vld [vmem:[%s0 + $0x1f8] sm:$0xff]
    %s169 = scalar_lea.vmem [#allocation2], 24
    %170 = vst.msk [vmem:[%s169 + $0x1] sm:$0xff] %vm17, %v105
    %171 = vst.msk [vmem:[%s169 + $0x9] sm:$0xff] %vm17, %v106
    %172 = vst.msk [vmem:[%s169 + $0x19] sm:$0xff] %vm17, %v107
    %173 = vst.msk [vmem:[%s169 + $0x21] sm:$0xff] %vm17, %v108
    %174 = vst.msk [vmem:[%s169 + $0x31] sm:$0xff] %vm17, %v109
    %175 = vst.msk [vmem:[%s169 + $0x39] sm:$0xff] %vm17, %v110
    %176 = vst.msk [vmem:[%s169 + $0x49] sm:$0xff] %vm17, %v111
    %177 = vst.msk [vmem:[%s169 + $0x51] sm:$0xff] %vm17, %v112
    %178 = vst.msk [vmem:[%s169 + $0x61] sm:$0xff] %vm17, %v113
    %179 = vst.msk [vmem:[%s169 + $0x69] sm:$0xff] %vm17, %v114
    %180 = vst.msk [vmem:[%s169 + $0x79] sm:$0xff] %vm17, %v115
    %181 = vst.msk [vmem:[%s169 + $0x81] sm:$0xff] %vm17, %v116
    %182 = vst.msk [vmem:[%s169 + $0x91] sm:$0xff] %vm17, %v117
    %183 = vst.msk [vmem:[%s169 + $0x99] sm:$0xff] %vm17, %v118
    %184 = vst.msk [vmem:[%s169 + $0xa9] sm:$0xff] %vm17, %v119
    %185 = vst.msk [vmem:[%s169 + $0xb1] sm:$0xff] %vm17, %v120
    %186 = vst.msk [vmem:[%s169 + $0xc1] sm:$0xff] %vm17, %v121
    %187 = vst.msk [vmem:[%s169 + $0xc9] sm:$0xff] %vm17, %v122
    %188 = vst.msk [vmem:[%s169 + $0xd9] sm:$0xff] %vm17, %v123
    %189 = vst.msk [vmem:[%s169 + $0xe1] sm:$0xff] %vm17, %v124
    %190 = vst.msk [vmem:[%s169 + $0xf1] sm:$0xff] %vm17, %v125
    %191 = vst.msk [vmem:[%s169 + $0xf9] sm:$0xff] %vm17, %v126
    %192 = vst.msk [vmem:[%s169 + $0x109] sm:$0xff] %vm17, %v127
    %193 = vst.msk [vmem:[%s169 + $0x111] sm:$0xff] %vm17, %v128
    %194 = vst.msk [vmem:[%s169 + $0x121] sm:$0xff] %vm17, %v129
    %195 = vst.msk [vmem:[%s169 + $0x129] sm:$0xff] %vm17, %v130
    %196 = vst.msk [vmem:[%s169 + $0x139] sm:$0xff] %vm17, %v131
    %197 = vst.msk [vmem:[%s169 + $0x141] sm:$0xff] %vm17, %v132
    %198 = vst.msk [vmem:[%s169 + $0x151] sm:$0xff] %vm17, %v133
    %199 = vst.msk [vmem:[%s169 + $0x159] sm:$0xff] %vm17, %v134
    %200 = vst.msk [vmem:[%s169 + $0x169] sm:$0xff] %vm17, %v135
    %201 = vst.msk [vmem:[%s169 + $0x171] sm:$0xff] %vm17, %v136
    %202 = vst.msk [vmem:[%s169 + $0x1b1] sm:$0xff] %vm17, %v137
    %203 = vst.msk [vmem:[%s169 + $0x1b9] sm:$0xff] %vm17, %v138
    %204 = vst.msk [vmem:[%s169 + $0x1c9] sm:$0xff] %vm17, %v139
    %205 = vst.msk [vmem:[%s169 + $0x1d1] sm:$0xff] %vm17, %v140
    %206 = vst.msk [vmem:[%s169 + $0x1e1] sm:$0xff] %vm17, %v141
    %207 = vst.msk [vmem:[%s169 + $0x1e9] sm:$0xff] %vm17, %v142
    %208 = vst.msk [vmem:[%s169 + $0x1f9] sm:$0xff] %vm17, %v143
    %209 = vst.msk [vmem:[%s169 + $0x201] sm:$0xff] %vm17, %v144
    %210 = vst.msk [vmem:[%s169 + $0x211] sm:$0xff] %vm17, %v145
    %211 = vst.msk [vmem:[%s169 + $0x219] sm:$0xff] %vm17, %v146
    %212 = vst.msk [vmem:[%s169 + $0x229] sm:$0xff] %vm17, %v147
    %213 = vst.msk [vmem:[%s169 + $0x231] sm:$0xff] %vm17, %v148
    %214 = vst.msk [vmem:[%s169 + $0x241] sm:$0xff] %vm17, %v149
    %215 = vst.msk [vmem:[%s169 + $0x249] sm:$0xff] %vm17, %v150
    %216 = vst.msk [vmem:[%s169 + $0x259] sm:$0xff] %vm17, %v151
    %217 = vst.msk [vmem:[%s169 + $0x261] sm:$0xff] %vm17, %v152
    %218 = vst.msk [vmem:[%s169 + $0x271] sm:$0xff] %vm17, %v153
    %219 = vst.msk [vmem:[%s169 + $0x279] sm:$0xff] %vm17, %v154
    %220 = vst.msk [vmem:[%s169 + $0x289] sm:$0xff] %vm17, %v155
    %221 = vst.msk [vmem:[%s169 + $0x291] sm:$0xff] %vm17, %v156
    %222 = vst.msk [vmem:[%s169 + $0x2a1] sm:$0xff] %vm17, %v157
    %223 = vst.msk [vmem:[%s169 + $0x2a9] sm:$0xff] %vm17, %v158
    %224 = vst.msk [vmem:[%s169 + $0x2b9] sm:$0xff] %vm17, %v159
    %225 = vst.msk [vmem:[%s169 + $0x2c1] sm:$0xff] %vm17, %v160
    %226 = vst.msk [vmem:[%s169 + $0x2d1] sm:$0xff] %vm17, %v161
    %227 = vst.msk [vmem:[%s169 + $0x2d9] sm:$0xff] %vm17, %v162
    %228 = vst.msk [vmem:[%s169 + $0x2e9] sm:$0xff] %vm17, %v163
    %229 = vst.msk [vmem:[%s169 + $0x2f1] sm:$0xff] %vm17, %v164
    %230 = vst.msk [vmem:[%s169 + $0x301] sm:$0xff] %vm17, %v165
    %231 = vst.msk [vmem:[%s169 + $0x309] sm:$0xff] %vm17, %v166
    %232 = vst.msk [vmem:[%s169 + $0x319] sm:$0xff] %vm17, %v167
    %233 = vst.msk [vmem:[%s169 + $0x321] sm:$0xff] %vm17, %v168
    %v234 = vld [vmem:[#allocation2] sm:$0xff]
    %v235 = vld [vmem:[#allocation2 + $0x8] sm:$0xff]
    %v236 = vld [vmem:[#allocation2 + $0x10] sm:$0x3]
    %v237 = vld [vmem:[#allocation2 + $0x18] sm:$0xff]
    %v238 = vld [vmem:[#allocation2 + $0x20] sm:$0xff]
    %v239 = vld [vmem:[#allocation2 + $0x28] sm:$0x3]
    %v240 = vld [vmem:[#allocation2 + $0x30] sm:$0xff]
    %v241 = vld [vmem:[#allocation2 + $0x38] sm:$0xff]
    %v242 = vld [vmem:[#allocation2 + $0x40] sm:$0x3]
    %v243 = vld [vmem:[#allocation2 + $0x48] sm:$0xff]
    %v244 = vld [vmem:[#allocation2 + $0x50] sm:$0xff]
    %v245 = vld [vmem:[#allocation2 + $0x58] sm:$0x3]
    %v246 = vld [vmem:[#allocation2 + $0x60] sm:$0xff]
    %v247 = vld [vmem:[#allocation2 + $0x68] sm:$0xff]
    %v248 = vld [vmem:[#allocation2 + $0x70] sm:$0x3]
    %v249 = vld [vmem:[#allocation2 + $0x78] sm:$0xff]
    %v250 = vld [vmem:[#allocation2 + $0x80] sm:$0xff]
    %v251 = vld [vmem:[#allocation2 + $0x88] sm:$0x3]
    %v252 = vld [vmem:[#allocation2 + $0x90] sm:$0xff]
    %v253 = vld [vmem:[#allocation2 + $0x98] sm:$0xff]
    %v254 = vld [vmem:[#allocation2 + $0xa0] sm:$0x3]
    %v255 = vld [vmem:[#allocation2 + $0xa8] sm:$0xff]
    %v256 = vld [vmem:[#allocation2 + $0xb0] sm:$0xff]
    %v257 = vld [vmem:[#allocation2 + $0xb8] sm:$0x3]
    %v258 = vld [vmem:[#allocation2 + $0xc0] sm:$0xff]
    %v259 = vld [vmem:[#allocation2 + $0xc8] sm:$0xff]
    %v260 = vld [vmem:[#allocation2 + $0xd0] sm:$0x3]
    %v261 = vld [vmem:[#allocation2 + $0xd8] sm:$0xff]
    %v262 = vld [vmem:[#allocation2 + $0xe0] sm:$0xff]
    %v263 = vld [vmem:[#allocation2 + $0xe8] sm:$0x3]
    %v264 = vld [vmem:[#allocation2 + $0xf0] sm:$0xff]
    %v265 = vld [vmem:[#allocation2 + $0xf8] sm:$0xff]
    %v266 = vld [vmem:[#allocation2 + $0x100] sm:$0x3]
    %v267 = vld [vmem:[#allocation2 + $0x108] sm:$0xff]
    %v268 = vld [vmem:[#allocation2 + $0x110] sm:$0xff]
    %v269 = vld [vmem:[#allocation2 + $0x118] sm:$0x3]
    %v270 = vld [vmem:[#allocation2 + $0x120] sm:$0xff]
    %v271 = vld [vmem:[#allocation2 + $0x128] sm:$0xff]
    %v272 = vld [vmem:[#allocation2 + $0x130] sm:$0x3]
    %v273 = vld [vmem:[#allocation2 + $0x138] sm:$0xff]
    %v274 = vld [vmem:[#allocation2 + $0x140] sm:$0xff]
    %v275 = vld [vmem:[#allocation2 + $0x148] sm:$0x3]
    %v276 = vld [vmem:[#allocation2 + $0x150] sm:$0xff]
    %v277 = vld [vmem:[#allocation2 + $0x158] sm:$0xff]
    %v278 = vld [vmem:[#allocation2 + $0x160] sm:$0x3]
    %v279 = vld [vmem:[#allocation2 + $0x168] sm:$0xff]
    %v280 = vld [vmem:[#allocation2 + $0x170] sm:$0xff]
    %v281 = vld [vmem:[#allocation2 + $0x178] sm:$0x3]
    %v282 = vld [vmem:[#allocation2 + $0x180] sm:$0xff]
    %v283 = vld [vmem:[#allocation2 + $0x188] sm:$0xff]
    %v284 = vld [vmem:[#allocation2 + $0x190] sm:$0x3]
    %v285 = vld [vmem:[#allocation2 + $0x198] sm:$0xff]
    %v286 = vld [vmem:[#allocation2 + $0x1a0] sm:$0xff]
    %v287 = vld [vmem:[#allocation2 + $0x1a8] sm:$0x3]
    %v288 = vld [vmem:[#allocation2 + $0x1b0] sm:$0xff]
    %v289 = vld [vmem:[#allocation2 + $0x1b8] sm:$0xff]
    %v290 = vld [vmem:[#allocation2 + $0x1c0] sm:$0x3]
    %v291 = vld [vmem:[#allocation2 + $0x1c8] sm:$0xff]
    %v292 = vld [vmem:[#allocation2 + $0x1d0] sm:$0xff]
    %v293 = vld [vmem:[#allocation2 + $0x1d8] sm:$0x3]
    %v294 = vld [vmem:[#allocation2 + $0x1e0] sm:$0xff]
    %v295 = vld [vmem:[#allocation2 + $0x1e8] sm:$0xff]
    %v296 = vld [vmem:[#allocation2 + $0x1f0] sm:$0x3]
    %v297 = vld [vmem:[#allocation2 + $0x1f8] sm:$0xff]
    %v298 = vld [vmem:[#allocation2 + $0x200] sm:$0xff]
    %v299 = vld [vmem:[#allocation2 + $0x208] sm:$0x3]
    %v300 = vld [vmem:[#allocation2 + $0x210] sm:$0xff]
    %v301 = vld [vmem:[#allocation2 + $0x218] sm:$0xff]
    %v302 = vld [vmem:[#allocation2 + $0x220] sm:$0x3]
    %v303 = vld [vmem:[#allocation2 + $0x228] sm:$0xff]
    %v304 = vld [vmem:[#allocation2 + $0x230] sm:$0xff]
    %v305 = vld [vmem:[#allocation2 + $0x238] sm:$0x3]
    %v306 = vld [vmem:[#allocation2 + $0x240] sm:$0xff]
    %v307 = vld [vmem:[#allocation2 + $0x248] sm:$0xff]
    %v308 = vld [vmem:[#allocation2 + $0x250] sm:$0x3]
    %v309 = vld [vmem:[#allocation2 + $0x258] sm:$0xff]
    %v310 = vld [vmem:[#allocation2 + $0x260] sm:$0xff]
    %v311 = vld [vmem:[#allocation2 + $0x268] sm:$0x3]
    %v312 = vld [vmem:[#allocation2 + $0x270] sm:$0xff]
    %v313 = vld [vmem:[#allocation2 + $0x278] sm:$0xff]
    %v314 = vld [vmem:[#allocation2 + $0x280] sm:$0x3]
    %v315 = vld [vmem:[#allocation2 + $0x288] sm:$0xff]
    %v316 = vld [vmem:[#allocation2 + $0x290] sm:$0xff]
    %v317 = vld [vmem:[#allocation2 + $0x298] sm:$0x3]
    %v318 = vld [vmem:[#allocation2 + $0x2a0] sm:$0xff]
    %v319 = vld [vmem:[#allocation2 + $0x2a8] sm:$0xff]
    %v320 = vld [vmem:[#allocation2 + $0x2b0] sm:$0x3]
    %v321 = vld [vmem:[#allocation2 + $0x2b8] sm:$0xff]
    %v322 = vld [vmem:[#allocation2 + $0x2c0] sm:$0xff]
    %v323 = vld [vmem:[#allocation2 + $0x2c8] sm:$0x3]
    %v324 = vld [vmem:[#allocation2 + $0x2d0] sm:$0xff]
    %v325 = vld [vmem:[#allocation2 + $0x2d8] sm:$0xff]
    %v326 = vld [vmem:[#allocation2 + $0x2e0] sm:$0x3]
    %v327 = vld [vmem:[#allocation2 + $0x2e8] sm:$0xff]
    %v328 = vld [vmem:[#allocation2 + $0x2f0] sm:$0xff]
    %v329 = vld [vmem:[#allocation2 + $0x2f8] sm:$0x3]
    %v330 = vld [vmem:[#allocation2 + $0x300] sm:$0xff]
    %v331 = vld [vmem:[#allocation2 + $0x308] sm:$0xff]
    %v332 = vld [vmem:[#allocation2 + $0x310] sm:$0x3]
    %v333 = vld [vmem:[#allocation2 + $0x318] sm:$0xff]
    %v334 = vld [vmem:[#allocation2 + $0x320] sm:$0xff]
    %v335 = vld [vmem:[#allocation2 + $0x328] sm:$0x3]
    %v336 = vld [vmem:[#allocation2 + $0x330] sm:$0xff]
    %v337 = vld [vmem:[#allocation2 + $0x338] sm:$0xff]
    %v338 = vld [vmem:[#allocation2 + $0x340] sm:$0x3]
    %v339 = vld [vmem:[#allocation2 + $0x348] sm:$0xff]
    %v340 = vld [vmem:[#allocation2 + $0x350] sm:$0xff]
    %v341 = vld [vmem:[#allocation2 + $0x358] sm:$0x3]
    %vm438 = vcmask 1046528
    %v439 = vrot.slane %v234, 1
    %v440 = vrot.slane %v235, 1
    %v441 = vsel %vm438, %v439, %v440
    %v442 = vrot.slane %v236, 1
    %v443 = vsel %vm438, %v440, %v442
    %v444 = vrot.slane %v237, 1
    %v445 = vrot.slane %v238, 1
    %v446 = vsel %vm438, %v444, %v445
    %v447 = vrot.slane %v239, 1
    %v448 = vsel %vm438, %v445, %v447
    %v449 = vrot.slane %v240, 1
    %v450 = vrot.slane %v241, 1
    %v451 = vsel %vm438, %v449, %v450
    %v452 = vrot.slane %v242, 1
    %v453 = vsel %vm438, %v450, %v452
    %v454 = vrot.slane %v243, 1
    %v455 = vrot.slane %v244, 1
    %v456 = vsel %vm438, %v454, %v455
    %v457 = vrot.slane %v245, 1
    %v458 = vsel %vm438, %v455, %v457
    %v459 = vrot.slane %v246, 1
    %v460 = vrot.slane %v247, 1
    %v461 = vsel %vm438, %v459, %v460
    %v462 = vrot.slane %v248, 1
    %v463 = vsel %vm438, %v460, %v462
    %v464 = vrot.slane %v249, 1
    %v465 = vrot.slane %v250, 1
    %v466 = vsel %vm438, %v464, %v465
    %v467 = vrot.slane %v251, 1
    %v468 = vsel %vm438, %v465, %v467
    %v469 = vrot.slane %v252, 1
    %v470 = vrot.slane %v253, 1
    %v471 = vsel %vm438, %v469, %v470
    %v472 = vrot.slane %v254, 1
    %v473 = vsel %vm438, %v470, %v472
    %v474 = vrot.slane %v255, 1
    %v475 = vrot.slane %v256, 1
    %v476 = vsel %vm438, %v474, %v475
    %v477 = vrot.slane %v257, 1
    %v478 = vsel %vm438, %v475, %v477
    %v479 = vrot.slane %v258, 1
    %v480 = vrot.slane %v259, 1
    %v481 = vsel %vm438, %v479, %v480
    %v482 = vrot.slane %v260, 1
    %v483 = vsel %vm438, %v480, %v482
    %v484 = vrot.slane %v261, 1
    %v485 = vrot.slane %v262, 1
    %v486 = vsel %vm438, %v484, %v485
    %v487 = vrot.slane %v263, 1
    %v488 = vsel %vm438, %v485, %v487
    %v489 = vrot.slane %v264, 1
    %v490 = vrot.slane %v265, 1
    %v491 = vsel %vm438, %v489, %v490
    %v492 = vrot.slane %v266, 1
    %v493 = vsel %vm438, %v490, %v492
    %v494 = vrot.slane %v267, 1
    %v495 = vrot.slane %v268, 1
    %v496 = vsel %vm438, %v494, %v495
    %v497 = vrot.slane %v269, 1
    %v498 = vsel %vm438, %v495, %v497
    %v499 = vrot.slane %v270, 1
    %v500 = vrot.slane %v271, 1
    %v501 = vsel %vm438, %v499, %v500
    %v502 = vrot.slane %v272, 1
    %v503 = vsel %vm438, %v500, %v502
    %v504 = vrot.slane %v273, 1
    %v505 = vrot.slane %v274, 1
    %v506 = vsel %vm438, %v504, %v505
    %v507 = vrot.slane %v275, 1
    %v508 = vsel %vm438, %v505, %v507
    %v509 = vrot.slane %v276, 1
    %v510 = vrot.slane %v277, 1
    %v511 = vsel %vm438, %v509, %v510
    %v512 = vrot.slane %v278, 1
    %v513 = vsel %vm438, %v510, %v512
    %v514 = vrot.slane %v279, 1
    %v515 = vrot.slane %v280, 1
    %v516 = vsel %vm438, %v514, %v515
    %v517 = vrot.slane %v281, 1
    %v518 = vsel %vm438, %v515, %v517
    %v519 = vrot.slane %v288, 1
    %v520 = vrot.slane %v289, 1
    %v521 = vsel %vm438, %v519, %v520
    %v522 = vrot.slane %v290, 1
    %v523 = vsel %vm438, %v520, %v522
    %v524 = vrot.slane %v291, 1
    %v525 = vrot.slane %v292, 1
    %v526 = vsel %vm438, %v524, %v525
    %v527 = vrot.slane %v293, 1
    %v528 = vsel %vm438, %v525, %v527
    %v529 = vrot.slane %v294, 1
    %v530 = vrot.slane %v295, 1
    %v531 = vsel %vm438, %v529, %v530
    %v532 = vrot.slane %v296, 1
    %v533 = vsel %vm438, %v530, %v532
    %v534 = vrot.slane %v297, 1
    %v535 = vrot.slane %v298, 1
    %v536 = vsel %vm438, %v534, %v535
    %v537 = vrot.slane %v299, 1
    %v538 = vsel %vm438, %v535, %v537
    %v539 = vrot.slane %v300, 1
    %v540 = vrot.slane %v301, 1
    %v541 = vsel %vm438, %v539, %v540
    %v542 = vrot.slane %v302, 1
    %v543 = vsel %vm438, %v540, %v542
    %v544 = vrot.slane %v303, 1
    %v545 = vrot.slane %v304, 1
    %v546 = vsel %vm438, %v544, %v545
    %v547 = vrot.slane %v305, 1
    %v548 = vsel %vm438, %v545, %v547
    %v549 = vrot.slane %v306, 1
    %v550 = vrot.slane %v307, 1
    %v551 = vsel %vm438, %v549, %v550
    %v552 = vrot.slane %v308, 1
    %v553 = vsel %vm438, %v550, %v552
    %v554 = vrot.slane %v309, 1
    %v555 = vrot.slane %v310, 1
    %v556 = vsel %vm438, %v554, %v555
    %v557 = vrot.slane %v311, 1
    %v558 = vsel %vm438, %v555, %v557
    %v559 = vrot.slane %v312, 1
    %v560 = vrot.slane %v313, 1
    %v561 = vsel %vm438, %v559, %v560
    %v562 = vrot.slane %v314, 1
    %v563 = vsel %vm438, %v560, %v562
    %v564 = vrot.slane %v315, 1
    %v565 = vrot.slane %v316, 1
    %v566 = vsel %vm438, %v564, %v565
    %v567 = vrot.slane %v317, 1
    %v568 = vsel %vm438, %v565, %v567
    %v569 = vrot.slane %v318, 1
    %v570 = vrot.slane %v319, 1
    %v571 = vsel %vm438, %v569, %v570
    %v572 = vrot.slane %v320, 1
    %v573 = vsel %vm438, %v570, %v572
    %v574 = vrot.slane %v321, 1
    %v575 = vrot.slane %v322, 1
    %v576 = vsel %vm438, %v574, %v575
    %v577 = vrot.slane %v323, 1
    %v578 = vsel %vm438, %v575, %v577
    %v579 = vrot.slane %v324, 1
    %v580 = vrot.slane %v325, 1
    %v581 = vsel %vm438, %v579, %v580
    %v582 = vrot.slane %v326, 1
    %v583 = vsel %vm438, %v580, %v582
    %v584 = vrot.slane %v327, 1
    %v585 = vrot.slane %v328, 1
    %v586 = vsel %vm438, %v584, %v585
    %v587 = vrot.slane %v329, 1
    %v588 = vsel %vm438, %v585, %v587
    %v589 = vrot.slane %v330, 1
    %v590 = vrot.slane %v331, 1
    %v591 = vsel %vm438, %v589, %v590
    %v592 = vrot.slane %v332, 1
    %v593 = vsel %vm438, %v590, %v592
    %v594 = vrot.slane %v333, 1
    %v595 = vrot.slane %v334, 1
    %v596 = vsel %vm438, %v594, %v595
    %v597 = vrot.slane %v335, 1
    %v598 = vsel %vm438, %v595, %v597
    %599 = vrot.lane.b32.xlu0 %v441, 4
    %v600 = vpop.permute.xlu0 %599
    %601 = vrot.lane.b32.xlu0 %v443, 4
    %v602 = vpop.permute.xlu0 %601
    %603 = vrot.lane.b32.xlu0 %v446, 4
    %v604 = vpop.permute.xlu0 %603
    %605 = vrot.lane.b32.xlu0 %v448, 4
    %v606 = vpop.permute.xlu0 %605
    %607 = vrot.lane.b32.xlu0 %v451, 4
    %v608 = vpop.permute.xlu0 %607
    %609 = vrot.lane.b32.xlu0 %v453, 4
    %v610 = vpop.permute.xlu0 %609
    %611 = vrot.lane.b32.xlu0 %v456, 4
    %v612 = vpop.permute.xlu0 %611
    %613 = vrot.lane.b32.xlu0 %v458, 4
    %v614 = vpop.permute.xlu0 %613
    %615 = vrot.lane.b32.xlu0 %v461, 4
    %v616 = vpop.permute.xlu0 %615
    %617 = vrot.lane.b32.xlu0 %v463, 4
    %v618 = vpop.permute.xlu0 %617
    %619 = vrot.lane.b32.xlu0 %v466, 4
    %v620 = vpop.permute.xlu0 %619
    %621 = vrot.lane.b32.xlu0 %v468, 4
    %v622 = vpop.permute.xlu0 %621
    %623 = vrot.lane.b32.xlu0 %v471, 4
    %v624 = vpop.permute.xlu0 %623
    %625 = vrot.lane.b32.xlu0 %v473, 4
    %v626 = vpop.permute.xlu0 %625
    %627 = vrot.lane.b32.xlu0 %v476, 4
    %v628 = vpop.permute.xlu0 %627
    %629 = vrot.lane.b32.xlu0 %v478, 4
    %v630 = vpop.permute.xlu0 %629
    %631 = vrot.lane.b32.xlu0 %v481, 4
    %v632 = vpop.permute.xlu0 %631
    %633 = vrot.lane.b32.xlu0 %v483, 4
    %v634 = vpop.permute.xlu0 %633
    %635 = vrot.lane.b32.xlu0 %v486, 4
    %v636 = vpop.permute.xlu0 %635
    %637 = vrot.lane.b32.xlu0 %v488, 4
    %v638 = vpop.permute.xlu0 %637
    %639 = vrot.lane.b32.xlu0 %v491, 4
    %v640 = vpop.permute.xlu0 %639
    %641 = vrot.lane.b32.xlu0 %v493, 4
    %v642 = vpop.permute.xlu0 %641
    %643 = vrot.lane.b32.xlu0 %v496, 4
    %v644 = vpop.permute.xlu0 %643
    %645 = vrot.lane.b32.xlu0 %v498, 4
    %v646 = vpop.permute.xlu0 %645
    %647 = vrot.lane.b32.xlu0 %v501, 4
    %v648 = vpop.permute.xlu0 %647
    %649 = vrot.lane.b32.xlu0 %v503, 4
    %v650 = vpop.permute.xlu0 %649
    %651 = vrot.lane.b32.xlu0 %v506, 4
    %v652 = vpop.permute.xlu0 %651
    %653 = vrot.lane.b32.xlu0 %v508, 4
    %v654 = vpop.permute.xlu0 %653
    %655 = vrot.lane.b32.xlu0 %v511, 4
    %v656 = vpop.permute.xlu0 %655
    %657 = vrot.lane.b32.xlu0 %v513, 4
    %v658 = vpop.permute.xlu0 %657
    %659 = vrot.lane.b32.xlu0 %v516, 4
    %v660 = vpop.permute.xlu0 %659
    %661 = vrot.lane.b32.xlu0 %v518, 4
    %v662 = vpop.permute.xlu0 %661
    %663 = vrot.lane.b32.xlu0 %v521, 4
    %v664 = vpop.permute.xlu0 %663
    %665 = vrot.lane.b32.xlu0 %v523, 4
    %v666 = vpop.permute.xlu0 %665
    %667 = vrot.lane.b32.xlu0 %v526, 4
    %v668 = vpop.permute.xlu0 %667
    %669 = vrot.lane.b32.xlu0 %v528, 4
    %v670 = vpop.permute.xlu0 %669
    %671 = vrot.lane.b32.xlu0 %v531, 4
    %v672 = vpop.permute.xlu0 %671
    %673 = vrot.lane.b32.xlu0 %v533, 4
    %v674 = vpop.permute.xlu0 %673
    %675 = vrot.lane.b32.xlu0 %v536, 4
    %v676 = vpop.permute.xlu0 %675
    %677 = vrot.lane.b32.xlu0 %v538, 4
    %v678 = vpop.permute.xlu0 %677
    %679 = vrot.lane.b32.xlu0 %v541, 4
    %v680 = vpop.permute.xlu0 %679
    %681 = vrot.lane.b32.xlu0 %v543, 4
    %v682 = vpop.permute.xlu0 %681
    %683 = vrot.lane.b32.xlu0 %v546, 4
    %v684 = vpop.permute.xlu0 %683
    %685 = vrot.lane.b32.xlu0 %v548, 4
    %v686 = vpop.permute.xlu0 %685
    %687 = vrot.lane.b32.xlu0 %v551, 4
    %v688 = vpop.permute.xlu0 %687
    %689 = vrot.lane.b32.xlu0 %v553, 4
    %v690 = vpop.permute.xlu0 %689
    %691 = vrot.lane.b32.xlu0 %v556, 4
    %v692 = vpop.permute.xlu0 %691
    %693 = vrot.lane.b32.xlu0 %v558, 4
    %v694 = vpop.permute.xlu0 %693
    %695 = vrot.lane.b32.xlu0 %v561, 4
    %v696 = vpop.permute.xlu0 %695
    %697 = vrot.lane.b32.xlu0 %v563, 4
    %v698 = vpop.permute.xlu0 %697
    %699 = vrot.lane.b32.xlu0 %v566, 4
    %v700 = vpop.permute.xlu0 %699
    %701 = vrot.lane.b32.xlu0 %v568, 4
    %v702 = vpop.permute.xlu0 %701
    %703 = vrot.lane.b32.xlu0 %v571, 4
    %v704 = vpop.permute.xlu0 %703
    %705 = vrot.lane.b32.xlu0 %v573, 4
    %v706 = vpop.permute.xlu0 %705
    %707 = vrot.lane.b32.xlu0 %v576, 4
    %v708 = vpop.permute.xlu0 %707
    %709 = vrot.lane.b32.xlu0 %v578, 4
    %v710 = vpop.permute.xlu0 %709
    %711 = vrot.lane.b32.xlu0 %v581, 4
    %v712 = vpop.permute.xlu0 %711
    %713 = vrot.lane.b32.xlu0 %v583, 4
    %v714 = vpop.permute.xlu0 %713
    %715 = vrot.lane.b32.xlu0 %v586, 4
    %v716 = vpop.permute.xlu0 %715
    %717 = vrot.lane.b32.xlu0 %v588, 4
    %v718 = vpop.permute.xlu0 %717
    %719 = vrot.lane.b32.xlu0 %v591, 4
    %v720 = vpop.permute.xlu0 %719
    %721 = vrot.lane.b32.xlu0 %v593, 4
    %v722 = vpop.permute.xlu0 %721
    %723 = vrot.lane.b32.xlu0 %v596, 4
    %v724 = vpop.permute.xlu0 %723
    %725 = vrot.lane.b32.xlu0 %v598, 4
    %v726 = vpop.permute.xlu0 %725
    %vm791 = vcmask 1045504
    %v792 = vrot.slane %v234, 2
    %v793 = vrot.slane %v235, 2
    %v794 = vsel %vm791, %v792, %v793
    %v795 = vrot.slane %v236, 2
    %v796 = vsel %vm791, %v793, %v795
    %v797 = vrot.slane %v237, 2
    %v798 = vrot.slane %v238, 2
    %v799 = vsel %vm791, %v797, %v798
    %v800 = vrot.slane %v239, 2
    %v801 = vsel %vm791, %v798, %v800
    %v802 = vrot.slane %v240, 2
    %v803 = vrot.slane %v241, 2
    %v804 = vsel %vm791, %v802, %v803
    %v805 = vrot.slane %v242, 2
    %v806 = vsel %vm791, %v803, %v805
    %v807 = vrot.slane %v243, 2
    %v808 = vrot.slane %v244, 2
    %v809 = vsel %vm791, %v807, %v808
    %v810 = vrot.slane %v245, 2
    %v811 = vsel %vm791, %v808, %v810
    %v812 = vrot.slane %v246, 2
    %v813 = vrot.slane %v247, 2
    %v814 = vsel %vm791, %v812, %v813
    %v815 = vrot.slane %v248, 2
    %v816 = vsel %vm791, %v813, %v815
    %v817 = vrot.slane %v249, 2
    %v818 = vrot.slane %v250, 2
    %v819 = vsel %vm791, %v817, %v818
    %v820 = vrot.slane %v251, 2
    %v821 = vsel %vm791, %v818, %v820
    %v822 = vrot.slane %v252, 2
    %v823 = vrot.slane %v253, 2
    %v824 = vsel %vm791, %v822, %v823
    %v825 = vrot.slane %v254, 2
    %v826 = vsel %vm791, %v823, %v825
    %v827 = vrot.slane %v255, 2
    %v828 = vrot.slane %v256, 2
    %v829 = vsel %vm791, %v827, %v828
    %v830 = vrot.slane %v257, 2
    %v831 = vsel %vm791, %v828, %v830
    %v832 = vrot.slane %v258, 2
    %v833 = vrot.slane %v259, 2
    %v834 = vsel %vm791, %v832, %v833
    %v835 = vrot.slane %v260, 2
    %v836 = vsel %vm791, %v833, %v835
    %v837 = vrot.slane %v261, 2
    %v838 = vrot.slane %v262, 2
    %v839 = vsel %vm791, %v837, %v838
    %v840 = vrot.slane %v263, 2
    %v841 = vsel %vm791, %v838, %v840
    %v842 = vrot.slane %v264, 2
    %v843 = vrot.slane %v265, 2
    %v844 = vsel %vm791, %v842, %v843
    %v845 = vrot.slane %v266, 2
    %v846 = vsel %vm791, %v843, %v845
    %v847 = vrot.slane %v267, 2
    %v848 = vrot.slane %v268, 2
    %v849 = vsel %vm791, %v847, %v848
    %v850 = vrot.slane %v269, 2
    %v851 = vsel %vm791, %v848, %v850
    %v852 = vrot.slane %v270, 2
    %v853 = vrot.slane %v271, 2
    %v854 = vsel %vm791, %v852, %v853
    %v855 = vrot.slane %v272, 2
    %v856 = vsel %vm791, %v853, %v855
    %v857 = vrot.slane %v273, 2
    %v858 = vrot.slane %v274, 2
    %v859 = vsel %vm791, %v857, %v858
    %v860 = vrot.slane %v275, 2
    %v861 = vsel %vm791, %v858, %v860
    %v862 = vrot.slane %v276, 2
    %v863 = vrot.slane %v277, 2
    %v864 = vsel %vm791, %v862, %v863
    %v865 = vrot.slane %v278, 2
    %v866 = vsel %vm791, %v863, %v865
    %v867 = vrot.slane %v279, 2
    %v868 = vrot.slane %v280, 2
    %v869 = vsel %vm791, %v867, %v868
    %v870 = vrot.slane %v281, 2
    %v871 = vsel %vm791, %v868, %v870
    %v872 = vrot.slane %v288, 2
    %v873 = vrot.slane %v289, 2
    %v874 = vsel %vm791, %v872, %v873
    %v875 = vrot.slane %v290, 2
    %v876 = vsel %vm791, %v873, %v875
    %v877 = vrot.slane %v291, 2
    %v878 = vrot.slane %v292, 2
    %v879 = vsel %vm791, %v877, %v878
    %v880 = vrot.slane %v293, 2
    %v881 = vsel %vm791, %v878, %v880
    %v882 = vrot.slane %v294, 2
    %v883 = vrot.slane %v295, 2
    %v884 = vsel %vm791, %v882, %v883
    %v885 = vrot.slane %v296, 2
    %v886 = vsel %vm791, %v883, %v885
    %v887 = vrot.slane %v297, 2
    %v888 = vrot.slane %v298, 2
    %v889 = vsel %vm791, %v887, %v888
    %v890 = vrot.slane %v299, 2
    %v891 = vsel %vm791, %v888, %v890
    %v892 = vrot.slane %v300, 2
    %v893 = vrot.slane %v301, 2
    %v894 = vsel %vm791, %v892, %v893
    %v895 = vrot.slane %v302, 2
    %v896 = vsel %vm791, %v893, %v895
    %v897 = vrot.slane %v303, 2
    %v898 = vrot.slane %v304, 2
    %v899 = vsel %vm791, %v897, %v898
    %v900 = vrot.slane %v305, 2
    %v901 = vsel %vm791, %v898, %v900
    %v902 = vrot.slane %v306, 2
    %v903 = vrot.slane %v307, 2
    %v904 = vsel %vm791, %v902, %v903
    %v905 = vrot.slane %v308, 2
    %v906 = vsel %vm791, %v903, %v905
    %v907 = vrot.slane %v309, 2
    %v908 = vrot.slane %v310, 2
    %v909 = vsel %vm791, %v907, %v908
    %v910 = vrot.slane %v311, 2
    %v911 = vsel %vm791, %v908, %v910
    %v912 = vrot.slane %v312, 2
    %v913 = vrot.slane %v313, 2
    %v914 = vsel %vm791, %v912, %v913
    %v915 = vrot.slane %v314, 2
    %v916 = vsel %vm791, %v913, %v915
    %v917 = vrot.slane %v315, 2
    %v918 = vrot.slane %v316, 2
    %v919 = vsel %vm791, %v917, %v918
    %v920 = vrot.slane %v317, 2
    %v921 = vsel %vm791, %v918, %v920
    %v922 = vrot.slane %v318, 2
    %v923 = vrot.slane %v319, 2
    %v924 = vsel %vm791, %v922, %v923
    %v925 = vrot.slane %v320, 2
    %v926 = vsel %vm791, %v923, %v925
    %v927 = vrot.slane %v321, 2
    %v928 = vrot.slane %v322, 2
    %v929 = vsel %vm791, %v927, %v928
    %v930 = vrot.slane %v323, 2
    %v931 = vsel %vm791, %v928, %v930
    %v932 = vrot.slane %v324, 2
    %v933 = vrot.slane %v325, 2
    %v934 = vsel %vm791, %v932, %v933
    %v935 = vrot.slane %v326, 2
    %v936 = vsel %vm791, %v933, %v935
    %v937 = vrot.slane %v327, 2
    %v938 = vrot.slane %v328, 2
    %v939 = vsel %vm791, %v937, %v938
    %v940 = vrot.slane %v329, 2
    %v941 = vsel %vm791, %v938, %v940
    %v942 = vrot.slane %v330, 2
    %v943 = vrot.slane %v331, 2
    %v944 = vsel %vm791, %v942, %v943
    %v945 = vrot.slane %v332, 2
    %v946 = vsel %vm791, %v943, %v945
    %v947 = vrot.slane %v333, 2
    %v948 = vrot.slane %v334, 2
    %v949 = vsel %vm791, %v947, %v948
    %v950 = vrot.slane %v335, 2
    %v951 = vsel %vm791, %v948, %v950
    %952 = vrot.lane.b32.xlu0 %v794, 8
    %v953 = vpop.permute.xlu0 %952
    %954 = vrot.lane.b32.xlu0 %v796, 8
    %v955 = vpop.permute.xlu0 %954
    %956 = vrot.lane.b32.xlu0 %v799, 8
    %v957 = vpop.permute.xlu0 %956
    %958 = vrot.lane.b32.xlu0 %v801, 8
    %v959 = vpop.permute.xlu0 %958
    %960 = vrot.lane.b32.xlu0 %v804, 8
    %v961 = vpop.permute.xlu0 %960
    %962 = vrot.lane.b32.xlu0 %v806, 8
    %v963 = vpop.permute.xlu0 %962
    %964 = vrot.lane.b32.xlu0 %v809, 8
    %v965 = vpop.permute.xlu0 %964
    %966 = vrot.lane.b32.xlu0 %v811, 8
    %v967 = vpop.permute.xlu0 %966
    %968 = vrot.lane.b32.xlu0 %v814, 8
    %v969 = vpop.permute.xlu0 %968
    %970 = vrot.lane.b32.xlu0 %v816, 8
    %v971 = vpop.permute.xlu0 %970
    %972 = vrot.lane.b32.xlu0 %v819, 8
    %v973 = vpop.permute.xlu0 %972
    %974 = vrot.lane.b32.xlu0 %v821, 8
    %v975 = vpop.permute.xlu0 %974
    %976 = vrot.lane.b32.xlu0 %v824, 8
    %v977 = vpop.permute.xlu0 %976
    %978 = vrot.lane.b32.xlu0 %v826, 8
    %v979 = vpop.permute.xlu0 %978
    %980 = vrot.lane.b32.xlu0 %v829, 8
    %v981 = vpop.permute.xlu0 %980
    %982 = vrot.lane.b32.xlu0 %v831, 8
    %v983 = vpop.permute.xlu0 %982
    %984 = vrot.lane.b32.xlu0 %v834, 8
    %v985 = vpop.permute.xlu0 %984
    %986 = vrot.lane.b32.xlu0 %v836, 8
    %v987 = vpop.permute.xlu0 %986
    %988 = vrot.lane.b32.xlu0 %v839, 8
    %v989 = vpop.permute.xlu0 %988
    %990 = vrot.lane.b32.xlu0 %v841, 8
    %v991 = vpop.permute.xlu0 %990
    %992 = vrot.lane.b32.xlu0 %v844, 8
    %v993 = vpop.permute.xlu0 %992
    %994 = vrot.lane.b32.xlu0 %v846, 8
    %v995 = vpop.permute.xlu0 %994
    %996 = vrot.lane.b32.xlu0 %v849, 8
    %v997 = vpop.permute.xlu0 %996
    %998 = vrot.lane.b32.xlu0 %v851, 8
    %v999 = vpop.permute.xlu0 %998
    %1000 = vrot.lane.b32.xlu0 %v854, 8
    %v1001 = vpop.permute.xlu0 %1000
    %1002 = vrot.lane.b32.xlu0 %v856, 8
    %v1003 = vpop.permute.xlu0 %1002
    %1004 = vrot.lane.b32.xlu0 %v859, 8
    %v1005 = vpop.permute.xlu0 %1004
    %1006 = vrot.lane.b32.xlu0 %v861, 8
    %v1007 = vpop.permute.xlu0 %1006
    %1008 = vrot.lane.b32.xlu0 %v864, 8
    %v1009 = vpop.permute.xlu0 %1008
    %1010 = vrot.lane.b32.xlu0 %v866, 8
    %v1011 = vpop.permute.xlu0 %1010
    %1012 = vrot.lane.b32.xlu0 %v869, 8
    %v1013 = vpop.permute.xlu0 %1012
    %1014 = vrot.lane.b32.xlu0 %v871, 8
    %v1015 = vpop.permute.xlu0 %1014
    %1016 = vrot.lane.b32.xlu0 %v874, 8
    %v1017 = vpop.permute.xlu0 %1016
    %1018 = vrot.lane.b32.xlu0 %v876, 8
    %v1019 = vpop.permute.xlu0 %1018
    %1020 = vrot.lane.b32.xlu0 %v879, 8
    %v1021 = vpop.permute.xlu0 %1020
    %1022 = vrot.lane.b32.xlu0 %v881, 8
    %v1023 = vpop.permute.xlu0 %1022
    %1024 = vrot.lane.b32.xlu0 %v884, 8
    %v1025 = vpop.permute.xlu0 %1024
    %1026 = vrot.lane.b32.xlu0 %v886, 8
    %v1027 = vpop.permute.xlu0 %1026
    %1028 = vrot.lane.b32.xlu0 %v889, 8
    %v1029 = vpop.permute.xlu0 %1028
    %1030 = vrot.lane.b32.xlu0 %v891, 8
    %v1031 = vpop.permute.xlu0 %1030
    %1032 = vrot.lane.b32.xlu0 %v894, 8
    %v1033 = vpop.permute.xlu0 %1032
    %1034 = vrot.lane.b32.xlu0 %v896, 8
    %v1035 = vpop.permute.xlu0 %1034
    %1036 = vrot.lane.b32.xlu0 %v899, 8
    %v1037 = vpop.permute.xlu0 %1036
    %1038 = vrot.lane.b32.xlu0 %v901, 8
    %v1039 = vpop.permute.xlu0 %1038
    %1040 = vrot.lane.b32.xlu0 %v904, 8
    %v1041 = vpop.permute.xlu0 %1040
    %1042 = vrot.lane.b32.xlu0 %v906, 8
    %v1043 = vpop.permute.xlu0 %1042
    %1044 = vrot.lane.b32.xlu0 %v909, 8
    %v1045 = vpop.permute.xlu0 %1044
    %1046 = vrot.lane.b32.xlu0 %v911, 8
    %v1047 = vpop.permute.xlu0 %1046
    %1048 = vrot.lane.b32.xlu0 %v914, 8
    %v1049 = vpop.permute.xlu0 %1048
    %1050 = vrot.lane.b32.xlu0 %v916, 8
    %v1051 = vpop.permute.xlu0 %1050
    %1052 = vrot.lane.b32.xlu0 %v919, 8
    %v1053 = vpop.permute.xlu0 %1052
    %1054 = vrot.lane.b32.xlu0 %v921, 8
    %v1055 = vpop.permute.xlu0 %1054
    %1056 = vrot.lane.b32.xlu0 %v924, 8
    %v1057 = vpop.permute.xlu0 %1056
    %1058 = vrot.lane.b32.xlu0 %v926, 8
    %v1059 = vpop.permute.xlu0 %1058
    %1060 = vrot.lane.b32.xlu0 %v929, 8
    %v1061 = vpop.permute.xlu0 %1060
    %1062 = vrot.lane.b32.xlu0 %v931, 8
    %v1063 = vpop.permute.xlu0 %1062
    %1064 = vrot.lane.b32.xlu0 %v934, 8
    %v1065 = vpop.permute.xlu0 %1064
    %1066 = vrot.lane.b32.xlu0 %v936, 8
    %v1067 = vpop.permute.xlu0 %1066
    %1068 = vrot.lane.b32.xlu0 %v939, 8
    %v1069 = vpop.permute.xlu0 %1068
    %1070 = vrot.lane.b32.xlu0 %v941, 8
    %v1071 = vpop.permute.xlu0 %1070
    %1072 = vrot.lane.b32.xlu0 %v944, 8
    %v1073 = vpop.permute.xlu0 %1072
    %1074 = vrot.lane.b32.xlu0 %v946, 8
    %v1075 = vpop.permute.xlu0 %1074
    %1076 = vrot.lane.b32.xlu0 %v949, 8
    %v1077 = vpop.permute.xlu0 %1076
    %1078 = vrot.lane.b32.xlu0 %v951, 8
    %v1079 = vpop.permute.xlu0 %1078
    %v1144 = vsel %vm17, %v234, %v600
    %v1145 = vsel %vm17, %v235, %v602
    %v1146 = vsel %vm17, %v237, %v604
    %v1147 = vsel %vm17, %v238, %v606
    %v1148 = vsel %vm17, %v240, %v608
    %v1149 = vsel %vm17, %v241, %v610
    %v1150 = vsel %vm17, %v243, %v612
    %v1151 = vsel %vm17, %v244, %v614
    %v1152 = vsel %vm17, %v246, %v616
    %v1153 = vsel %vm17, %v247, %v618
    %v1154 = vsel %vm17, %v249, %v620
    %v1155 = vsel %vm17, %v250, %v622
    %v1156 = vsel %vm17, %v252, %v624
    %v1157 = vsel %vm17, %v253, %v626
    %v1158 = vsel %vm17, %v255, %v628
    %v1159 = vsel %vm17, %v256, %v630
    %v1160 = vsel %vm17, %v258, %v632
    %v1161 = vsel %vm17, %v259, %v634
    %v1162 = vsel %vm17, %v261, %v636
    %v1163 = vsel %vm17, %v262, %v638
    %v1164 = vsel %vm17, %v264, %v640
    %v1165 = vsel %vm17, %v265, %v642
    %v1166 = vsel %vm17, %v267, %v644
    %v1167 = vsel %vm17, %v268, %v646
    %v1168 = vsel %vm17, %v270, %v648
    %v1169 = vsel %vm17, %v271, %v650
    %v1170 = vsel %vm17, %v273, %v652
    %v1171 = vsel %vm17, %v274, %v654
    %v1172 = vsel %vm17, %v276, %v656
    %v1173 = vsel %vm17, %v277, %v658
    %v1174 = vsel %vm17, %v279, %v660
    %v1175 = vsel %vm17, %v280, %v662
    %v1176 = vsel %vm17, %v288, %v664
    %v1177 = vsel %vm17, %v289, %v666
    %v1178 = vsel %vm17, %v291, %v668
    %v1179 = vsel %vm17, %v292, %v670
    %v1180 = vsel %vm17, %v294, %v672
    %v1181 = vsel %vm17, %v295, %v674
    %v1182 = vsel %vm17, %v297, %v676
    %v1183 = vsel %vm17, %v298, %v678
    %v1184 = vsel %vm17, %v300, %v680
    %v1185 = vsel %vm17, %v301, %v682
    %v1186 = vsel %vm17, %v303, %v684
    %v1187 = vsel %vm17, %v304, %v686
    %v1188 = vsel %vm17, %v306, %v688
    %v1189 = vsel %vm17, %v307, %v690
    %v1190 = vsel %vm17, %v309, %v692
    %v1191 = vsel %vm17, %v310, %v694
    %v1192 = vsel %vm17, %v312, %v696
    %v1193 = vsel %vm17, %v313, %v698
    %v1194 = vsel %vm17, %v315, %v700
    %v1195 = vsel %vm17, %v316, %v702
    %v1196 = vsel %vm17, %v318, %v704
    %v1197 = vsel %vm17, %v319, %v706
    %v1198 = vsel %vm17, %v321, %v708
    %v1199 = vsel %vm17, %v322, %v710
    %v1200 = vsel %vm17, %v324, %v712
    %v1201 = vsel %vm17, %v325, %v714
    %v1202 = vsel %vm17, %v327, %v716
    %v1203 = vsel %vm17, %v328, %v718
    %v1204 = vsel %vm17, %v330, %v720
    %v1205 = vsel %vm17, %v331, %v722
    %v1206 = vsel %vm17, %v333, %v724
    %v1207 = vsel %vm17, %v334, %v726
    %vm1208 = vcmask 64512
    %v1209 = vsel %vm1208, %v1144, %v953
    %v1210 = vsel %vm1208, %v1145, %v955
    %v1211 = vsel %vm1208, %v1146, %v957
    %v1212 = vsel %vm1208, %v1147, %v959
    %v1213 = vsel %vm1208, %v1148, %v961
    %v1214 = vsel %vm1208, %v1149, %v963
    %v1215 = vsel %vm1208, %v1150, %v965
    %v1216 = vsel %vm1208, %v1151, %v967
    %v1217 = vsel %vm1208, %v1152, %v969
    %v1218 = vsel %vm1208, %v1153, %v971
    %v1219 = vsel %vm1208, %v1154, %v973
    %v1220 = vsel %vm1208, %v1155, %v975
    %v1221 = vsel %vm1208, %v1156, %v977
    %v1222 = vsel %vm1208, %v1157, %v979
    %v1223 = vsel %vm1208, %v1158, %v981
    %v1224 = vsel %vm1208, %v1159, %v983
    %v1225 = vsel %vm1208, %v1160, %v985
    %v1226 = vsel %vm1208, %v1161, %v987
    %v1227 = vsel %vm1208, %v1162, %v989
    %v1228 = vsel %vm1208, %v1163, %v991
    %v1229 = vsel %vm1208, %v1164, %v993
    %v1230 = vsel %vm1208, %v1165, %v995
    %v1231 = vsel %vm1208, %v1166, %v997
    %v1232 = vsel %vm1208, %v1167, %v999
    %v1233 = vsel %vm1208, %v1168, %v1001
    %v1234 = vsel %vm1208, %v1169, %v1003
    %v1235 = vsel %vm1208, %v1170, %v1005
    %v1236 = vsel %vm1208, %v1171, %v1007
    %v1237 = vsel %vm1208, %v1172, %v1009
    %v1238 = vsel %vm1208, %v1173, %v1011
    %v1239 = vsel %vm1208, %v1174, %v1013
    %v1240 = vsel %vm1208, %v1175, %v1015
    %v1241 = vsel %vm1208, %v1176, %v1017
    %v1242 = vsel %vm1208, %v1177, %v1019
    %v1243 = vsel %vm1208, %v1178, %v1021
    %v1244 = vsel %vm1208, %v1179, %v1023
    %v1245 = vsel %vm1208, %v1180, %v1025
    %v1246 = vsel %vm1208, %v1181, %v1027
    %v1247 = vsel %vm1208, %v1182, %v1029
    %v1248 = vsel %vm1208, %v1183, %v1031
    %v1249 = vsel %vm1208, %v1184, %v1033
    %v1250 = vsel %vm1208, %v1185, %v1035
    %v1251 = vsel %vm1208, %v1186, %v1037
    %v1252 = vsel %vm1208, %v1187, %v1039
    %v1253 = vsel %vm1208, %v1188, %v1041
    %v1254 = vsel %vm1208, %v1189, %v1043
    %v1255 = vsel %vm1208, %v1190, %v1045
    %v1256 = vsel %vm1208, %v1191, %v1047
    %v1257 = vsel %vm1208, %v1192, %v1049
    %v1258 = vsel %vm1208, %v1193, %v1051
    %v1259 = vsel %vm1208, %v1194, %v1053
    %v1260 = vsel %vm1208, %v1195, %v1055
    %v1261 = vsel %vm1208, %v1196, %v1057
    %v1262 = vsel %vm1208, %v1197, %v1059
    %v1263 = vsel %vm1208, %v1198, %v1061
    %v1264 = vsel %vm1208, %v1199, %v1063
    %v1265 = vsel %vm1208, %v1200, %v1065
    %v1266 = vsel %vm1208, %v1201, %v1067
    %v1267 = vsel %vm1208, %v1202, %v1069
    %v1268 = vsel %vm1208, %v1203, %v1071
    %v1269 = vsel %vm1208, %v1204, %v1073
    %v1270 = vsel %vm1208, %v1205, %v1075
    %v1271 = vsel %vm1208, %v1206, %v1077
    %v1272 = vsel %vm1208, %v1207, %v1079
    %v1273 = vld [vmem:[%s1] sm:$0xff]
    %v1274 = vld [vmem:[%s1 + $0x8] sm:$0xf]
    %v1281 = vrot.slane %v282, 1
    %v1282 = vrot.slane %v283, 1
    %v1283 = vsel %vm438, %v1281, %v1282
    %v1284 = vrot.slane %v284, 1
    %v1285 = vsel %vm438, %v1282, %v1284
    %v1286 = vrot.slane %v336, 1
    %v1287 = vrot.slane %v337, 1
    %v1288 = vsel %vm438, %v1286, %v1287
    %v1289 = vrot.slane %v338, 1
    %v1290 = vsel %vm438, %v1287, %v1289
    %1291 = vrot.lane.b32.xlu0 %v1283, 4
    %v1292 = vpop.permute.xlu0 %1291
    %1293 = vrot.lane.b32.xlu0 %v1285, 4
    %v1294 = vpop.permute.xlu0 %1293
    %1295 = vrot.lane.b32.xlu0 %v1288, 4
    %v1296 = vpop.permute.xlu0 %1295
    %1297 = vrot.lane.b32.xlu0 %v1290, 4
    %v1298 = vpop.permute.xlu0 %1297
    %v1303 = vrot.slane %v282, 2
    %v1304 = vrot.slane %v283, 2
    %v1305 = vsel %vm791, %v1303, %v1304
    %v1306 = vrot.slane %v284, 2
    %v1307 = vsel %vm791, %v1304, %v1306
    %v1308 = vrot.slane %v336, 2
    %v1309 = vrot.slane %v337, 2
    %v1310 = vsel %vm791, %v1308, %v1309
    %v1311 = vrot.slane %v338, 2
    %v1312 = vsel %vm791, %v1309, %v1311
    %1313 = vrot.lane.b32.xlu0 %v1305, 8
    %v1314 = vpop.permute.xlu0 %1313
    %1315 = vrot.lane.b32.xlu0 %v1307, 8
    %v1316 = vpop.permute.xlu0 %1315
    %1317 = vrot.lane.b32.xlu0 %v1310, 8
    %v1318 = vpop.permute.xlu0 %1317
    %1319 = vrot.lane.b32.xlu0 %v1312, 8
    %v1320 = vpop.permute.xlu0 %1319
    %v1325 = vsel %vm17, %v282, %v1292
    %v1326 = vsel %vm17, %v283, %v1294
    %v1327 = vsel %vm17, %v336, %v1296
    %v1328 = vsel %vm17, %v337, %v1298
    %v1329 = vsel %vm1208, %v1325, %v1314
    %v1330 = vsel %vm1208, %v1326, %v1316
    %v1331 = vsel %vm1208, %v1327, %v1318
    %v1332 = vsel %vm1208, %v1328, %v1320
    %s1333 = scalar_lea.vmem %s1, 16
    %v1334 = vld [vmem:[%s1333] sm:$0xff]
    %v1335 = vld [vmem:[%s1333 + $0x8] sm:$0xf]
    %vm1336 = vcmask 97280
    %v1338 = vsel %vm1336, %v1211, 0
    %v1341 = vsel %vm1336, %v1212, 0
    %v1344 = vsel %vm1336, %v1213, 0
    %v1347 = vsel %vm1336, %v1214, 0
    %v1350 = vsel %vm1336, %v1215, 0
    %v1353 = vsel %vm1336, %v1216, 0
    %v1356 = vsel %vm1336, %v1217, 0
    %v1359 = vsel %vm1336, %v1218, 0
    %v1362 = vsel %vm1336, %v1219, 0
    %v1365 = vsel %vm1336, %v1220, 0
    %v1368 = vsel %vm1336, %v1221, 0
    %v1371 = vsel %vm1336, %v1222, 0
    %v1374 = vsel %vm1336, %v1223, 0
    %v1377 = vsel %vm1336, %v1224, 0
    %v1380 = vsel %vm1336, %v1225, 0
    %v1383 = vsel %vm1336, %v1226, 0
    %v1386 = vsel %vm1336, %v1227, 0
    %v1389 = vsel %vm1336, %v1228, 0
    %v1392 = vsel %vm1336, %v1229, 0
    %v1395 = vsel %vm1336, %v1230, 0
    %v1398 = vsel %vm1336, %v1231, 0
    %v1401 = vsel %vm1336, %v1232, 0
    %v1404 = vsel %vm1336, %v1233, 0
    %v1407 = vsel %vm1336, %v1234, 0
    %v1410 = vsel %vm1336, %v1235, 0
    %v1413 = vsel %vm1336, %v1236, 0
    %v1416 = vsel %vm1336, %v1237, 0
    %v1419 = vsel %vm1336, %v1238, 0
    %v1422 = vsel %vm1336, %v1239, 0
    %v1425 = vsel %vm1336, %v1240, 0
    %v1428 = vsel %vm1336, %v1329, 0
    %v1431 = vsel %vm1336, %v1330, 0
    %v1434 = vsel %vm1336, %v1243, 0
    %v1437 = vsel %vm1336, %v1244, 0
    %v1440 = vsel %vm1336, %v1245, 0
    %v1443 = vsel %vm1336, %v1246, 0
    %v1446 = vsel %vm1336, %v1247, 0
    %v1449 = vsel %vm1336, %v1248, 0
    %v1452 = vsel %vm1336, %v1249, 0
    %v1455 = vsel %vm1336, %v1250, 0
    %v1458 = vsel %vm1336, %v1251, 0
    %v1461 = vsel %vm1336, %v1252, 0
    %v1464 = vsel %vm1336, %v1253, 0
    %v1467 = vsel %vm1336, %v1254, 0
    %v1470 = vsel %vm1336, %v1255, 0
    %v1473 = vsel %vm1336, %v1256, 0
    %v1476 = vsel %vm1336, %v1257, 0
    %v1479 = vsel %vm1336, %v1258, 0
    %v1482 = vsel %vm1336, %v1259, 0
    %v1485 = vsel %vm1336, %v1260, 0
    %v1488 = vsel %vm1336, %v1261, 0
    %v1491 = vsel %vm1336, %v1262, 0
    %v1494 = vsel %vm1336, %v1263, 0
    %v1497 = vsel %vm1336, %v1264, 0
    %v1500 = vsel %vm1336, %v1265, 0
    %v1503 = vsel %vm1336, %v1266, 0
    %v1506 = vsel %vm1336, %v1267, 0
    %v1509 = vsel %vm1336, %v1268, 0
    %v1512 = vsel %vm1336, %v1269, 0
    %v1515 = vsel %vm1336, %v1270, 0
    %v1518 = vsel %vm1336, %v1271, 0
    %v1521 = vsel %vm1336, %v1272, 0
    %v1524 = vsel %vm1336, %v1331, 0
    %v1527 = vsel %vm1336, %v1332, 0
    %vm1529 = vcmask 1043456
    %v1531 = vsel %vm1529, %v1335, 0
    %1533 = vmatprep.subr.mxu0 0.0
    %1534 = vmatpush1.msra.mxu0 %v1334
    %1535 = vmatprep.subr.mxu0 0.0
    %1536 = vmatpush1.msra.mxu0 %v1531
    %1537 = vmatprep.subr.mxu0 0.0
    %1538 = vmatpush1.msra.mxu0 0.0
    %1539 = vmatprep.subr.mxu0 0.0
    %1540 = vmatpush1.msra.mxu0 0.0
    %1541 = vmatprep.subr.mxu0 0.0
    %1542 = vmatpush1.msra.mxu0 0.0
    %1543 = vmatprep.subr.mxu0 0.0
    %1544 = vmatpush1.msra.mxu0 0.0
    %1545 = vmatprep.subr.mxu0 0.0
    %1546 = vmatpush1.msra.mxu0 0.0
    %1547 = vmatprep.subr.mxu0 0.0
    %1548 = vmatpush1.msra.mxu0 0.0
    %1549 = vmatprep.subr.mxu0 0.0
    %1550 = vmatpush1.msra.mxu0 0.0
    %1551 = vmatprep.subr.mxu0 0.0
    %1552 = vmatpush1.msra.mxu0 0.0
    %1553 = vmatprep.subr.mxu0 0.0
    %1554 = vmatpush1.msra.mxu0 0.0
    %1555 = vmatprep.subr.mxu0 0.0
    %1556 = vmatpush1.msra.mxu0 0.0
    %1557 = vmatprep.subr.mxu0 0.0
    %1558 = vmatpush1.msra.mxu0 0.0
    %1559 = vmatprep.subr.mxu0 0.0
    %1560 = vmatpush1.msra.mxu0 0.0
    %1561 = vmatprep.subr.mxu0 0.0
    %1562 = vmatpush1.msra.mxu0 0.0
    %1563 = vmatprep.subr.mxu0 0.0
    %1564 = vmatpush1.msra.mxu0 0.0
    %1565 = vmatprep.subr.mxu0 0.0
    %1566 = vmatpush1.msra.mxu0 0.0
    %1567 = vmatprep.subr.mxu0 0.0
    %1568 = vmatpush1.msra.mxu0 0.0
    %1569 = vmatprep.subr.mxu0 0.0
    %1570 = vmatpush1.msra.mxu0 0.0
    %1571 = vmatprep.subr.mxu0 0.0
    %1572 = vmatpush1.msra.mxu0 0.0
    %1573 = vmatprep.subr.mxu0 0.0
    %1574 = vmatpush1.msra.mxu0 0.0
    %1575 = vmatprep.subr.mxu0 0.0
    %1576 = vmatpush1.msra.mxu0 0.0
    %1577 = vmatprep.subr.mxu0 0.0
    %1578 = vmatpush1.msra.mxu0 0.0
    %1579 = vmatprep.subr.mxu0 0.0
    %1580 = vmatpush1.msra.mxu0 0.0
    %1581 = vmatprep.subr.mxu0 0.0
    %1582 = vmatpush1.msra.mxu0 0.0
    %1583 = vmatprep.subr.mxu0 0.0
    %1584 = vmatpush1.msra.mxu0 0.0
    %1585 = vmatprep.subr.mxu0 0.0
    %1586 = vmatpush1.msra.mxu0 0.0
    %1587 = vmatprep.subr.mxu0 0.0
    %1588 = vmatpush1.msra.mxu0 0.0
    %1589 = vmatprep.subr.mxu0 0.0
    %1590 = vmatpush1.msra.mxu0 0.0
    %1591 = vmatprep.subr.mxu0 0.0
    %1592 = vmatpush1.msra.mxu0 0.0
    %1593 = vmatprep.subr.mxu0 0.0
    %1594 = vmatpush1.msra.mxu0 0.0
    %1595 = vmatprep.subr.mxu0 0.0
    %1596 = vmatpush1.msra.mxu0 0.0
    %1597 = vmatprep.mubr.f32.mxu0 0.0
    %1598 = vmatmul.mubr.f32.gmra.mrb[0].mxu0 %v1338
    %v1599 = vpop.f32.mrb[0].mxu0
    %v1600 = vadd.f32 0.0, %v1599
    %v1601 = vpop.f32.mrb[0].mxu0
    %1602 = vmatprep.mubr.f32.mxu0 0.0
    %1603 = vmatmul.mubr.f32.gmra.mrb[0].mxu0 %v1341
    %v1604 = vpop.f32.mrb[0].mxu0
    %v1605 = vadd.f32 0.0, %v1604
    %v1606 = vpop.f32.mrb[0].mxu0
    %1607 = vmatprep.mubr.f32.mxu0 0.0
    %1608 = vmatmul.mubr.f32.gmra.mrb[0].mxu0 %v1344
    %v1609 = vpop.f32.mrb[0].mxu0
    %v1610 = vadd.f32 0.0, %v1609
    %v1611 = vpop.f32.mrb[0].mxu0
    %1612 = vmatprep.mubr.f32.mxu0 0.0
    %1613 = vmatmul.mubr.f32.gmra.mrb[0].mxu0 %v1347
    %v1614 = vpop.f32.mrb[0].mxu0
    %v1615 = vadd.f32 0.0, %v1614
    %v1616 = vpop.f32.mrb[0].mxu0
    %1617 = vmatprep.mubr.f32.mxu0 0.0
    %1618 = vmatmul.mubr.f32.gmra.mrb[0].mxu0 %v1350
    %v1619 = vpop.f32.mrb[0].mxu0
    %v1620 = vadd.f32 0.0, %v1619
    %v1621 = vpop.f32.mrb[0].mxu0
    %1622 = vmatprep.mubr.f32.mxu0 0.0
    %1623 = vmatmul.mubr.f32.gmra.mrb[0].mxu0 %v1353
    %v1624 = vpop.f32.mrb[0].mxu0
    %v1625 = vadd.f32 0.0, %v1624
    %v1626 = vpop.f32.mrb[0].mxu0
    %1627 = vmatprep.mubr.f32.mxu0 0.0
    %1628 = vmatmul.mubr.f32.gmra.mrb[0].mxu0 %v1356
    %v1629 = vpop.f32.mrb[0].mxu0
    %v1630 = vadd.f32 0.0, %v1629
    %v1631 = vpop.f32.mrb[0].mxu0
    %1632 = vmatprep.mubr.f32.mxu0 0.0
    %1633 = vmatmul.mubr.f32.gmra.mrb[0].mxu0 %v1359
    %v1634 = vpop.f32.mrb[0].mxu0
    %v1635 = vadd.f32 0.0, %v1634
    %v1636 = vpop.f32.mrb[0].mxu0
    %1637 = vmatprep.mubr.f32.mxu0 0.0
    %1638 = vmatmul.mubr.f32.gmra.mrb[0].mxu0 %v1362
    %v1639 = vpop.f32.mrb[0].mxu0
    %v1640 = vadd.f32 0.0, %v1639
    %v1641 = vpop.f32.mrb[0].mxu0
    %1642 = vmatprep.mubr.f32.mxu0 0.0
    %1643 = vmatmul.mubr.f32.gmra.mrb[0].mxu0 %v1365
    %v1644 = vpop.f32.mrb[0].mxu0
    %v1645 = vadd.f32 0.0, %v1644
    %v1646 = vpop.f32.mrb[0].mxu0
    %1647 = vmatprep.mubr.f32.mxu0 0.0
    %1648 = vmatmul.mubr.f32.gmra.mrb[0].mxu0 %v1368
    %v1649 = vpop.f32.mrb[0].mxu0
    %v1650 = vadd.f32 0.0, %v1649
    %v1651 = vpop.f32.mrb[0].mxu0
    %1652 = vmatprep.mubr.f32.mxu0 0.0
    %1653 = vmatmul.mubr.f32.gmra.mrb[0].mxu0 %v1371
    %v1654 = vpop.f32.mrb[0].mxu0
    %v1655 = vadd.f32 0.0, %v1654
    %v1656 = vpop.f32.mrb[0].mxu0
    %1657 = vmatprep.mubr.f32.mxu0 0.0
    %1658 = vmatmul.mubr.f32.gmra.mrb[0].mxu0 %v1374
    %v1659 = vpop.f32.mrb[0].mxu0
    %v1660 = vadd.f32 0.0, %v1659
    %v1661 = vpop.f32.mrb[0].mxu0
    %1662 = vmatprep.mubr.f32.mxu0 0.0
    %1663 = vmatmul.mubr.f32.gmra.mrb[0].mxu0 %v1377
    %v1664 = vpop.f32.mrb[0].mxu0
    %v1665 = vadd.f32 0.0, %v1664
    %v1666 = vpop.f32.mrb[0].mxu0
    %1667 = vmatprep.mubr.f32.mxu0 0.0
    %1668 = vmatmul.mubr.f32.gmra.mrb[0].mxu0 %v1380
    %v1669 = vpop.f32.mrb[0].mxu0
    %v1670 = vadd.f32 0.0, %v1669
    %v1671 = vpop.f32.mrb[0].mxu0
    %1672 = vmatprep.mubr.f32.mxu0 0.0
    %1673 = vmatmul.mubr.f32.gmra.mrb[0].mxu0 %v1383
    %v1674 = vpop.f32.mrb[0].mxu0
    %v1675 = vadd.f32 0.0, %v1674
    %v1676 = vpop.f32.mrb[0].mxu0
    %1677 = vmatprep.mubr.f32.mxu0 0.0
    %1678 = vmatmul.mubr.f32.gmra.mrb[0].mxu0 %v1386
    %v1679 = vpop.f32.mrb[0].mxu0
    %v1680 = vadd.f32 0.0, %v1679
    %v1681 = vpop.f32.mrb[0].mxu0
    %1682 = vmatprep.mubr.f32.mxu0 0.0
    %1683 = vmatmul.mubr.f32.gmra.mrb[0].mxu0 %v1389
    %v1684 = vpop.f32.mrb[0].mxu0
    %v1685 = vadd.f32 0.0, %v1684
    %v1686 = vpop.f32.mrb[0].mxu0
    %1687 = vmatprep.mubr.f32.mxu0 0.0
    %1688 = vmatmul.mubr.f32.gmra.mrb[0].mxu0 %v1392
    %v1689 = vpop.f32.mrb[0].mxu0
    %v1690 = vadd.f32 0.0, %v1689
    %v1691 = vpop.f32.mrb[0].mxu0
    %1692 = vmatprep.mubr.f32.mxu0 0.0
    %1693 = vmatmul.mubr.f32.gmra.mrb[0].mxu0 %v1395
    %v1694 = vpop.f32.mrb[0].mxu0
    %v1695 = vadd.f32 0.0, %v1694
    %v1696 = vpop.f32.mrb[0].mxu0
    %1697 = vmatprep.mubr.f32.mxu0 0.0
    %1698 = vmatmul.mubr.f32.gmra.mrb[0].mxu0 %v1398
    %v1699 = vpop.f32.mrb[0].mxu0
    %v1700 = vadd.f32 0.0, %v1699
    %v1701 = vpop.f32.mrb[0].mxu0
    %1702 = vmatprep.mubr.f32.mxu0 0.0
    %1703 = vmatmul.mubr.f32.gmra.mrb[0].mxu0 %v1401
    %v1704 = vpop.f32.mrb[0].mxu0
    %v1705 = vadd.f32 0.0, %v1704
    %v1706 = vpop.f32.mrb[0].mxu0
    %1707 = vmatprep.mubr.f32.mxu0 0.0
    %1708 = vmatmul.mubr.f32.gmra.mrb[0].mxu0 %v1404
    %v1709 = vpop.f32.mrb[0].mxu0
    %v1710 = vadd.f32 0.0, %v1709
    %v1711 = vpop.f32.mrb[0].mxu0
    %1712 = vmatprep.mubr.f32.mxu0 0.0
    %1713 = vmatmul.mubr.f32.gmra.mrb[0].mxu0 %v1407
    %v1714 = vpop.f32.mrb[0].mxu0
    %v1715 = vadd.f32 0.0, %v1714
    %v1716 = vpop.f32.mrb[0].mxu0
    %1717 = vmatprep.mubr.f32.mxu0 0.0
    %1718 = vmatmul.mubr.f32.gmra.mrb[0].mxu0 %v1410
    %v1719 = vpop.f32.mrb[0].mxu0
    %v1720 = vadd.f32 0.0, %v1719
    %v1721 = vpop.f32.mrb[0].mxu0
    %1722 = vmatprep.mubr.f32.mxu0 0.0
    %1723 = vmatmul.mubr.f32.gmra.mrb[0].mxu0 %v1413
    %v1724 = vpop.f32.mrb[0].mxu0
    %v1725 = vadd.f32 0.0, %v1724
    %v1726 = vpop.f32.mrb[0].mxu0
    %1727 = vmatprep.mubr.f32.mxu0 0.0
    %1728 = vmatmul.mubr.f32.gmra.mrb[0].mxu0 %v1416
    %v1729 = vpop.f32.mrb[0].mxu0
    %v1730 = vadd.f32 0.0, %v1729
    %v1731 = vpop.f32.mrb[0].mxu0
    %1732 = vmatprep.mubr.f32.mxu0 0.0
    %1733 = vmatmul.mubr.f32.gmra.mrb[0].mxu0 %v1419
    %v1734 = vpop.f32.mrb[0].mxu0
    %v1735 = vadd.f32 0.0, %v1734
    %v1736 = vpop.f32.mrb[0].mxu0
    %1737 = vmatprep.mubr.f32.mxu0 0.0
    %1738 = vmatmul.mubr.f32.gmra.mrb[0].mxu0 %v1422
    %v1739 = vpop.f32.mrb[0].mxu0
    %v1740 = vadd.f32 0.0, %v1739
    %v1741 = vpop.f32.mrb[0].mxu0
    %1742 = vmatprep.mubr.f32.mxu0 0.0
    %1743 = vmatmul.mubr.f32.gmra.mrb[0].mxu0 %v1425
    %v1744 = vpop.f32.mrb[0].mxu0
    %v1745 = vadd.f32 0.0, %v1744
    %v1746 = vpop.f32.mrb[0].mxu0
    %1747 = vmatprep.mubr.f32.mxu0 0.0
    %1748 = vmatmul.mubr.f32.gmra.mrb[0].mxu0 %v1428
    %v1749 = vpop.f32.mrb[0].mxu0
    %v1750 = vadd.f32 0.0, %v1749
    %v1751 = vpop.f32.mrb[0].mxu0
    %1752 = vmatprep.mubr.f32.mxu0 0.0
    %1753 = vmatmul.mubr.f32.gmra.mrb[0].mxu0 %v1431
    %v1754 = vpop.f32.mrb[0].mxu0
    %v1755 = vadd.f32 0.0, %v1754
    %v1756 = vpop.f32.mrb[0].mxu0
    %1757 = vmatprep.mubr.f32.mxu0 0.0
    %1758 = vmatmul.mubr.f32.gmra.mrb[0].mxu0 %v1434
    %v1759 = vpop.f32.mrb[0].mxu0
    %v1760 = vadd.f32 0.0, %v1759
    %v1761 = vpop.f32.mrb[0].mxu0
    %1762 = vmatprep.mubr.f32.mxu0 0.0
    %1763 = vmatmul.mubr.f32.gmra.mrb[0].mxu0 %v1437
    %v1764 = vpop.f32.mrb[0].mxu0
    %v1765 = vadd.f32 0.0, %v1764
    %v1766 = vpop.f32.mrb[0].mxu0
    %1767 = vmatprep.mubr.f32.mxu0 0.0
    %1768 = vmatmul.mubr.f32.gmra.mrb[0].mxu0 %v1440
    %v1769 = vpop.f32.mrb[0].mxu0
    %v1770 = vadd.f32 0.0, %v1769
    %v1771 = vpop.f32.mrb[0].mxu0
    %1772 = vmatprep.mubr.f32.mxu0 0.0
    %1773 = vmatmul.mubr.f32.gmra.mrb[0].mxu0 %v1443
    %v1774 = vpop.f32.mrb[0].mxu0
    %v1775 = vadd.f32 0.0, %v1774
    %v1776 = vpop.f32.mrb[0].mxu0
    %1777 = vmatprep.mubr.f32.mxu0 0.0
    %1778 = vmatmul.mubr.f32.gmra.mrb[0].mxu0 %v1446
    %v1779 = vpop.f32.mrb[0].mxu0
    %v1780 = vadd.f32 0.0, %v1779
    %v1781 = vpop.f32.mrb[0].mxu0
    %1782 = vmatprep.mubr.f32.mxu0 0.0
    %1783 = vmatmul.mubr.f32.gmra.mrb[0].mxu0 %v1449
    %v1784 = vpop.f32.mrb[0].mxu0
    %v1785 = vadd.f32 0.0, %v1784
    %v1786 = vpop.f32.mrb[0].mxu0
    %1787 = vmatprep.mubr.f32.mxu0 0.0
    %1788 = vmatmul.mubr.f32.gmra.mrb[0].mxu0 %v1452
    %v1789 = vpop.f32.mrb[0].mxu0
    %v1790 = vadd.f32 0.0, %v1789
    %v1791 = vpop.f32.mrb[0].mxu0
    %1792 = vmatprep.mubr.f32.mxu0 0.0
    %1793 = vmatmul.mubr.f32.gmra.mrb[0].mxu0 %v1455
    %v1794 = vpop.f32.mrb[0].mxu0
    %v1795 = vadd.f32 0.0, %v1794
    %v1796 = vpop.f32.mrb[0].mxu0
    %1797 = vmatprep.mubr.f32.mxu0 0.0
    %1798 = vmatmul.mubr.f32.gmra.mrb[0].mxu0 %v1458
    %v1799 = vpop.f32.mrb[0].mxu0
    %v1800 = vadd.f32 0.0, %v1799
    %v1801 = vpop.f32.mrb[0].mxu0
    %1802 = vmatprep.mubr.f32.mxu0 0.0
    %1803 = vmatmul.mubr.f32.gmra.mrb[0].mxu0 %v1461
    %v1804 = vpop.f32.mrb[0].mxu0
    %v1805 = vadd.f32 0.0, %v1804
    %v1806 = vpop.f32.mrb[0].mxu0
    %1807 = vmatprep.mubr.f32.mxu0 0.0
    %1808 = vmatmul.mubr.f32.gmra.mrb[0].mxu0 %v1464
    %v1809 = vpop.f32.mrb[0].mxu0
    %v1810 = vadd.f32 0.0, %v1809
    %v1811 = vpop.f32.mrb[0].mxu0
    %1812 = vmatprep.mubr.f32.mxu0 0.0
    %1813 = vmatmul.mubr.f32.gmra.mrb[0].mxu0 %v1467
    %v1814 = vpop.f32.mrb[0].mxu0
    %v1815 = vadd.f32 0.0, %v1814
    %v1816 = vpop.f32.mrb[0].mxu0
    %1817 = vmatprep.mubr.f32.mxu0 0.0
    %1818 = vmatmul.mubr.f32.gmra.mrb[0].mxu0 %v1470
    %v1819 = vpop.f32.mrb[0].mxu0
    %v1820 = vadd.f32 0.0, %v1819
    %v1821 = vpop.f32.mrb[0].mxu0
    %1822 = vmatprep.mubr.f32.mxu0 0.0
    %1823 = vmatmul.mubr.f32.gmra.mrb[0].mxu0 %v1473
    %v1824 = vpop.f32.mrb[0].mxu0
    %v1825 = vadd.f32 0.0, %v1824
    %v1826 = vpop.f32.mrb[0].mxu0
    %1827 = vmatprep.mubr.f32.mxu0 0.0
    %1828 = vmatmul.mubr.f32.gmra.mrb[0].mxu0 %v1476
    %v1829 = vpop.f32.mrb[0].mxu0
    %v1830 = vadd.f32 0.0, %v1829
    %v1831 = vpop.f32.mrb[0].mxu0
    %1832 = vmatprep.mubr.f32.mxu0 0.0
    %1833 = vmatmul.mubr.f32.gmra.mrb[0].mxu0 %v1479
    %v1834 = vpop.f32.mrb[0].mxu0
    %v1835 = vadd.f32 0.0, %v1834
    %v1836 = vpop.f32.mrb[0].mxu0
    %1837 = vmatprep.mubr.f32.mxu0 0.0
    %1838 = vmatmul.mubr.f32.gmra.mrb[0].mxu0 %v1482
    %v1839 = vpop.f32.mrb[0].mxu0
    %v1840 = vadd.f32 0.0, %v1839
    %v1841 = vpop.f32.mrb[0].mxu0
    %1842 = vmatprep.mubr.f32.mxu0 0.0
    %1843 = vmatmul.mubr.f32.gmra.mrb[0].mxu0 %v1485
    %v1844 = vpop.f32.mrb[0].mxu0
    %v1845 = vadd.f32 0.0, %v1844
    %v1846 = vpop.f32.mrb[0].mxu0
    %1847 = vmatprep.mubr.f32.mxu0 0.0
    %1848 = vmatmul.mubr.f32.gmra.mrb[0].mxu0 %v1488
    %v1849 = vpop.f32.mrb[0].mxu0
    %v1850 = vadd.f32 0.0, %v1849
    %v1851 = vpop.f32.mrb[0].mxu0
    %1852 = vmatprep.mubr.f32.mxu0 0.0
    %1853 = vmatmul.mubr.f32.gmra.mrb[0].mxu0 %v1491
    %v1854 = vpop.f32.mrb[0].mxu0
    %v1855 = vadd.f32 0.0, %v1854
    %v1856 = vpop.f32.mrb[0].mxu0
    %1857 = vmatprep.mubr.f32.mxu0 0.0
    %1858 = vmatmul.mubr.f32.gmra.mrb[0].mxu0 %v1494
    %v1859 = vpop.f32.mrb[0].mxu0
    %v1860 = vadd.f32 0.0, %v1859
    %v1861 = vpop.f32.mrb[0].mxu0
    %1862 = vmatprep.mubr.f32.mxu0 0.0
    %1863 = vmatmul.mubr.f32.gmra.mrb[0].mxu0 %v1497
    %v1864 = vpop.f32.mrb[0].mxu0
    %v1865 = vadd.f32 0.0, %v1864
    %v1866 = vpop.f32.mrb[0].mxu0
    %1867 = vmatprep.mubr.f32.mxu0 0.0
    %1868 = vmatmul.mubr.f32.gmra.mrb[0].mxu0 %v1500
    %v1869 = vpop.f32.mrb[0].mxu0
    %v1870 = vadd.f32 0.0, %v1869
    %v1871 = vpop.f32.mrb[0].mxu0
    %1872 = vmatprep.mubr.f32.mxu0 0.0
    %1873 = vmatmul.mubr.f32.gmra.mrb[0].mxu0 %v1503
    %v1874 = vpop.f32.mrb[0].mxu0
    %v1875 = vadd.f32 0.0, %v1874
    %v1876 = vpop.f32.mrb[0].mxu0
    %1877 = vmatprep.mubr.f32.mxu0 0.0
    %1878 = vmatmul.mubr.f32.gmra.mrb[0].mxu0 %v1506
    %v1879 = vpop.f32.mrb[0].mxu0
    %v1880 = vadd.f32 0.0, %v1879
    %v1881 = vpop.f32.mrb[0].mxu0
    %1882 = vmatprep.mubr.f32.mxu0 0.0
    %1883 = vmatmul.mubr.f32.gmra.mrb[0].mxu0 %v1509
    %v1884 = vpop.f32.mrb[0].mxu0
    %v1885 = vadd.f32 0.0, %v1884
    %v1886 = vpop.f32.mrb[0].mxu0
    %1887 = vmatprep.mubr.f32.mxu0 0.0
    %1888 = vmatmul.mubr.f32.gmra.mrb[0].mxu0 %v1512
    %v1889 = vpop.f32.mrb[0].mxu0
    %v1890 = vadd.f32 0.0, %v1889
    %v1891 = vpop.f32.mrb[0].mxu0
    %1892 = vmatprep.mubr.f32.mxu0 0.0
    %1893 = vmatmul.mubr.f32.gmra.mrb[0].mxu0 %v1515
    %v1894 = vpop.f32.mrb[0].mxu0
    %v1895 = vadd.f32 0.0, %v1894
    %v1896 = vpop.f32.mrb[0].mxu0
    %1897 = vmatprep.mubr.f32.mxu0 0.0
    %1898 = vmatmul.mubr.f32.gmra.mrb[0].mxu0 %v1518
    %v1899 = vpop.f32.mrb[0].mxu0
    %v1900 = vadd.f32 0.0, %v1899
    %v1901 = vpop.f32.mrb[0].mxu0
    %1902 = vmatprep.mubr.f32.mxu0 0.0
    %1903 = vmatmul.mubr.f32.gmra.mrb[0].mxu0 %v1521
    %v1904 = vpop.f32.mrb[0].mxu0
    %v1905 = vadd.f32 0.0, %v1904
    %v1906 = vpop.f32.mrb[0].mxu0
    %1907 = vmatprep.mubr.f32.mxu0 0.0
    %1908 = vmatmul.mubr.f32.gmra.mrb[0].mxu0 %v1524
    %v1909 = vpop.f32.mrb[0].mxu0
    %v1910 = vadd.f32 0.0, %v1909
    %v1911 = vpop.f32.mrb[0].mxu0
    %1912 = vmatprep.mubr.f32.mxu0 0.0
    %1913 = vmatmul.mubr.f32.gmra.mrb[0].mxu0 %v1527
    %v1914 = vpop.f32.mrb[0].mxu0
    %v1915 = vadd.f32 0.0, %v1914
    %v1916 = vpop.f32.mrb[0].mxu0
    %1917 = vdwg.mxu0
    %v1919 = vsel %vm1336, %v1209, 0
    %v1922 = vsel %vm1336, %v1210, 0
    %v1925 = vsel %vm1336, %v1241, 0
    %v1928 = vsel %vm1336, %v1242, 0
    %v1931 = vsel %vm1529, %v1274, 0
    %1933 = vmatprep.subr.mxu0 0.0
    %1934 = vmatpush1.msra.mxu0 %v1273
    %1935 = vmatprep.subr.mxu0 0.0
    %1936 = vmatpush1.msra.mxu0 %v1931
    %1937 = vmatprep.subr.mxu0 0.0
    %1938 = vmatpush1.msra.mxu0 0.0
    %1939 = vmatprep.subr.mxu0 0.0
    %1940 = vmatpush1.msra.mxu0 0.0
    %1941 = vmatprep.subr.mxu0 0.0
    %1942 = vmatpush1.msra.mxu0 0.0
    %1943 = vmatprep.subr.mxu0 0.0
    %1944 = vmatpush1.msra.mxu0 0.0
    %1945 = vmatprep.subr.mxu0 0.0
    %1946 = vmatpush1.msra.mxu0 0.0
    %1947 = vmatprep.subr.mxu0 0.0
    %1948 = vmatpush1.msra.mxu0 0.0
    %1949 = vmatprep.subr.mxu0 0.0
    %1950 = vmatpush1.msra.mxu0 0.0
    %1951 = vmatprep.subr.mxu0 0.0
    %1952 = vmatpush1.msra.mxu0 0.0
    %1953 = vmatprep.subr.mxu0 0.0
    %1954 = vmatpush1.msra.mxu0 0.0
    %1955 = vmatprep.subr.mxu0 0.0
    %1956 = vmatpush1.msra.mxu0 0.0
    %1957 = vmatprep.subr.mxu0 0.0
    %1958 = vmatpush1.msra.mxu0 0.0
    %1959 = vmatprep.subr.mxu0 0.0
    %1960 = vmatpush1.msra.mxu0 0.0
    %1961 = vmatprep.subr.mxu0 0.0
    %1962 = vmatpush1.msra.mxu0 0.0
    %1963 = vmatprep.subr.mxu0 0.0
    %1964 = vmatpush1.msra.mxu0 0.0
    %1965 = vmatprep.subr.mxu0 0.0
    %1966 = vmatpush1.msra.mxu0 0.0
    %1967 = vmatprep.subr.mxu0 0.0
    %1968 = vmatpush1.msra.mxu0 0.0
    %1969 = vmatprep.subr.mxu0 0.0
    %1970 = vmatpush1.msra.mxu0 0.0
    %1971 = vmatprep.subr.mxu0 0.0
    %1972 = vmatpush1.msra.mxu0 0.0
    %1973 = vmatprep.subr.mxu0 0.0
    %1974 = vmatpush1.msra.mxu0 0.0
    %1975 = vmatprep.subr.mxu0 0.0
    %1976 = vmatpush1.msra.mxu0 0.0
    %1977 = vmatprep.subr.mxu0 0.0
    %1978 = vmatpush1.msra.mxu0 0.0
    %1979 = vmatprep.subr.mxu0 0.0
    %1980 = vmatpush1.msra.mxu0 0.0
    %1981 = vmatprep.subr.mxu0 0.0
    %1982 = vmatpush1.msra.mxu0 0.0
    %1983 = vmatprep.subr.mxu0 0.0
    %1984 = vmatpush1.msra.mxu0 0.0
    %1985 = vmatprep.subr.mxu0 0.0
    %1986 = vmatpush1.msra.mxu0 0.0
    %1987 = vmatprep.subr.mxu0 0.0
    %1988 = vmatpush1.msra.mxu0 0.0
    %1989 = vmatprep.subr.mxu0 0.0
    %1990 = vmatpush1.msra.mxu0 0.0
    %1991 = vmatprep.subr.mxu0 0.0
    %1992 = vmatpush1.msra.mxu0 0.0
    %1993 = vmatprep.subr.mxu0 0.0
    %1994 = vmatpush1.msra.mxu0 0.0
    %1995 = vmatprep.subr.mxu0 0.0
    %1996 = vmatpush1.msra.mxu0 0.0
    %1997 = vmatprep.mubr.f32.mxu0 0.0
    %1998 = vmatmul.mubr.f32.gmra.mrb[0].mxu0 %v1919
    %v1999 = vpop.f32.mrb[0].mxu0
    %v2000 = vadd.f32 %v1600, %v1999
    %v2001 = vpop.f32.mrb[0].mxu0
    %2002 = vmatprep.mubr.f32.mxu0 0.0
    %2003 = vmatmul.mubr.f32.gmra.mrb[0].mxu0 %v1922
    %v2004 = vpop.f32.mrb[0].mxu0
    %v2005 = vadd.f32 %v1605, %v2004
    %v2006 = vpop.f32.mrb[0].mxu0
    %2007 = vmatprep.mubr.f32.mxu0 0.0
    %2008 = vmatmul.mubr.f32.gmra.mrb[0].mxu0 %v1338
    %v2009 = vpop.f32.mrb[0].mxu0
    %v2010 = vadd.f32 %v1610, %v2009
    %v2011 = vpop.f32.mrb[0].mxu0
    %2012 = vmatprep.mubr.f32.mxu0 0.0
    %2013 = vmatmul.mubr.f32.gmra.mrb[0].mxu0 %v1341
    %v2014 = vpop.f32.mrb[0].mxu0
    %v2015 = vadd.f32 %v1615, %v2014
    %v2016 = vpop.f32.mrb[0].mxu0
    %2017 = vmatprep.mubr.f32.mxu0 0.0
    %2018 = vmatmul.mubr.f32.gmra.mrb[0].mxu0 %v1344
    %v2019 = vpop.f32.mrb[0].mxu0
    %v2020 = vadd.f32 %v1620, %v2019
    %v2021 = vpop.f32.mrb[0].mxu0
    %2022 = vmatprep.mubr.f32.mxu0 0.0
    %2023 = vmatmul.mubr.f32.gmra.mrb[0].mxu0 %v1347
    %v2024 = vpop.f32.mrb[0].mxu0
    %v2025 = vadd.f32 %v1625, %v2024
    %v2026 = vpop.f32.mrb[0].mxu0
    %2027 = vmatprep.mubr.f32.mxu0 0.0
    %2028 = vmatmul.mubr.f32.gmra.mrb[0].mxu0 %v1350
    %v2029 = vpop.f32.mrb[0].mxu0
    %v2030 = vadd.f32 %v1630, %v2029
    %v2031 = vpop.f32.mrb[0].mxu0
    %2032 = vmatprep.mubr.f32.mxu0 0.0
    %2033 = vmatmul.mubr.f32.gmra.mrb[0].mxu0 %v1353
    %v2034 = vpop.f32.mrb[0].mxu0
    %v2035 = vadd.f32 %v1635, %v2034
    %v2036 = vpop.f32.mrb[0].mxu0
    %2037 = vmatprep.mubr.f32.mxu0 0.0
    %2038 = vmatmul.mubr.f32.gmra.mrb[0].mxu0 %v1356
    %v2039 = vpop.f32.mrb[0].mxu0
    %v2040 = vadd.f32 %v1640, %v2039
    %v2041 = vpop.f32.mrb[0].mxu0
    %2042 = vmatprep.mubr.f32.mxu0 0.0
    %2043 = vmatmul.mubr.f32.gmra.mrb[0].mxu0 %v1359
    %v2044 = vpop.f32.mrb[0].mxu0
    %v2045 = vadd.f32 %v1645, %v2044
    %v2046 = vpop.f32.mrb[0].mxu0
    %2047 = vmatprep.mubr.f32.mxu0 0.0
    %2048 = vmatmul.mubr.f32.gmra.mrb[0].mxu0 %v1362
    %v2049 = vpop.f32.mrb[0].mxu0
    %v2050 = vadd.f32 %v1650, %v2049
    %v2051 = vpop.f32.mrb[0].mxu0
    %2052 = vmatprep.mubr.f32.mxu0 0.0
    %2053 = vmatmul.mubr.f32.gmra.mrb[0].mxu0 %v1365
    %v2054 = vpop.f32.mrb[0].mxu0
    %v2055 = vadd.f32 %v1655, %v2054
    %v2056 = vpop.f32.mrb[0].mxu0
    %2057 = vmatprep.mubr.f32.mxu0 0.0
    %2058 = vmatmul.mubr.f32.gmra.mrb[0].mxu0 %v1368
    %v2059 = vpop.f32.mrb[0].mxu0
    %v2060 = vadd.f32 %v1660, %v2059
    %v2061 = vpop.f32.mrb[0].mxu0
    %2062 = vmatprep.mubr.f32.mxu0 0.0
    %2063 = vmatmul.mubr.f32.gmra.mrb[0].mxu0 %v1371
    %v2064 = vpop.f32.mrb[0].mxu0
    %v2065 = vadd.f32 %v1665, %v2064
    %v2066 = vpop.f32.mrb[0].mxu0
    %2067 = vmatprep.mubr.f32.mxu0 0.0
    %2068 = vmatmul.mubr.f32.gmra.mrb[0].mxu0 %v1374
    %v2069 = vpop.f32.mrb[0].mxu0
    %v2070 = vadd.f32 %v1670, %v2069
    %v2071 = vpop.f32.mrb[0].mxu0
    %2072 = vmatprep.mubr.f32.mxu0 0.0
    %2073 = vmatmul.mubr.f32.gmra.mrb[0].mxu0 %v1377
    %v2074 = vpop.f32.mrb[0].mxu0
    %v2075 = vadd.f32 %v1675, %v2074
    %v2076 = vpop.f32.mrb[0].mxu0
    %2077 = vmatprep.mubr.f32.mxu0 0.0
    %2078 = vmatmul.mubr.f32.gmra.mrb[0].mxu0 %v1380
    %v2079 = vpop.f32.mrb[0].mxu0
    %v2080 = vadd.f32 %v1680, %v2079
    %v2081 = vpop.f32.mrb[0].mxu0
    %2082 = vmatprep.mubr.f32.mxu0 0.0
    %2083 = vmatmul.mubr.f32.gmra.mrb[0].mxu0 %v1383
    %v2084 = vpop.f32.mrb[0].mxu0
    %v2085 = vadd.f32 %v1685, %v2084
    %v2086 = vpop.f32.mrb[0].mxu0
    %2087 = vmatprep.mubr.f32.mxu0 0.0
    %2088 = vmatmul.mubr.f32.gmra.mrb[0].mxu0 %v1386
    %v2089 = vpop.f32.mrb[0].mxu0
    %v2090 = vadd.f32 %v1690, %v2089
    %v2091 = vpop.f32.mrb[0].mxu0
    %2092 = vmatprep.mubr.f32.mxu0 0.0
    %2093 = vmatmul.mubr.f32.gmra.mrb[0].mxu0 %v1389
    %v2094 = vpop.f32.mrb[0].mxu0
    %v2095 = vadd.f32 %v1695, %v2094
    %v2096 = vpop.f32.mrb[0].mxu0
    %2097 = vmatprep.mubr.f32.mxu0 0.0
    %2098 = vmatmul.mubr.f32.gmra.mrb[0].mxu0 %v1392
    %v2099 = vpop.f32.mrb[0].mxu0
    %v2100 = vadd.f32 %v1700, %v2099
    %v2101 = vpop.f32.mrb[0].mxu0
    %2102 = vmatprep.mubr.f32.mxu0 0.0
    %2103 = vmatmul.mubr.f32.gmra.mrb[0].mxu0 %v1395
    %v2104 = vpop.f32.mrb[0].mxu0
    %v2105 = vadd.f32 %v1705, %v2104
    %v2106 = vpop.f32.mrb[0].mxu0
    %2107 = vmatprep.mubr.f32.mxu0 0.0
    %2108 = vmatmul.mubr.f32.gmra.mrb[0].mxu0 %v1398
    %v2109 = vpop.f32.mrb[0].mxu0
    %v2110 = vadd.f32 %v1710, %v2109
    %v2111 = vpop.f32.mrb[0].mxu0
    %2112 = vmatprep.mubr.f32.mxu0 0.0
    %2113 = vmatmul.mubr.f32.gmra.mrb[0].mxu0 %v1401
    %v2114 = vpop.f32.mrb[0].mxu0
    %v2115 = vadd.f32 %v1715, %v2114
    %v2116 = vpop.f32.mrb[0].mxu0
    %2117 = vmatprep.mubr.f32.mxu0 0.0
    %2118 = vmatmul.mubr.f32.gmra.mrb[0].mxu0 %v1404
    %v2119 = vpop.f32.mrb[0].mxu0
    %v2120 = vadd.f32 %v1720, %v2119
    %v2121 = vpop.f32.mrb[0].mxu0
    %2122 = vmatprep.mubr.f32.mxu0 0.0
    %2123 = vmatmul.mubr.f32.gmra.mrb[0].mxu0 %v1407
    %v2124 = vpop.f32.mrb[0].mxu0
    %v2125 = vadd.f32 %v1725, %v2124
    %v2126 = vpop.f32.mrb[0].mxu0
    %2127 = vmatprep.mubr.f32.mxu0 0.0
    %2128 = vmatmul.mubr.f32.gmra.mrb[0].mxu0 %v1410
    %v2129 = vpop.f32.mrb[0].mxu0
    %v2130 = vadd.f32 %v1730, %v2129
    %v2131 = vpop.f32.mrb[0].mxu0
    %2132 = vmatprep.mubr.f32.mxu0 0.0
    %2133 = vmatmul.mubr.f32.gmra.mrb[0].mxu0 %v1413
    %v2134 = vpop.f32.mrb[0].mxu0
    %v2135 = vadd.f32 %v1735, %v2134
    %v2136 = vpop.f32.mrb[0].mxu0
    %2137 = vmatprep.mubr.f32.mxu0 0.0
    %2138 = vmatmul.mubr.f32.gmra.mrb[0].mxu0 %v1416
    %v2139 = vpop.f32.mrb[0].mxu0
    %v2140 = vadd.f32 %v1740, %v2139
    %v2141 = vpop.f32.mrb[0].mxu0
    %2142 = vmatprep.mubr.f32.mxu0 0.0
    %2143 = vmatmul.mubr.f32.gmra.mrb[0].mxu0 %v1419
    %v2144 = vpop.f32.mrb[0].mxu0
    %v2145 = vadd.f32 %v1745, %v2144
    %v2146 = vpop.f32.mrb[0].mxu0
    %2147 = vmatprep.mubr.f32.mxu0 0.0
    %2148 = vmatmul.mubr.f32.gmra.mrb[0].mxu0 %v1422
    %v2149 = vpop.f32.mrb[0].mxu0
    %v2150 = vadd.f32 %v1750, %v2149
    %v2151 = vpop.f32.mrb[0].mxu0
    %2152 = vmatprep.mubr.f32.mxu0 0.0
    %2153 = vmatmul.mubr.f32.gmra.mrb[0].mxu0 %v1425
    %v2154 = vpop.f32.mrb[0].mxu0
    %v2155 = vadd.f32 %v1755, %v2154
    %v2156 = vpop.f32.mrb[0].mxu0
    %2157 = vmatprep.mubr.f32.mxu0 0.0
    %2158 = vmatmul.mubr.f32.gmra.mrb[0].mxu0 %v1925
    %v2159 = vpop.f32.mrb[0].mxu0
    %v2160 = vadd.f32 %v1760, %v2159
    %v2161 = vpop.f32.mrb[0].mxu0
    %2162 = vmatprep.mubr.f32.mxu0 0.0
    %2163 = vmatmul.mubr.f32.gmra.mrb[0].mxu0 %v1928
    %v2164 = vpop.f32.mrb[0].mxu0
    %v2165 = vadd.f32 %v1765, %v2164
    %v2166 = vpop.f32.mrb[0].mxu0
    %2167 = vmatprep.mubr.f32.mxu0 0.0
    %2168 = vmatmul.mubr.f32.gmra.mrb[0].mxu0 %v1434
    %v2169 = vpop.f32.mrb[0].mxu0
    %v2170 = vadd.f32 %v1770, %v2169
    %v2171 = vpop.f32.mrb[0].mxu0
    %2172 = vmatprep.mubr.f32.mxu0 0.0
    %2173 = vmatmul.mubr.f32.gmra.mrb[0].mxu0 %v1437
    %v2174 = vpop.f32.mrb[0].mxu0
    %v2175 = vadd.f32 %v1775, %v2174
    %v2176 = vpop.f32.mrb[0].mxu0
    %2177 = vmatprep.mubr.f32.mxu0 0.0
    %2178 = vmatmul.mubr.f32.gmra.mrb[0].mxu0 %v1440
    %v2179 = vpop.f32.mrb[0].mxu0
    %v2180 = vadd.f32 %v1780, %v2179
    %v2181 = vpop.f32.mrb[0].mxu0
    %2182 = vmatprep.mubr.f32.mxu0 0.0
    %2183 = vmatmul.mubr.f32.gmra.mrb[0].mxu0 %v1443
    %v2184 = vpop.f32.mrb[0].mxu0
    %v2185 = vadd.f32 %v1785, %v2184
    %v2186 = vpop.f32.mrb[0].mxu0
    %2187 = vmatprep.mubr.f32.mxu0 0.0
    %2188 = vmatmul.mubr.f32.gmra.mrb[0].mxu0 %v1446
    %v2189 = vpop.f32.mrb[0].mxu0
    %v2190 = vadd.f32 %v1790, %v2189
    %v2191 = vpop.f32.mrb[0].mxu0
    %2192 = vmatprep.mubr.f32.mxu0 0.0
    %2193 = vmatmul.mubr.f32.gmra.mrb[0].mxu0 %v1449
    %v2194 = vpop.f32.mrb[0].mxu0
    %v2195 = vadd.f32 %v1795, %v2194
    %v2196 = vpop.f32.mrb[0].mxu0
    %2197 = vmatprep.mubr.f32.mxu0 0.0
    %2198 = vmatmul.mubr.f32.gmra.mrb[0].mxu0 %v1452
    %v2199 = vpop.f32.mrb[0].mxu0
    %v2200 = vadd.f32 %v1800, %v2199
    %v2201 = vpop.f32.mrb[0].mxu0
    %2202 = vmatprep.mubr.f32.mxu0 0.0
    %2203 = vmatmul.mubr.f32.gmra.mrb[0].mxu0 %v1455
    %v2204 = vpop.f32.mrb[0].mxu0
    %v2205 = vadd.f32 %v1805, %v2204
    %v2206 = vpop.f32.mrb[0].mxu0
    %2207 = vmatprep.mubr.f32.mxu0 0.0
    %2208 = vmatmul.mubr.f32.gmra.mrb[0].mxu0 %v1458
    %v2209 = vpop.f32.mrb[0].mxu0
    %v2210 = vadd.f32 %v1810, %v2209
    %v2211 = vpop.f32.mrb[0].mxu0
    %2212 = vmatprep.mubr.f32.mxu0 0.0
    %2213 = vmatmul.mubr.f32.gmra.mrb[0].mxu0 %v1461
    %v2214 = vpop.f32.mrb[0].mxu0
    %v2215 = vadd.f32 %v1815, %v2214
    %v2216 = vpop.f32.mrb[0].mxu0
    %2217 = vmatprep.mubr.f32.mxu0 0.0
    %2218 = vmatmul.mubr.f32.gmra.mrb[0].mxu0 %v1464
    %v2219 = vpop.f32.mrb[0].mxu0
    %v2220 = vadd.f32 %v1820, %v2219
    %v2221 = vpop.f32.mrb[0].mxu0
    %2222 = vmatprep.mubr.f32.mxu0 0.0
    %2223 = vmatmul.mubr.f32.gmra.mrb[0].mxu0 %v1467
    %v2224 = vpop.f32.mrb[0].mxu0
    %v2225 = vadd.f32 %v1825, %v2224
    %v2226 = vpop.f32.mrb[0].mxu0
    %2227 = vmatprep.mubr.f32.mxu0 0.0
    %2228 = vmatmul.mubr.f32.gmra.mrb[0].mxu0 %v1470
    %v2229 = vpop.f32.mrb[0].mxu0
    %v2230 = vadd.f32 %v1830, %v2229
    %v2231 = vpop.f32.mrb[0].mxu0
    %2232 = vmatprep.mubr.f32.mxu0 0.0
    %2233 = vmatmul.mubr.f32.gmra.mrb[0].mxu0 %v1473
    %v2234 = vpop.f32.mrb[0].mxu0
    %v2235 = vadd.f32 %v1835, %v2234
    %v2236 = vpop.f32.mrb[0].mxu0
    %2237 = vmatprep.mubr.f32.mxu0 0.0
    %2238 = vmatmul.mubr.f32.gmra.mrb[0].mxu0 %v1476
    %v2239 = vpop.f32.mrb[0].mxu0
    %v2240 = vadd.f32 %v1840, %v2239
    %v2241 = vpop.f32.mrb[0].mxu0
    %2242 = vmatprep.mubr.f32.mxu0 0.0
    %2243 = vmatmul.mubr.f32.gmra.mrb[0].mxu0 %v1479
    %v2244 = vpop.f32.mrb[0].mxu0
    %v2245 = vadd.f32 %v1845, %v2244
    %v2246 = vpop.f32.mrb[0].mxu0
    %2247 = vmatprep.mubr.f32.mxu0 0.0
    %2248 = vmatmul.mubr.f32.gmra.mrb[0].mxu0 %v1482
    %v2249 = vpop.f32.mrb[0].mxu0
    %v2250 = vadd.f32 %v1850, %v2249
    %v2251 = vpop.f32.mrb[0].mxu0
    %2252 = vmatprep.mubr.f32.mxu0 0.0
    %2253 = vmatmul.mubr.f32.gmra.mrb[0].mxu0 %v1485
    %v2254 = vpop.f32.mrb[0].mxu0
    %v2255 = vadd.f32 %v1855, %v2254
    %v2256 = vpop.f32.mrb[0].mxu0
    %2257 = vmatprep.mubr.f32.mxu0 0.0
    %2258 = vmatmul.mubr.f32.gmra.mrb[0].mxu0 %v1488
    %v2259 = vpop.f32.mrb[0].mxu0
    %v2260 = vadd.f32 %v1860, %v2259
    %v2261 = vpop.f32.mrb[0].mxu0
    %2262 = vmatprep.mubr.f32.mxu0 0.0
    %2263 = vmatmul.mubr.f32.gmra.mrb[0].mxu0 %v1491
    %v2264 = vpop.f32.mrb[0].mxu0
    %v2265 = vadd.f32 %v1865, %v2264
    %v2266 = vpop.f32.mrb[0].mxu0
    %2267 = vmatprep.mubr.f32.mxu0 0.0
    %2268 = vmatmul.mubr.f32.gmra.mrb[0].mxu0 %v1494
    %v2269 = vpop.f32.mrb[0].mxu0
    %v2270 = vadd.f32 %v1870, %v2269
    %v2271 = vpop.f32.mrb[0].mxu0
    %2272 = vmatprep.mubr.f32.mxu0 0.0
    %2273 = vmatmul.mubr.f32.gmra.mrb[0].mxu0 %v1497
    %v2274 = vpop.f32.mrb[0].mxu0
    %v2275 = vadd.f32 %v1875, %v2274
    %v2276 = vpop.f32.mrb[0].mxu0
    %2277 = vmatprep.mubr.f32.mxu0 0.0
    %2278 = vmatmul.mubr.f32.gmra.mrb[0].mxu0 %v1500
    %v2279 = vpop.f32.mrb[0].mxu0
    %v2280 = vadd.f32 %v1880, %v2279
    %v2281 = vpop.f32.mrb[0].mxu0
    %2282 = vmatprep.mubr.f32.mxu0 0.0
    %2283 = vmatmul.mubr.f32.gmra.mrb[0].mxu0 %v1503
    %v2284 = vpop.f32.mrb[0].mxu0
    %v2285 = vadd.f32 %v1885, %v2284
    %v2286 = vpop.f32.mrb[0].mxu0
    %2287 = vmatprep.mubr.f32.mxu0 0.0
    %2288 = vmatmul.mubr.f32.gmra.mrb[0].mxu0 %v1506
    %v2289 = vpop.f32.mrb[0].mxu0
    %v2290 = vadd.f32 %v1890, %v2289
    %v2291 = vpop.f32.mrb[0].mxu0
    %2292 = vmatprep.mubr.f32.mxu0 0.0
    %2293 = vmatmul.mubr.f32.gmra.mrb[0].mxu0 %v1509
    %v2294 = vpop.f32.mrb[0].mxu0
    %v2295 = vadd.f32 %v1895, %v2294
    %v2296 = vpop.f32.mrb[0].mxu0
    %2297 = vmatprep.mubr.f32.mxu0 0.0
    %2298 = vmatmul.mubr.f32.gmra.mrb[0].mxu0 %v1512
    %v2299 = vpop.f32.mrb[0].mxu0
    %v2300 = vadd.f32 %v1900, %v2299
    %v2301 = vpop.f32.mrb[0].mxu0
    %2302 = vmatprep.mubr.f32.mxu0 0.0
    %2303 = vmatmul.mubr.f32.gmra.mrb[0].mxu0 %v1515
    %v2304 = vpop.f32.mrb[0].mxu0
    %v2305 = vadd.f32 %v1905, %v2304
    %v2306 = vpop.f32.mrb[0].mxu0
    %2307 = vmatprep.mubr.f32.mxu0 0.0
    %2308 = vmatmul.mubr.f32.gmra.mrb[0].mxu0 %v1518
    %v2309 = vpop.f32.mrb[0].mxu0
    %v2310 = vadd.f32 %v1910, %v2309
    %v2311 = vpop.f32.mrb[0].mxu0
    %2312 = vmatprep.mubr.f32.mxu0 0.0
    %2313 = vmatmul.mubr.f32.gmra.mrb[0].mxu0 %v1521
    %v2314 = vpop.f32.mrb[0].mxu0
    %v2315 = vadd.f32 %v1915, %v2314
    %v2316 = vpop.f32.mrb[0].mxu0
    %2317 = vdwg.mxu0
    %v2324 = vrot.slane %v285, 1
    %v2325 = vrot.slane %v286, 1
    %v2326 = vsel %vm438, %v2324, %v2325
    %v2327 = vrot.slane %v287, 1
    %v2328 = vsel %vm438, %v2325, %v2327
    %v2329 = vrot.slane %v339, 1
    %v2330 = vrot.slane %v340, 1
    %v2331 = vsel %vm438, %v2329, %v2330
    %v2332 = vrot.slane %v341, 1
    %v2333 = vsel %vm438, %v2330, %v2332
    %2334 = vrot.lane.b32.xlu0 %v2326, 4
    %v2335 = vpop.permute.xlu0 %2334
    %2336 = vrot.lane.b32.xlu0 %v2328, 4
    %v2337 = vpop.permute.xlu0 %2336
    %2338 = vrot.lane.b32.xlu0 %v2331, 4
    %v2339 = vpop.permute.xlu0 %2338
    %2340 = vrot.lane.b32.xlu0 %v2333, 4
    %v2341 = vpop.permute.xlu0 %2340
    %v2346 = vrot.slane %v285, 2
    %v2347 = vrot.slane %v286, 2
    %v2348 = vsel %vm791, %v2346, %v2347
    %v2349 = vrot.slane %v287, 2
    %v2350 = vsel %vm791, %v2347, %v2349
    %v2351 = vrot.slane %v339, 2
    %v2352 = vrot.slane %v340, 2
    %v2353 = vsel %vm791, %v2351, %v2352
    %v2354 = vrot.slane %v341, 2
    %v2355 = vsel %vm791, %v2352, %v2354
    %2356 = vrot.lane.b32.xlu0 %v2348, 8
    %v2357 = vpop.permute.xlu0 %2356
    %2358 = vrot.lane.b32.xlu0 %v2350, 8
    %v2359 = vpop.permute.xlu0 %2358
    %2360 = vrot.lane.b32.xlu0 %v2353, 8
    %v2361 = vpop.permute.xlu0 %2360
    %2362 = vrot.lane.b32.xlu0 %v2355, 8
    %v2363 = vpop.permute.xlu0 %2362
    %v2368 = vsel %vm17, %v285, %v2335
    %v2369 = vsel %vm17, %v286, %v2337
    %v2370 = vsel %vm17, %v339, %v2339
    %v2371 = vsel %vm17, %v340, %v2341
    %v2372 = vsel %vm1208, %v2368, %v2357
    %v2373 = vsel %vm1208, %v2369, %v2359
    %v2374 = vsel %vm1208, %v2370, %v2361
    %v2375 = vsel %vm1208, %v2371, %v2363
    %s2376 = scalar_lea.vmem %s1, 32
    %v2377 = vld [vmem:[%s2376] sm:$0xff]
    %v2378 = vld [vmem:[%s2376 + $0x8] sm:$0xf]
    %v2380 = vsel %vm1336, %v2372, 0
    %v2383 = vsel %vm1336, %v2373, 0
    %v2386 = vsel %vm1336, %v2374, 0
    %v2389 = vsel %vm1336, %v2375, 0
    %v2392 = vsel %vm1529, %v2378, 0
    %2394 = vmatprep.subr.mxu0 0.0
    %2395 = vmatpush1.msra.mxu0 %v2377
    %2396 = vmatprep.subr.mxu0 0.0
    %2397 = vmatpush1.msra.mxu0 %v2392
    %2398 = vmatprep.subr.mxu0 0.0
    %2399 = vmatpush1.msra.mxu0 0.0
    %2400 = vmatprep.subr.mxu0 0.0
    %2401 = vmatpush1.msra.mxu0 0.0
    %2402 = vmatprep.subr.mxu0 0.0
    %2403 = vmatpush1.msra.mxu0 0.0
    %2404 = vmatprep.subr.mxu0 0.0
    %2405 = vmatpush1.msra.mxu0 0.0
    %2406 = vmatprep.subr.mxu0 0.0
    %2407 = vmatpush1.msra.mxu0 0.0
    %2408 = vmatprep.subr.mxu0 0.0
    %2409 = vmatpush1.msra.mxu0 0.0
    %2410 = vmatprep.subr.mxu0 0.0
    %2411 = vmatpush1.msra.mxu0 0.0
    %2412 = vmatprep.subr.mxu0 0.0
    %2413 = vmatpush1.msra.mxu0 0.0
    %2414 = vmatprep.subr.mxu0 0.0
    %2415 = vmatpush1.msra.mxu0 0.0
    %2416 = vmatprep.subr.mxu0 0.0
    %2417 = vmatpush1.msra.mxu0 0.0
    %2418 = vmatprep.subr.mxu0 0.0
    %2419 = vmatpush1.msra.mxu0 0.0
    %2420 = vmatprep.subr.mxu0 0.0
    %2421 = vmatpush1.msra.mxu0 0.0
    %2422 = vmatprep.subr.mxu0 0.0
    %2423 = vmatpush1.msra.mxu0 0.0
    %2424 = vmatprep.subr.mxu0 0.0
    %2425 = vmatpush1.msra.mxu0 0.0
    %2426 = vmatprep.subr.mxu0 0.0
    %2427 = vmatpush1.msra.mxu0 0.0
    %2428 = vmatprep.subr.mxu0 0.0
    %2429 = vmatpush1.msra.mxu0 0.0
    %2430 = vmatprep.subr.mxu0 0.0
    %2431 = vmatpush1.msra.mxu0 0.0
    %2432 = vmatprep.subr.mxu0 0.0
    %2433 = vmatpush1.msra.mxu0 0.0
    %2434 = vmatprep.subr.mxu0 0.0
    %2435 = vmatpush1.msra.mxu0 0.0
    %2436 = vmatprep.subr.mxu0 0.0
    %2437 = vmatpush1.msra.mxu0 0.0
    %2438 = vmatprep.subr.mxu0 0.0
    %2439 = vmatpush1.msra.mxu0 0.0
    %2440 = vmatprep.subr.mxu0 0.0
    %2441 = vmatpush1.msra.mxu0 0.0
    %2442 = vmatprep.subr.mxu0 0.0
    %2443 = vmatpush1.msra.mxu0 0.0
    %2444 = vmatprep.subr.mxu0 0.0
    %2445 = vmatpush1.msra.mxu0 0.0
    %2446 = vmatprep.subr.mxu0 0.0
    %2447 = vmatpush1.msra.mxu0 0.0
    %2448 = vmatprep.subr.mxu0 0.0
    %2449 = vmatpush1.msra.mxu0 0.0
    %2450 = vmatprep.subr.mxu0 0.0
    %2451 = vmatpush1.msra.mxu0 0.0
    %2452 = vmatprep.subr.mxu0 0.0
    %2453 = vmatpush1.msra.mxu0 0.0
    %2454 = vmatprep.subr.mxu0 0.0
    %2455 = vmatpush1.msra.mxu0 0.0
    %2456 = vmatprep.subr.mxu0 0.0
    %2457 = vmatpush1.msra.mxu0 0.0
    %2458 = vmatprep.mubr.f32.mxu0 0.0
    %2459 = vmatmul.mubr.f32.gmra.mrb[0].mxu0 %v1344
    %v2460 = vpop.f32.mrb[0].mxu0
    %v2461 = vadd.f32 0.0, %v2460
    %v2462 = vpop.f32.mrb[0].mxu0
    %2463 = vmatprep.mubr.f32.mxu0 0.0
    %2464 = vmatmul.mubr.f32.gmra.mrb[0].mxu0 %v1347
    %v2465 = vpop.f32.mrb[0].mxu0
    %v2466 = vadd.f32 0.0, %v2465
    %v2467 = vpop.f32.mrb[0].mxu0
    %2468 = vmatprep.mubr.f32.mxu0 0.0
    %2469 = vmatmul.mubr.f32.gmra.mrb[0].mxu0 %v1350
    %v2470 = vpop.f32.mrb[0].mxu0
    %v2471 = vadd.f32 0.0, %v2470
    %v2472 = vpop.f32.mrb[0].mxu0
    %2473 = vmatprep.mubr.f32.mxu0 0.0
    %2474 = vmatmul.mubr.f32.gmra.mrb[0].mxu0 %v1353
    %v2475 = vpop.f32.mrb[0].mxu0
    %v2476 = vadd.f32 0.0, %v2475
    %v2477 = vpop.f32.mrb[0].mxu0
    %2478 = vmatprep.mubr.f32.mxu0 0.0
    %2479 = vmatmul.mubr.f32.gmra.mrb[0].mxu0 %v1356
    %v2480 = vpop.f32.mrb[0].mxu0
    %v2481 = vadd.f32 0.0, %v2480
    %v2482 = vpop.f32.mrb[0].mxu0
    %2483 = vmatprep.mubr.f32.mxu0 0.0
    %2484 = vmatmul.mubr.f32.gmra.mrb[0].mxu0 %v1359
    %v2485 = vpop.f32.mrb[0].mxu0
    %v2486 = vadd.f32 0.0, %v2485
    %v2487 = vpop.f32.mrb[0].mxu0
    %2488 = vmatprep.mubr.f32.mxu0 0.0
    %2489 = vmatmul.mubr.f32.gmra.mrb[0].mxu0 %v1362
    %v2490 = vpop.f32.mrb[0].mxu0
    %v2491 = vadd.f32 0.0, %v2490
    %v2492 = vpop.f32.mrb[0].mxu0
    %2493 = vmatprep.mubr.f32.mxu0 0.0
    %2494 = vmatmul.mubr.f32.gmra.mrb[0].mxu0 %v1365
    %v2495 = vpop.f32.mrb[0].mxu0
    %v2496 = vadd.f32 0.0, %v2495
    %v2497 = vpop.f32.mrb[0].mxu0
    %2498 = vmatprep.mubr.f32.mxu0 0.0
    %2499 = vmatmul.mubr.f32.gmra.mrb[0].mxu0 %v1368
    %v2500 = vpop.f32.mrb[0].mxu0
    %v2501 = vadd.f32 0.0, %v2500
    %v2502 = vpop.f32.mrb[0].mxu0
    %2503 = vmatprep.mubr.f32.mxu0 0.0
    %2504 = vmatmul.mubr.f32.gmra.mrb[0].mxu0 %v1371
    %v2505 = vpop.f32.mrb[0].mxu0
    %v2506 = vadd.f32 0.0, %v2505
    %v2507 = vpop.f32.mrb[0].mxu0
    %2508 = vmatprep.mubr.f32.mxu0 0.0
    %2509 = vmatmul.mubr.f32.gmra.mrb[0].mxu0 %v1374
    %v2510 = vpop.f32.mrb[0].mxu0
    %v2511 = vadd.f32 0.0, %v2510
    %v2512 = vpop.f32.mrb[0].mxu0
    %2513 = vmatprep.mubr.f32.mxu0 0.0
    %2514 = vmatmul.mubr.f32.gmra.mrb[0].mxu0 %v1377
    %v2515 = vpop.f32.mrb[0].mxu0
    %v2516 = vadd.f32 0.0, %v2515
    %v2517 = vpop.f32.mrb[0].mxu0
    %2518 = vmatprep.mubr.f32.mxu0 0.0
    %2519 = vmatmul.mubr.f32.gmra.mrb[0].mxu0 %v1380
    %v2520 = vpop.f32.mrb[0].mxu0
    %v2521 = vadd.f32 0.0, %v2520
    %v2522 = vpop.f32.mrb[0].mxu0
    %2523 = vmatprep.mubr.f32.mxu0 0.0
    %2524 = vmatmul.mubr.f32.gmra.mrb[0].mxu0 %v1383
    %v2525 = vpop.f32.mrb[0].mxu0
    %v2526 = vadd.f32 0.0, %v2525
    %v2527 = vpop.f32.mrb[0].mxu0
    %2528 = vmatprep.mubr.f32.mxu0 0.0
    %2529 = vmatmul.mubr.f32.gmra.mrb[0].mxu0 %v1386
    %v2530 = vpop.f32.mrb[0].mxu0
    %v2531 = vadd.f32 0.0, %v2530
    %v2532 = vpop.f32.mrb[0].mxu0
    %2533 = vmatprep.mubr.f32.mxu0 0.0
    %2534 = vmatmul.mubr.f32.gmra.mrb[0].mxu0 %v1389
    %v2535 = vpop.f32.mrb[0].mxu0
    %v2536 = vadd.f32 0.0, %v2535
    %v2537 = vpop.f32.mrb[0].mxu0
    %2538 = vmatprep.mubr.f32.mxu0 0.0
    %2539 = vmatmul.mubr.f32.gmra.mrb[0].mxu0 %v1392
    %v2540 = vpop.f32.mrb[0].mxu0
    %v2541 = vadd.f32 0.0, %v2540
    %v2542 = vpop.f32.mrb[0].mxu0
    %2543 = vmatprep.mubr.f32.mxu0 0.0
    %2544 = vmatmul.mubr.f32.gmra.mrb[0].mxu0 %v1395
    %v2545 = vpop.f32.mrb[0].mxu0
    %v2546 = vadd.f32 0.0, %v2545
    %v2547 = vpop.f32.mrb[0].mxu0
    %2548 = vmatprep.mubr.f32.mxu0 0.0
    %2549 = vmatmul.mubr.f32.gmra.mrb[0].mxu0 %v1398
    %v2550 = vpop.f32.mrb[0].mxu0
    %v2551 = vadd.f32 0.0, %v2550
    %v2552 = vpop.f32.mrb[0].mxu0
    %2553 = vmatprep.mubr.f32.mxu0 0.0
    %2554 = vmatmul.mubr.f32.gmra.mrb[0].mxu0 %v1401
    %v2555 = vpop.f32.mrb[0].mxu0
    %v2556 = vadd.f32 0.0, %v2555
    %v2557 = vpop.f32.mrb[0].mxu0
    %2558 = vmatprep.mubr.f32.mxu0 0.0
    %2559 = vmatmul.mubr.f32.gmra.mrb[0].mxu0 %v1404
    %v2560 = vpop.f32.mrb[0].mxu0
    %v2561 = vadd.f32 0.0, %v2560
    %v2562 = vpop.f32.mrb[0].mxu0
    %2563 = vmatprep.mubr.f32.mxu0 0.0
    %2564 = vmatmul.mubr.f32.gmra.mrb[0].mxu0 %v1407
    %v2565 = vpop.f32.mrb[0].mxu0
    %v2566 = vadd.f32 0.0, %v2565
    %v2567 = vpop.f32.mrb[0].mxu0
    %2568 = vmatprep.mubr.f32.mxu0 0.0
    %2569 = vmatmul.mubr.f32.gmra.mrb[0].mxu0 %v1410
    %v2570 = vpop.f32.mrb[0].mxu0
    %v2571 = vadd.f32 0.0, %v2570
    %v2572 = vpop.f32.mrb[0].mxu0
    %2573 = vmatprep.mubr.f32.mxu0 0.0
    %2574 = vmatmul.mubr.f32.gmra.mrb[0].mxu0 %v1413
    %v2575 = vpop.f32.mrb[0].mxu0
    %v2576 = vadd.f32 0.0, %v2575
    %v2577 = vpop.f32.mrb[0].mxu0
    %2578 = vmatprep.mubr.f32.mxu0 0.0
    %2579 = vmatmul.mubr.f32.gmra.mrb[0].mxu0 %v1416
    %v2580 = vpop.f32.mrb[0].mxu0
    %v2581 = vadd.f32 0.0, %v2580
    %v2582 = vpop.f32.mrb[0].mxu0
    %2583 = vmatprep.mubr.f32.mxu0 0.0
    %2584 = vmatmul.mubr.f32.gmra.mrb[0].mxu0 %v1419
    %v2585 = vpop.f32.mrb[0].mxu0
    %v2586 = vadd.f32 0.0, %v2585
    %v2587 = vpop.f32.mrb[0].mxu0
    %2588 = vmatprep.mubr.f32.mxu0 0.0
    %2589 = vmatmul.mubr.f32.gmra.mrb[0].mxu0 %v1422
    %v2590 = vpop.f32.mrb[0].mxu0
    %v2591 = vadd.f32 0.0, %v2590
    %v2592 = vpop.f32.mrb[0].mxu0
    %2593 = vmatprep.mubr.f32.mxu0 0.0
    %2594 = vmatmul.mubr.f32.gmra.mrb[0].mxu0 %v1425
    %v2595 = vpop.f32.mrb[0].mxu0
    %v2596 = vadd.f32 0.0, %v2595
    %v2597 = vpop.f32.mrb[0].mxu0
    %2598 = vmatprep.mubr.f32.mxu0 0.0
    %2599 = vmatmul.mubr.f32.gmra.mrb[0].mxu0 %v1428
    %v2600 = vpop.f32.mrb[0].mxu0
    %v2601 = vadd.f32 0.0, %v2600
    %v2602 = vpop.f32.mrb[0].mxu0
    %2603 = vmatprep.mubr.f32.mxu0 0.0
    %2604 = vmatmul.mubr.f32.gmra.mrb[0].mxu0 %v1431
    %v2605 = vpop.f32.mrb[0].mxu0
    %v2606 = vadd.f32 0.0, %v2605
    %v2607 = vpop.f32.mrb[0].mxu0
    %2608 = vmatprep.mubr.f32.mxu0 0.0
    %2609 = vmatmul.mubr.f32.gmra.mrb[0].mxu0 %v2380
    %v2610 = vpop.f32.mrb[0].mxu0
    %v2611 = vadd.f32 0.0, %v2610
    %v2612 = vpop.f32.mrb[0].mxu0
    %2613 = vmatprep.mubr.f32.mxu0 0.0
    %2614 = vmatmul.mubr.f32.gmra.mrb[0].mxu0 %v2383
    %v2615 = vpop.f32.mrb[0].mxu0
    %v2616 = vadd.f32 0.0, %v2615
    %v2617 = vpop.f32.mrb[0].mxu0
    %2618 = vmatprep.mubr.f32.mxu0 0.0
    %2619 = vmatmul.mubr.f32.gmra.mrb[0].mxu0 %v1440
    %v2620 = vpop.f32.mrb[0].mxu0
    %v2621 = vadd.f32 0.0, %v2620
    %v2622 = vpop.f32.mrb[0].mxu0
    %2623 = vmatprep.mubr.f32.mxu0 0.0
    %2624 = vmatmul.mubr.f32.gmra.mrb[0].mxu0 %v1443
    %v2625 = vpop.f32.mrb[0].mxu0
    %v2626 = vadd.f32 0.0, %v2625
    %v2627 = vpop.f32.mrb[0].mxu0
    %2628 = vmatprep.mubr.f32.mxu0 0.0
    %2629 = vmatmul.mubr.f32.gmra.mrb[0].mxu0 %v1446
    %v2630 = vpop.f32.mrb[0].mxu0
    %v2631 = vadd.f32 0.0, %v2630
    %v2632 = vpop.f32.mrb[0].mxu0
    %2633 = vmatprep.mubr.f32.mxu0 0.0
    %2634 = vmatmul.mubr.f32.gmra.mrb[0].mxu0 %v1449
    %v2635 = vpop.f32.mrb[0].mxu0
    %v2636 = vadd.f32 0.0, %v2635
    %v2637 = vpop.f32.mrb[0].mxu0
    %2638 = vmatprep.mubr.f32.mxu0 0.0
    %2639 = vmatmul.mubr.f32.gmra.mrb[0].mxu0 %v1452
    %v2640 = vpop.f32.mrb[0].mxu0
    %v2641 = vadd.f32 0.0, %v2640
    %v2642 = vpop.f32.mrb[0].mxu0
    %2643 = vmatprep.mubr.f32.mxu0 0.0
    %2644 = vmatmul.mubr.f32.gmra.mrb[0].mxu0 %v1455
    %v2645 = vpop.f32.mrb[0].mxu0
    %v2646 = vadd.f32 0.0, %v2645
    %v2647 = vpop.f32.mrb[0].mxu0
    %2648 = vmatprep.mubr.f32.mxu0 0.0
    %2649 = vmatmul.mubr.f32.gmra.mrb[0].mxu0 %v1458
    %v2650 = vpop.f32.mrb[0].mxu0
    %v2651 = vadd.f32 0.0, %v2650
    %v2652 = vpop.f32.mrb[0].mxu0
    %2653 = vmatprep.mubr.f32.mxu0 0.0
    %2654 = vmatmul.mubr.f32.gmra.mrb[0].mxu0 %v1461
    %v2655 = vpop.f32.mrb[0].mxu0
    %v2656 = vadd.f32 0.0, %v2655
    %v2657 = vpop.f32.mrb[0].mxu0
    %2658 = vmatprep.mubr.f32.mxu0 0.0
    %2659 = vmatmul.mubr.f32.gmra.mrb[0].mxu0 %v1464
    %v2660 = vpop.f32.mrb[0].mxu0
    %v2661 = vadd.f32 0.0, %v2660
    %v2662 = vpop.f32.mrb[0].mxu0
    %2663 = vmatprep.mubr.f32.mxu0 0.0
    %2664 = vmatmul.mubr.f32.gmra.mrb[0].mxu0 %v1467
    %v2665 = vpop.f32.mrb[0].mxu0
    %v2666 = vadd.f32 0.0, %v2665
    %v2667 = vpop.f32.mrb[0].mxu0
    %2668 = vmatprep.mubr.f32.mxu0 0.0
    %2669 = vmatmul.mubr.f32.gmra.mrb[0].mxu0 %v1470
    %v2670 = vpop.f32.mrb[0].mxu0
    %v2671 = vadd.f32 0.0, %v2670
    %v2672 = vpop.f32.mrb[0].mxu0
    %2673 = vmatprep.mubr.f32.mxu0 0.0
    %2674 = vmatmul.mubr.f32.gmra.mrb[0].mxu0 %v1473
    %v2675 = vpop.f32.mrb[0].mxu0
    %v2676 = vadd.f32 0.0, %v2675
    %v2677 = vpop.f32.mrb[0].mxu0
    %2678 = vmatprep.mubr.f32.mxu0 0.0
    %2679 = vmatmul.mubr.f32.gmra.mrb[0].mxu0 %v1476
    %v2680 = vpop.f32.mrb[0].mxu0
    %v2681 = vadd.f32 0.0, %v2680
    %v2682 = vpop.f32.mrb[0].mxu0
    %2683 = vmatprep.mubr.f32.mxu0 0.0
    %2684 = vmatmul.mubr.f32.gmra.mrb[0].mxu0 %v1479
    %v2685 = vpop.f32.mrb[0].mxu0
    %v2686 = vadd.f32 0.0, %v2685
    %v2687 = vpop.f32.mrb[0].mxu0
    %2688 = vmatprep.mubr.f32.mxu0 0.0
    %2689 = vmatmul.mubr.f32.gmra.mrb[0].mxu0 %v1482
    %v2690 = vpop.f32.mrb[0].mxu0
    %v2691 = vadd.f32 0.0, %v2690
    %v2692 = vpop.f32.mrb[0].mxu0
    %2693 = vmatprep.mubr.f32.mxu0 0.0
    %2694 = vmatmul.mubr.f32.gmra.mrb[0].mxu0 %v1485
    %v2695 = vpop.f32.mrb[0].mxu0
    %v2696 = vadd.f32 0.0, %v2695
    %v2697 = vpop.f32.mrb[0].mxu0
    %2698 = vmatprep.mubr.f32.mxu0 0.0
    %2699 = vmatmul.mubr.f32.gmra.mrb[0].mxu0 %v1488
    %v2700 = vpop.f32.mrb[0].mxu0
    %v2701 = vadd.f32 0.0, %v2700
    %v2702 = vpop.f32.mrb[0].mxu0
    %2703 = vmatprep.mubr.f32.mxu0 0.0
    %2704 = vmatmul.mubr.f32.gmra.mrb[0].mxu0 %v1491
    %v2705 = vpop.f32.mrb[0].mxu0
    %v2706 = vadd.f32 0.0, %v2705
    %v2707 = vpop.f32.mrb[0].mxu0
    %2708 = vmatprep.mubr.f32.mxu0 0.0
    %2709 = vmatmul.mubr.f32.gmra.mrb[0].mxu0 %v1494
    %v2710 = vpop.f32.mrb[0].mxu0
    %v2711 = vadd.f32 0.0, %v2710
    %v2712 = vpop.f32.mrb[0].mxu0
    %2713 = vmatprep.mubr.f32.mxu0 0.0
    %2714 = vmatmul.mubr.f32.gmra.mrb[0].mxu0 %v1497
    %v2715 = vpop.f32.mrb[0].mxu0
    %v2716 = vadd.f32 0.0, %v2715
    %v2717 = vpop.f32.mrb[0].mxu0
    %2718 = vmatprep.mubr.f32.mxu0 0.0
    %2719 = vmatmul.mubr.f32.gmra.mrb[0].mxu0 %v1500
    %v2720 = vpop.f32.mrb[0].mxu0
    %v2721 = vadd.f32 0.0, %v2720
    %v2722 = vpop.f32.mrb[0].mxu0
    %2723 = vmatprep.mubr.f32.mxu0 0.0
    %2724 = vmatmul.mubr.f32.gmra.mrb[0].mxu0 %v1503
    %v2725 = vpop.f32.mrb[0].mxu0
    %v2726 = vadd.f32 0.0, %v2725
    %v2727 = vpop.f32.mrb[0].mxu0
    %2728 = vmatprep.mubr.f32.mxu0 0.0
    %2729 = vmatmul.mubr.f32.gmra.mrb[0].mxu0 %v1506
    %v2730 = vpop.f32.mrb[0].mxu0
    %v2731 = vadd.f32 0.0, %v2730
    %v2732 = vpop.f32.mrb[0].mxu0
    %2733 = vmatprep.mubr.f32.mxu0 0.0
    %2734 = vmatmul.mubr.f32.gmra.mrb[0].mxu0 %v1509
    %v2735 = vpop.f32.mrb[0].mxu0
    %v2736 = vadd.f32 0.0, %v2735
    %v2737 = vpop.f32.mrb[0].mxu0
    %2738 = vmatprep.mubr.f32.mxu0 0.0
    %2739 = vmatmul.mubr.f32.gmra.mrb[0].mxu0 %v1512
    %v2740 = vpop.f32.mrb[0].mxu0
    %v2741 = vadd.f32 0.0, %v2740
    %v2742 = vpop.f32.mrb[0].mxu0
    %2743 = vmatprep.mubr.f32.mxu0 0.0
    %2744 = vmatmul.mubr.f32.gmra.mrb[0].mxu0 %v1515
    %v2745 = vpop.f32.mrb[0].mxu0
    %v2746 = vadd.f32 0.0, %v2745
    %v2747 = vpop.f32.mrb[0].mxu0
    %2748 = vmatprep.mubr.f32.mxu0 0.0
    %2749 = vmatmul.mubr.f32.gmra.mrb[0].mxu0 %v1518
    %v2750 = vpop.f32.mrb[0].mxu0
    %v2751 = vadd.f32 0.0, %v2750
    %v2752 = vpop.f32.mrb[0].mxu0
    %2753 = vmatprep.mubr.f32.mxu0 0.0
    %2754 = vmatmul.mubr.f32.gmra.mrb[0].mxu0 %v1521
    %v2755 = vpop.f32.mrb[0].mxu0
    %v2756 = vadd.f32 0.0, %v2755
    %v2757 = vpop.f32.mrb[0].mxu0
    %2758 = vmatprep.mubr.f32.mxu0 0.0
    %2759 = vmatmul.mubr.f32.gmra.mrb[0].mxu0 %v1524
    %v2760 = vpop.f32.mrb[0].mxu0
    %v2761 = vadd.f32 0.0, %v2760
    %v2762 = vpop.f32.mrb[0].mxu0
    %2763 = vmatprep.mubr.f32.mxu0 0.0
    %2764 = vmatmul.mubr.f32.gmra.mrb[0].mxu0 %v1527
    %v2765 = vpop.f32.mrb[0].mxu0
    %v2766 = vadd.f32 0.0, %v2765
    %v2767 = vpop.f32.mrb[0].mxu0
    %2768 = vmatprep.mubr.f32.mxu0 0.0
    %2769 = vmatmul.mubr.f32.gmra.mrb[0].mxu0 %v2386
    %v2770 = vpop.f32.mrb[0].mxu0
    %v2771 = vadd.f32 0.0, %v2770
    %v2772 = vpop.f32.mrb[0].mxu0
    %2773 = vmatprep.mubr.f32.mxu0 0.0
    %2774 = vmatmul.mubr.f32.gmra.mrb[0].mxu0 %v2389
    %v2775 = vpop.f32.mrb[0].mxu0
    %v2776 = vadd.f32 0.0, %v2775
    %v2777 = vpop.f32.mrb[0].mxu0
    %2778 = vdwg.mxu0
    %v2779 = vadd.f32 %v2000, %v2461
    %v2780 = vadd.f32 %v2005, %v2466
    %v2781 = vadd.f32 %v2010, %v2471
    %v2782 = vadd.f32 %v2015, %v2476
    %v2783 = vadd.f32 %v2020, %v2481
    %v2784 = vadd.f32 %v2025, %v2486
    %v2785 = vadd.f32 %v2030, %v2491
    %v2786 = vadd.f32 %v2035, %v2496
    %v2787 = vadd.f32 %v2040, %v2501
    %v2788 = vadd.f32 %v2045, %v2506
    %v2789 = vadd.f32 %v2050, %v2511
    %v2790 = vadd.f32 %v2055, %v2516
    %v2791 = vadd.f32 %v2060, %v2521
    %v2792 = vadd.f32 %v2065, %v2526
    %v2793 = vadd.f32 %v2070, %v2531
    %v2794 = vadd.f32 %v2075, %v2536
    %v2795 = vadd.f32 %v2080, %v2541
    %v2796 = vadd.f32 %v2085, %v2546
    %v2797 = vadd.f32 %v2090, %v2551
    %v2798 = vadd.f32 %v2095, %v2556
    %v2799 = vadd.f32 %v2100, %v2561
    %v2800 = vadd.f32 %v2105, %v2566
    %v2801 = vadd.f32 %v2110, %v2571
    %v2802 = vadd.f32 %v2115, %v2576
    %v2803 = vadd.f32 %v2120, %v2581
    %v2804 = vadd.f32 %v2125, %v2586
    %v2805 = vadd.f32 %v2130, %v2591
    %v2806 = vadd.f32 %v2135, %v2596
    %v2807 = vadd.f32 %v2140, %v2601
    %v2808 = vadd.f32 %v2145, %v2606
    %v2809 = vadd.f32 %v2150, %v2611
    %v2810 = vadd.f32 %v2155, %v2616
    %v2811 = vadd.f32 %v2160, %v2621
    %v2812 = vadd.f32 %v2165, %v2626
    %v2813 = vadd.f32 %v2170, %v2631
    %v2814 = vadd.f32 %v2175, %v2636
    %v2815 = vadd.f32 %v2180, %v2641
    %v2816 = vadd.f32 %v2185, %v2646
    %v2817 = vadd.f32 %v2190, %v2651
    %v2818 = vadd.f32 %v2195, %v2656
    %v2819 = vadd.f32 %v2200, %v2661
    %v2820 = vadd.f32 %v2205, %v2666
    %v2821 = vadd.f32 %v2210, %v2671
    %v2822 = vadd.f32 %v2215, %v2676
    %v2823 = vadd.f32 %v2220, %v2681
    %v2824 = vadd.f32 %v2225, %v2686
    %v2825 = vadd.f32 %v2230, %v2691
    %v2826 = vadd.f32 %v2235, %v2696
    %v2827 = vadd.f32 %v2240, %v2701
    %v2828 = vadd.f32 %v2245, %v2706
    %v2829 = vadd.f32 %v2250, %v2711
    %v2830 = vadd.f32 %v2255, %v2716
    %v2831 = vadd.f32 %v2260, %v2721
    %v2832 = vadd.f32 %v2265, %v2726
    %v2833 = vadd.f32 %v2270, %v2731
    %v2834 = vadd.f32 %v2275, %v2736
    %v2835 = vadd.f32 %v2280, %v2741
    %v2836 = vadd.f32 %v2285, %v2746
    %v2837 = vadd.f32 %v2290, %v2751
    %v2838 = vadd.f32 %v2295, %v2756
    %v2839 = vadd.f32 %v2300, %v2761
    %v2840 = vadd.f32 %v2305, %v2766
    %v2841 = vadd.f32 %v2310, %v2771
    %v2842 = vadd.f32 %v2315, %v2776
    %v2843 = vld [vmem:[%s2] sm:$0x1]
    %v2845 = vlaneseq
    %v2846 = vshrl.u32 %v2845, 7
    %v2847 = vsub.s32 0, %v2846
    %v2848 = vrot.slane %v2843, %v2847
    %v2850 = vadd.f32 %v2779, %v2848
    %v2851 = vadd.f32 %v2780, %v2848
    %v2852 = vadd.f32 %v2781, %v2848
    %v2853 = vadd.f32 %v2782, %v2848
    %v2854 = vadd.f32 %v2783, %v2848
    %v2855 = vadd.f32 %v2784, %v2848
    %v2856 = vadd.f32 %v2785, %v2848
    %v2857 = vadd.f32 %v2786, %v2848
    %v2858 = vadd.f32 %v2787, %v2848
    %v2859 = vadd.f32 %v2788, %v2848
    %v2860 = vadd.f32 %v2789, %v2848
    %v2861 = vadd.f32 %v2790, %v2848
    %v2862 = vadd.f32 %v2791, %v2848
    %v2863 = vadd.f32 %v2792, %v2848
    %v2864 = vadd.f32 %v2793, %v2848
    %v2865 = vadd.f32 %v2794, %v2848
    %v2866 = vadd.f32 %v2795, %v2848
    %v2867 = vadd.f32 %v2796, %v2848
    %v2868 = vadd.f32 %v2797, %v2848
    %v2869 = vadd.f32 %v2798, %v2848
    %v2870 = vadd.f32 %v2799, %v2848
    %v2871 = vadd.f32 %v2800, %v2848
    %v2872 = vadd.f32 %v2801, %v2848
    %v2873 = vadd.f32 %v2802, %v2848
    %v2874 = vadd.f32 %v2803, %v2848
    %v2875 = vadd.f32 %v2804, %v2848
    %v2876 = vadd.f32 %v2805, %v2848
    %v2877 = vadd.f32 %v2806, %v2848
    %v2878 = vadd.f32 %v2807, %v2848
    %v2879 = vadd.f32 %v2808, %v2848
    %v2880 = vadd.f32 %v2809, %v2848
    %v2881 = vadd.f32 %v2810, %v2848
    %v2882 = vadd.f32 %v2811, %v2848
    %v2883 = vadd.f32 %v2812, %v2848
    %v2884 = vadd.f32 %v2813, %v2848
    %v2885 = vadd.f32 %v2814, %v2848
    %v2886 = vadd.f32 %v2815, %v2848
    %v2887 = vadd.f32 %v2816, %v2848
    %v2888 = vadd.f32 %v2817, %v2848
    %v2889 = vadd.f32 %v2818, %v2848
    %v2890 = vadd.f32 %v2819, %v2848
    %v2891 = vadd.f32 %v2820, %v2848
    %v2892 = vadd.f32 %v2821, %v2848
    %v2893 = vadd.f32 %v2822, %v2848
    %v2894 = vadd.f32 %v2823, %v2848
    %v2895 = vadd.f32 %v2824, %v2848
    %v2896 = vadd.f32 %v2825, %v2848
    %v2897 = vadd.f32 %v2826, %v2848
    %v2898 = vadd.f32 %v2827, %v2848
    %v2899 = vadd.f32 %v2828, %v2848
    %v2900 = vadd.f32 %v2829, %v2848
    %v2901 = vadd.f32 %v2830, %v2848
    %v2902 = vadd.f32 %v2831, %v2848
    %v2903 = vadd.f32 %v2832, %v2848
    %v2904 = vadd.f32 %v2833, %v2848
    %v2905 = vadd.f32 %v2834, %v2848
    %v2906 = vadd.f32 %v2835, %v2848
    %v2907 = vadd.f32 %v2836, %v2848
    %v2908 = vadd.f32 %v2837, %v2848
    %v2909 = vadd.f32 %v2838, %v2848
    %v2910 = vadd.f32 %v2839, %v2848
    %v2911 = vadd.f32 %v2840, %v2848
    %v2912 = vadd.f32 %v2841, %v2848
    %v2913 = vadd.f32 %v2842, %v2848
    %v2914 = vsel %vm1208, %v2850, 0.0
    %v2915 = vsel %vm1208, %v2851, 0.0
    %v2916 = vadd.f32 %v2914, %v2915
    %v2917 = vsel %vm1208, %v2852, 0.0
    %v2918 = vadd.f32 %v2916, %v2917
    %v2919 = vsel %vm1208, %v2853, 0.0
    %v2920 = vadd.f32 %v2918, %v2919
    %v2921 = vsel %vm1208, %v2854, 0.0
    %v2922 = vadd.f32 %v2920, %v2921
    %v2923 = vsel %vm1208, %v2855, 0.0
    %v2924 = vadd.f32 %v2922, %v2923
    %v2925 = vsel %vm1208, %v2856, 0.0
    %v2926 = vadd.f32 %v2924, %v2925
    %v2927 = vsel %vm1208, %v2857, 0.0
    %v2928 = vadd.f32 %v2926, %v2927
    %v2929 = vsel %vm1208, %v2858, 0.0
    %v2930 = vadd.f32 %v2928, %v2929
    %v2931 = vsel %vm1208, %v2859, 0.0
    %v2932 = vadd.f32 %v2930, %v2931
    %v2933 = vsel %vm1208, %v2860, 0.0
    %v2934 = vadd.f32 %v2932, %v2933
    %v2935 = vsel %vm1208, %v2861, 0.0
    %v2936 = vadd.f32 %v2934, %v2935
    %v2937 = vsel %vm1208, %v2862, 0.0
    %v2938 = vadd.f32 %v2936, %v2937
    %v2939 = vsel %vm1208, %v2863, 0.0
    %v2940 = vadd.f32 %v2938, %v2939
    %v2941 = vsel %vm1208, %v2864, 0.0
    %v2942 = vadd.f32 %v2940, %v2941
    %v2943 = vsel %vm1208, %v2865, 0.0
    %v2944 = vadd.f32 %v2942, %v2943
    %v2945 = vsel %vm1208, %v2866, 0.0
    %v2946 = vadd.f32 %v2944, %v2945
    %v2947 = vsel %vm1208, %v2867, 0.0
    %v2948 = vadd.f32 %v2946, %v2947
    %v2949 = vsel %vm1208, %v2868, 0.0
    %v2950 = vadd.f32 %v2948, %v2949
    %v2951 = vsel %vm1208, %v2869, 0.0
    %v2952 = vadd.f32 %v2950, %v2951
    %v2953 = vsel %vm1208, %v2870, 0.0
    %v2954 = vadd.f32 %v2952, %v2953
    %v2955 = vsel %vm1208, %v2871, 0.0
    %v2956 = vadd.f32 %v2954, %v2955
    %v2957 = vsel %vm1208, %v2872, 0.0
    %v2958 = vadd.f32 %v2956, %v2957
    %v2959 = vsel %vm1208, %v2873, 0.0
    %v2960 = vadd.f32 %v2958, %v2959
    %v2961 = vsel %vm1208, %v2874, 0.0
    %v2962 = vadd.f32 %v2960, %v2961
    %v2963 = vsel %vm1208, %v2875, 0.0
    %v2964 = vadd.f32 %v2962, %v2963
    %v2965 = vsel %vm1208, %v2876, 0.0
    %v2966 = vadd.f32 %v2964, %v2965
    %v2967 = vsel %vm1208, %v2877, 0.0
    %v2968 = vadd.f32 %v2966, %v2967
    %v2969 = vsel %vm1208, %v2878, 0.0
    %v2970 = vadd.f32 %v2968, %v2969
    %v2971 = vsel %vm1208, %v2879, 0.0
    %v2972 = vadd.f32 %v2970, %v2971
    %v2973 = vsel %vm1208, %v2880, 0.0
    %v2974 = vadd.f32 %v2972, %v2973
    %v2975 = vsel %vm1208, %v2881, 0.0
    %v2976 = vadd.f32 %v2974, %v2975
    %v2977 = vsel %vm1208, %v2882, 0.0
    %v2978 = vadd.f32 %v2976, %v2977
    %v2979 = vsel %vm1208, %v2883, 0.0
    %v2980 = vadd.f32 %v2978, %v2979
    %v2981 = vsel %vm1208, %v2884, 0.0
    %v2982 = vadd.f32 %v2980, %v2981
    %v2983 = vsel %vm1208, %v2885, 0.0
    %v2984 = vadd.f32 %v2982, %v2983
    %v2985 = vsel %vm1208, %v2886, 0.0
    %v2986 = vadd.f32 %v2984, %v2985
    %v2987 = vsel %vm1208, %v2887, 0.0
    %v2988 = vadd.f32 %v2986, %v2987
    %v2989 = vsel %vm1208, %v2888, 0.0
    %v2990 = vadd.f32 %v2988, %v2989
    %v2991 = vsel %vm1208, %v2889, 0.0
    %v2992 = vadd.f32 %v2990, %v2991
    %v2993 = vsel %vm1208, %v2890, 0.0
    %v2994 = vadd.f32 %v2992, %v2993
    %v2995 = vsel %vm1208, %v2891, 0.0
    %v2996 = vadd.f32 %v2994, %v2995
    %v2997 = vsel %vm1208, %v2892, 0.0
    %v2998 = vadd.f32 %v2996, %v2997
    %v2999 = vsel %vm1208, %v2893, 0.0
    %v3000 = vadd.f32 %v2998, %v2999
    %v3001 = vsel %vm1208, %v2894, 0.0
    %v3002 = vadd.f32 %v3000, %v3001
    %v3003 = vsel %vm1208, %v2895, 0.0
    %v3004 = vadd.f32 %v3002, %v3003
    %v3005 = vsel %vm1208, %v2896, 0.0
    %v3006 = vadd.f32 %v3004, %v3005
    %v3007 = vsel %vm1208, %v2897, 0.0
    %v3008 = vadd.f32 %v3006, %v3007
    %v3009 = vsel %vm1208, %v2898, 0.0
    %v3010 = vadd.f32 %v3008, %v3009
    %v3011 = vsel %vm1208, %v2899, 0.0
    %v3012 = vadd.f32 %v3010, %v3011
    %v3013 = vsel %vm1208, %v2900, 0.0
    %v3014 = vadd.f32 %v3012, %v3013
    %v3015 = vsel %vm1208, %v2901, 0.0
    %v3016 = vadd.f32 %v3014, %v3015
    %v3017 = vsel %vm1208, %v2902, 0.0
    %v3018 = vadd.f32 %v3016, %v3017
    %v3019 = vsel %vm1208, %v2903, 0.0
    %v3020 = vadd.f32 %v3018, %v3019
    %v3021 = vsel %vm1208, %v2904, 0.0
    %v3022 = vadd.f32 %v3020, %v3021
    %v3023 = vsel %vm1208, %v2905, 0.0
    %v3024 = vadd.f32 %v3022, %v3023
    %v3025 = vsel %vm1208, %v2906, 0.0
    %v3026 = vadd.f32 %v3024, %v3025
    %v3027 = vsel %vm1208, %v2907, 0.0
    %v3028 = vadd.f32 %v3026, %v3027
    %v3029 = vsel %vm1208, %v2908, 0.0
    %v3030 = vadd.f32 %v3028, %v3029
    %v3031 = vsel %vm1208, %v2909, 0.0
    %v3032 = vadd.f32 %v3030, %v3031
    %v3033 = vsel %vm1208, %v2910, 0.0
    %v3034 = vadd.f32 %v3032, %v3033
    %v3035 = vsel %vm1208, %v2911, 0.0
    %v3036 = vadd.f32 %v3034, %v3035
    %v3037 = vsel %vm1208, %v2912, 0.0
    %v3038 = vadd.f32 %v3036, %v3037
    %v3039 = vsel %vm1208, %v2913, 0.0
    %v3040 = vadd.f32 %v3038, %v3039
    %v3041 = vrot.slane %v3040, 4
    %v3042 = vadd.f32 %v3040, %v3041
    %v3043 = vrot.slane %v3042, 2
    %v3044 = vadd.f32 %v3042, %v3043
    %v3045 = vrot.slane %v3044, 1
    %v3046 = vadd.f32 %v3044, %v3045
    %v3047 = vmul.f32 %v2850, %v2850
    %v3048 = vmul.f32 %v2851, %v2851
    %v3049 = vmul.f32 %v2852, %v2852
    %v3050 = vmul.f32 %v2853, %v2853
    %v3051 = vmul.f32 %v2854, %v2854
    %v3052 = vmul.f32 %v2855, %v2855
    %v3053 = vmul.f32 %v2856, %v2856
    %v3054 = vmul.f32 %v2857, %v2857
    %v3055 = vmul.f32 %v2858, %v2858
    %v3056 = vmul.f32 %v2859, %v2859
    %v3057 = vmul.f32 %v2860, %v2860
    %v3058 = vmul.f32 %v2861, %v2861
    %v3059 = vmul.f32 %v2862, %v2862
    %v3060 = vmul.f32 %v2863, %v2863
    %v3061 = vmul.f32 %v2864, %v2864
    %v3062 = vmul.f32 %v2865, %v2865
    %v3063 = vmul.f32 %v2866, %v2866
    %v3064 = vmul.f32 %v2867, %v2867
    %v3065 = vmul.f32 %v2868, %v2868
    %v3066 = vmul.f32 %v2869, %v2869
    %v3067 = vmul.f32 %v2870, %v2870
    %v3068 = vmul.f32 %v2871, %v2871
    %v3069 = vmul.f32 %v2872, %v2872
    %v3070 = vmul.f32 %v2873, %v2873
    %v3071 = vmul.f32 %v2874, %v2874
    %v3072 = vmul.f32 %v2875, %v2875
    %v3073 = vmul.f32 %v2876, %v2876
    %v3074 = vmul.f32 %v2877, %v2877
    %v3075 = vmul.f32 %v2878, %v2878
    %v3076 = vmul.f32 %v2879, %v2879
    %v3077 = vmul.f32 %v2880, %v2880
    %v3078 = vmul.f32 %v2881, %v2881
    %v3079 = vmul.f32 %v2882, %v2882
    %v3080 = vmul.f32 %v2883, %v2883
    %v3081 = vmul.f32 %v2884, %v2884
    %v3082 = vmul.f32 %v2885, %v2885
    %v3083 = vmul.f32 %v2886, %v2886
    %v3084 = vmul.f32 %v2887, %v2887
    %v3085 = vmul.f32 %v2888, %v2888
    %v3086 = vmul.f32 %v2889, %v2889
    %v3087 = vmul.f32 %v2890, %v2890
    %v3088 = vmul.f32 %v2891, %v2891
    %v3089 = vmul.f32 %v2892, %v2892
    %v3090 = vmul.f32 %v2893, %v2893
    %v3091 = vmul.f32 %v2894, %v2894
    %v3092 = vmul.f32 %v2895, %v2895
    %v3093 = vmul.f32 %v2896, %v2896
    %v3094 = vmul.f32 %v2897, %v2897
    %v3095 = vmul.f32 %v2898, %v2898
    %v3096 = vmul.f32 %v2899, %v2899
    %v3097 = vmul.f32 %v2900, %v2900
    %v3098 = vmul.f32 %v2901, %v2901
    %v3099 = vmul.f32 %v2902, %v2902
    %v3100 = vmul.f32 %v2903, %v2903
    %v3101 = vmul.f32 %v2904, %v2904
    %v3102 = vmul.f32 %v2905, %v2905
    %v3103 = vmul.f32 %v2906, %v2906
    %v3104 = vmul.f32 %v2907, %v2907
    %v3105 = vmul.f32 %v2908, %v2908
    %v3106 = vmul.f32 %v2909, %v2909
    %v3107 = vmul.f32 %v2910, %v2910
    %v3108 = vmul.f32 %v2911, %v2911
    %v3109 = vmul.f32 %v2912, %v2912
    %v3110 = vmul.f32 %v2913, %v2913
    %v3111 = vsel %vm1208, %v3047, 0.0
    %v3112 = vsel %vm1208, %v3048, 0.0
    %v3113 = vadd.f32 %v3111, %v3112
    %v3114 = vsel %vm1208, %v3049, 0.0
    %v3115 = vadd.f32 %v3113, %v3114
    %v3116 = vsel %vm1208, %v3050, 0.0
    %v3117 = vadd.f32 %v3115, %v3116
    %v3118 = vsel %vm1208, %v3051, 0.0
    %v3119 = vadd.f32 %v3117, %v3118
    %v3120 = vsel %vm1208, %v3052, 0.0
    %v3121 = vadd.f32 %v3119, %v3120
    %v3122 = vsel %vm1208, %v3053, 0.0
    %v3123 = vadd.f32 %v3121, %v3122
    %v3124 = vsel %vm1208, %v3054, 0.0
    %v3125 = vadd.f32 %v3123, %v3124
    %v3126 = vsel %vm1208, %v3055, 0.0
    %v3127 = vadd.f32 %v3125, %v3126
    %v3128 = vsel %vm1208, %v3056, 0.0
    %v3129 = vadd.f32 %v3127, %v3128
    %v3130 = vsel %vm1208, %v3057, 0.0
    %v3131 = vadd.f32 %v3129, %v3130
    %v3132 = vsel %vm1208, %v3058, 0.0
    %v3133 = vadd.f32 %v3131, %v3132
    %v3134 = vsel %vm1208, %v3059, 0.0
    %v3135 = vadd.f32 %v3133, %v3134
    %v3136 = vsel %vm1208, %v3060, 0.0
    %v3137 = vadd.f32 %v3135, %v3136
    %v3138 = vsel %vm1208, %v3061, 0.0
    %v3139 = vadd.f32 %v3137, %v3138
    %v3140 = vsel %vm1208, %v3062, 0.0
    %v3141 = vadd.f32 %v3139, %v3140
    %v3142 = vsel %vm1208, %v3063, 0.0
    %v3143 = vadd.f32 %v3141, %v3142
    %v3144 = vsel %vm1208, %v3064, 0.0
    %v3145 = vadd.f32 %v3143, %v3144
    %v3146 = vsel %vm1208, %v3065, 0.0
    %v3147 = vadd.f32 %v3145, %v3146
    %v3148 = vsel %vm1208, %v3066, 0.0
    %v3149 = vadd.f32 %v3147, %v3148
    %v3150 = vsel %vm1208, %v3067, 0.0
    %v3151 = vadd.f32 %v3149, %v3150
    %v3152 = vsel %vm1208, %v3068, 0.0
    %v3153 = vadd.f32 %v3151, %v3152
    %v3154 = vsel %vm1208, %v3069, 0.0
    %v3155 = vadd.f32 %v3153, %v3154
    %v3156 = vsel %vm1208, %v3070, 0.0
    %v3157 = vadd.f32 %v3155, %v3156
    %v3158 = vsel %vm1208, %v3071, 0.0
    %v3159 = vadd.f32 %v3157, %v3158
    %v3160 = vsel %vm1208, %v3072, 0.0
    %v3161 = vadd.f32 %v3159, %v3160
    %v3162 = vsel %vm1208, %v3073, 0.0
    %v3163 = vadd.f32 %v3161, %v3162
    %v3164 = vsel %vm1208, %v3074, 0.0
    %v3165 = vadd.f32 %v3163, %v3164
    %v3166 = vsel %vm1208, %v3075, 0.0
    %v3167 = vadd.f32 %v3165, %v3166
    %v3168 = vsel %vm1208, %v3076, 0.0
    %v3169 = vadd.f32 %v3167, %v3168
    %v3170 = vsel %vm1208, %v3077, 0.0
    %v3171 = vadd.f32 %v3169, %v3170
    %v3172 = vsel %vm1208, %v3078, 0.0
    %v3173 = vadd.f32 %v3171, %v3172
    %v3174 = vsel %vm1208, %v3079, 0.0
    %v3175 = vadd.f32 %v3173, %v3174
    %v3176 = vsel %vm1208, %v3080, 0.0
    %v3177 = vadd.f32 %v3175, %v3176
    %v3178 = vsel %vm1208, %v3081, 0.0
    %v3179 = vadd.f32 %v3177, %v3178
    %v3180 = vsel %vm1208, %v3082, 0.0
    %v3181 = vadd.f32 %v3179, %v3180
    %v3182 = vsel %vm1208, %v3083, 0.0
    %v3183 = vadd.f32 %v3181, %v3182
    %v3184 = vsel %vm1208, %v3084, 0.0
    %v3185 = vadd.f32 %v3183, %v3184
    %v3186 = vsel %vm1208, %v3085, 0.0
    %v3187 = vadd.f32 %v3185, %v3186
    %v3188 = vsel %vm1208, %v3086, 0.0
    %v3189 = vadd.f32 %v3187, %v3188
    %v3190 = vsel %vm1208, %v3087, 0.0
    %v3191 = vadd.f32 %v3189, %v3190
    %v3192 = vsel %vm1208, %v3088, 0.0
    %v3193 = vadd.f32 %v3191, %v3192
    %v3194 = vsel %vm1208, %v3089, 0.0
    %v3195 = vadd.f32 %v3193, %v3194
    %v3196 = vsel %vm1208, %v3090, 0.0
    %v3197 = vadd.f32 %v3195, %v3196
    %v3198 = vsel %vm1208, %v3091, 0.0
    %v3199 = vadd.f32 %v3197, %v3198
    %v3200 = vsel %vm1208, %v3092, 0.0
    %v3201 = vadd.f32 %v3199, %v3200
    %v3202 = vsel %vm1208, %v3093, 0.0
    %v3203 = vadd.f32 %v3201, %v3202
    %v3204 = vsel %vm1208, %v3094, 0.0
    %v3205 = vadd.f32 %v3203, %v3204
    %v3206 = vsel %vm1208, %v3095, 0.0
    %v3207 = vadd.f32 %v3205, %v3206
    %v3208 = vsel %vm1208, %v3096, 0.0
    %v3209 = vadd.f32 %v3207, %v3208
    %v3210 = vsel %vm1208, %v3097, 0.0
    %v3211 = vadd.f32 %v3209, %v3210
    %v3212 = vsel %vm1208, %v3098, 0.0
    %v3213 = vadd.f32 %v3211, %v3212
    %v3214 = vsel %vm1208, %v3099, 0.0
    %v3215 = vadd.f32 %v3213, %v3214
    %v3216 = vsel %vm1208, %v3100, 0.0
    %v3217 = vadd.f32 %v3215, %v3216
    %v3218 = vsel %vm1208, %v3101, 0.0
    %v3219 = vadd.f32 %v3217, %v3218
    %v3220 = vsel %vm1208, %v3102, 0.0
    %v3221 = vadd.f32 %v3219, %v3220
    %v3222 = vsel %vm1208, %v3103, 0.0
    %v3223 = vadd.f32 %v3221, %v3222
    %v3224 = vsel %vm1208, %v3104, 0.0
    %v3225 = vadd.f32 %v3223, %v3224
    %v3226 = vsel %vm1208, %v3105, 0.0
    %v3227 = vadd.f32 %v3225, %v3226
    %v3228 = vsel %vm1208, %v3106, 0.0
    %v3229 = vadd.f32 %v3227, %v3228
    %v3230 = vsel %vm1208, %v3107, 0.0
    %v3231 = vadd.f32 %v3229, %v3230
    %v3232 = vsel %vm1208, %v3108, 0.0
    %v3233 = vadd.f32 %v3231, %v3232
    %v3234 = vsel %vm1208, %v3109, 0.0
    %v3235 = vadd.f32 %v3233, %v3234
    %v3236 = vsel %vm1208, %v3110, 0.0
    %v3237 = vadd.f32 %v3235, %v3236
    %v3238 = vrot.slane %v3237, 4
    %v3239 = vadd.f32 %v3237, %v3238
    %v3240 = vrot.slane %v3239, 2
    %v3241 = vadd.f32 %v3239, %v3240
    %v3242 = vrot.slane %v3241, 1
    %v3243 = vadd.f32 %v3241, %v3242
    %vm3244 = vcmask 1040384
    %v3245 = vsel %vm3244, %v3046, %v3243
    %vm3246 = vcmask 58368
    %3247 = vst.msk [vmem:[#allocation3] sm:$0x3] %vm3246, %v3245
    %3248 = vst.msk [vmem:[%s3] sm:$0xff] %vm1208, %v2850
    %3249 = vst.msk [vmem:[%s3 + $0x8] sm:$0xff] %vm1208, %v2851
    %3250 = vst.msk [vmem:[%s3 + $0x10] sm:$0xff] %vm1208, %v2852
    %3251 = vst.msk [vmem:[%s3 + $0x18] sm:$0xff] %vm1208, %v2853
    %3252 = vst.msk [vmem:[%s3 + $0x20] sm:$0xff] %vm1208, %v2854
    %3253 = vst.msk [vmem:[%s3 + $0x28] sm:$0xff] %vm1208, %v2855
    %3254 = vst.msk [vmem:[%s3 + $0x30] sm:$0xff] %vm1208, %v2856
    %3255 = vst.msk [vmem:[%s3 + $0x38] sm:$0xff] %vm1208, %v2857
    %3256 = vst.msk [vmem:[%s3 + $0x40] sm:$0xff] %vm1208, %v2858
    %3257 = vst.msk [vmem:[%s3 + $0x48] sm:$0xff] %vm1208, %v2859
    %3258 = vst.msk [vmem:[%s3 + $0x50] sm:$0xff] %vm1208, %v2860
    %3259 = vst.msk [vmem:[%s3 + $0x58] sm:$0xff] %vm1208, %v2861
    %3260 = vst.msk [vmem:[%s3 + $0x60] sm:$0xff] %vm1208, %v2862
    %3261 = vst.msk [vmem:[%s3 + $0x68] sm:$0xff] %vm1208, %v2863
    %3262 = vst.msk [vmem:[%s3 + $0x70] sm:$0xff] %vm1208, %v2864
    %3263 = vst.msk [vmem:[%s3 + $0x78] sm:$0xff] %vm1208, %v2865
    %3264 = vst.msk [vmem:[%s3 + $0x80] sm:$0xff] %vm1208, %v2866
    %3265 = vst.msk [vmem:[%s3 + $0x88] sm:$0xff] %vm1208, %v2867
    %3266 = vst.msk [vmem:[%s3 + $0x90] sm:$0xff] %vm1208, %v2868
    %3267 = vst.msk [vmem:[%s3 + $0x98] sm:$0xff] %vm1208, %v2869
    %3268 = vst.msk [vmem:[%s3 + $0xa0] sm:$0xff] %vm1208, %v2870
    %3269 = vst.msk [vmem:[%s3 + $0xa8] sm:$0xff] %vm1208, %v2871
    %3270 = vst.msk [vmem:[%s3 + $0xb0] sm:$0xff] %vm1208, %v2872
    %3271 = vst.msk [vmem:[%s3 + $0xb8] sm:$0xff] %vm1208, %v2873
    %3272 = vst.msk [vmem:[%s3 + $0xc0] sm:$0xff] %vm1208, %v2874
    %3273 = vst.msk [vmem:[%s3 + $0xc8] sm:$0xff] %vm1208, %v2875
    %3274 = vst.msk [vmem:[%s3 + $0xd0] sm:$0xff] %vm1208, %v2876
    %3275 = vst.msk [vmem:[%s3 + $0xd8] sm:$0xff] %vm1208, %v2877
    %3276 = vst.msk [vmem:[%s3 + $0xe0] sm:$0xff] %vm1208, %v2878
    %3277 = vst.msk [vmem:[%s3 + $0xe8] sm:$0xff] %vm1208, %v2879
    %3278 = vst.msk [vmem:[%s3 + $0xf0] sm:$0xff] %vm1208, %v2880
    %3279 = vst.msk [vmem:[%s3 + $0xf8] sm:$0xff] %vm1208, %v2881
    %3280 = vst.msk [vmem:[%s3 + $0x100] sm:$0xff] %vm1208, %v2882
    %3281 = vst.msk [vmem:[%s3 + $0x108] sm:$0xff] %vm1208, %v2883
    %3282 = vst.msk [vmem:[%s3 + $0x110] sm:$0xff] %vm1208, %v2884
    %3283 = vst.msk [vmem:[%s3 + $0x118] sm:$0xff] %vm1208, %v2885
    %3284 = vst.msk [vmem:[%s3 + $0x120] sm:$0xff] %vm1208, %v2886
    %3285 = vst.msk [vmem:[%s3 + $0x128] sm:$0xff] %vm1208, %v2887
    %3286 = vst.msk [vmem:[%s3 + $0x130] sm:$0xff] %vm1208, %v2888
    %3287 = vst.msk [vmem:[%s3 + $0x138] sm:$0xff] %vm1208, %v2889
    %3288 = vst.msk [vmem:[%s3 + $0x140] sm:$0xff] %vm1208, %v2890
    %3289 = vst.msk [vmem:[%s3 + $0x148] sm:$0xff] %vm1208, %v2891
    %3290 = vst.msk [vmem:[%s3 + $0x150] sm:$0xff] %vm1208, %v2892
    %3291 = vst.msk [vmem:[%s3 + $0x158] sm:$0xff] %vm1208, %v2893
    %3292 = vst.msk [vmem:[%s3 + $0x160] sm:$0xff] %vm1208, %v2894
    %3293 = vst.msk [vmem:[%s3 + $0x168] sm:$0xff] %vm1208, %v2895
    %3294 = vst.msk [vmem:[%s3 + $0x170] sm:$0xff] %vm1208, %v2896
    %3295 = vst.msk [vmem:[%s3 + $0x178] sm:$0xff] %vm1208, %v2897
    %3296 = vst.msk [vmem:[%s3 + $0x180] sm:$0xff] %vm1208, %v2898
    %3297 = vst.msk [vmem:[%s3 + $0x188] sm:$0xff] %vm1208, %v2899
    %3298 = vst.msk [vmem:[%s3 + $0x190] sm:$0xff] %vm1208, %v2900
    %3299 = vst.msk [vmem:[%s3 + $0x198] sm:$0xff] %vm1208, %v2901
    %3300 = vst.msk [vmem:[%s3 + $0x1a0] sm:$0xff] %vm1208, %v2902
    %3301 = vst.msk [vmem:[%s3 + $0x1a8] sm:$0xff] %vm1208, %v2903
    %3302 = vst.msk [vmem:[%s3 + $0x1b0] sm:$0xff] %vm1208, %v2904
    %3303 = vst.msk [vmem:[%s3 + $0x1b8] sm:$0xff] %vm1208, %v2905
    %3304 = vst.msk [vmem:[%s3 + $0x1c0] sm:$0xff] %vm1208, %v2906
    %3305 = vst.msk [vmem:[%s3 + $0x1c8] sm:$0xff] %vm1208, %v2907
    %3306 = vst.msk [vmem:[%s3 + $0x1d0] sm:$0xff] %vm1208, %v2908
    %3307 = vst.msk [vmem:[%s3 + $0x1d8] sm:$0xff] %vm1208, %v2909
    %3308 = vst.msk [vmem:[%s3 + $0x1e0] sm:$0xff] %vm1208, %v2910
    %3309 = vst.msk [vmem:[%s3 + $0x1e8] sm:$0xff] %vm1208, %v2911
    %3310 = vst.msk [vmem:[%s3 + $0x1f0] sm:$0xff] %vm1208, %v2912
    %3311 = vst.msk [vmem:[%s3 + $0x1f8] sm:$0xff] %vm1208, %v2913
    // Predicated region
    $region14: #{tpu_custom_call.1} parent=1 // pred_check
      _
    $region15: #{tpu_custom_call.1} parent=1 // pred_check_branch
      %3313 = sbr.rel (0) target = $region17
    $region16: #{tpu_custom_call.1} parent=1 // pred_region
      _
    $region17: #{tpu_custom_call.1} parent=1 // pred_fallthru
      _
    // Predicated region
    $region18: #{tpu_custom_call.1} parent=1 // pred_check
      _
    $region19: #{tpu_custom_call.1} parent=1 // pred_check_branch
      %3315 = sbr.rel (0) target = $region21
    $region20: #{tpu_custom_call.1} parent=1 // pred_region
      %s3317 = ssub.s32 32, 32
      %3318 = vsyncadd [#allocation4], %s3317
      %s3320 = sshll.u32 [#allocation3], 4
      %s3321 = int_to_ptr.vmem [resolvable:$true] %s3320
      %3323 = dma.vmem_to_hbm [thread:$0]  %s3321, 32, %s4, [#allocation4]
    $region21: #{tpu_custom_call.1} parent=1 // pred_fallthru
      _
    // Predicated region
    $region22: #{tpu_custom_call.1} parent=1 // pred_check
      _
    $region23: #{tpu_custom_call.1} parent=1 // pred_check_branch
      %3325 = sbr.rel (0) target = $region25
    $region24: #{tpu_custom_call.1} parent=1 // pred_region
      _
    $region25: #{tpu_custom_call.1} parent=1 // pred_fallthru
      _
    // Predicated region
    $region26: #{tpu_custom_call.1} parent=1 // pred_check
      _
    $region27: #{tpu_custom_call.1} parent=1 // pred_check_branch
      %3327 = sbr.rel (0) target = $region29
    $region28: #{tpu_custom_call.1} parent=1 // pred_region
      %3328 = dma.done [#allocation4], 32
    $region29: #{tpu_custom_call.1} parent=1 // pred_fallthru
      _
    %3329 = vsyncpa [#allocation4], 1

</llo_original>
